<compile_context>
chip_gen: v6e
topology: v6e:2x2x1
jax: 0.10.0
libtpu: 0.0.40
codegen_flags: <defaults>
</compile_context>

<pallas_src>
import functools

import jax
import jax.numpy as jnp
from jax.experimental import pallas as pl
from jax.experimental.pallas import tpu as pltpu

LANE = 128   # lane width: packed gate block / feature padding
SUB = 16     # batch sublane tile (bf16-native tile height -> aligned dynamic row slices)


# ----------------------------------------------------------------------------
# Fused kernel: L GRU layers + last-step gather + LayerNorm + Linear head
# ----------------------------------------------------------------------------
def _fused_gru_kernel(len_ref, x_ref, wih_ref, whh_ref, bhn_ref,
                      lnw_ref, lnb_ref, fcw_ref, fcb_ref,
                      out_ref, gi_ref, seq_ref,
                      *, T, Bp, H, L, unroll):
    GW = LANE                                            # packed gate-block width
    len_m1 = len_ref[...] - 1                            # (Bp, 1) int32
    col = jax.lax.broadcasted_iota(jnp.int32, (Bp, GW), 1)
    valid = col < H                                      # real hidden lanes
    bias_lane = jnp.where(col == GW - 1, 1.0, 0.0)       # constant-1 lane pattern (f32)

    last = jnp.zeros((Bp, GW), jnp.float32)
    for l in range(L):
        inp = x_ref[...] if l == 0 else seq_ref[...]     # (T*Bp, 128) bf16
        # Hoisted input projection: ONE bf16 MXU matmul per layer.  The r/z/n input
        # biases ride the constant-1 lane (folded into the last row of wih).
        gi_ref[...] = jnp.dot(inp, wih_ref[l],
                              preferred_element_type=jnp.float32).astype(gi_ref.dtype)

        whh_l = whh_ref[l]                               # (128,128) bf16, loop-invariant
        bhn_b = jnp.broadcast_to(bhn_ref[l], (Bp, GW))   # hoisted b_hh_n broadcast
        h0 = jnp.zeros((Bp, GW), jnp.float32)

        def cell(gi_t, h):
            # Single 128-wide recurrent matmul; gates packed as r|z|n in lanes [0,3H).
            gh = jnp.dot(h.astype(jnp.bfloat16), whh_l,
                         preferred_element_type=jnp.float32)       # (Bp, 128)
            gi_f = gi_t.astype(jnp.float32)
            sig = jax.nn.sigmoid(gi_f + gh)              # r in [0,H), z in [H,2H)
            r_at_n = jnp.roll(sig, 2 * H, axis=-1)       # r aligned with the n block
            n = jnp.tanh(gi_f + r_at_n * (gh + bhn_b))   # n in [2H,3H)
            z0 = jnp.roll(sig, -H, axis=-1)              # z aligned to lanes [0,H)
            n0 = jnp.roll(n, -2 * H, axis=-1)            # n aligned to lanes [0,H)
            # lanes >= H carry bounded junk; they never feed real outputs
            # (W_ih/W_hh rows there are zero, LayerNorm masks them).
            return (1.0 - z0) * n0 + z0 * h

        if l == L - 1:
            def step(t, carry):
                h, lst = carry
                row = pl.multiple_of(t * Bp, Bp)
                h_new = cell(gi_ref[pl.ds(row, Bp), :], h)
                lst = jnp.where(len_m1 == t, h_new, lst)   # last-valid-step gather
                return h_new, lst

            _, last = jax.lax.fori_loop(0, T, step, (h0, last), unroll=unroll)
        else:
            def step(t, h):
                row = pl.multiple_of(t * Bp, Bp)
                h_new = cell(gi_ref[pl.ds(row, Bp), :], h)
                # next layer's input: real lanes + constant-1 bias lane, bf16
                seq_ref[pl.ds(row, Bp), :] = jnp.where(
                    valid, h_new, bias_lane).astype(seq_ref.dtype)
                return h_new

            jax.lax.fori_loop(0, T, step, h0, unroll=unroll)

    # ---- LayerNorm over the real H lanes (masked) ---------------------------
    xm = jnp.where(valid, last, 0.0)
    mean = jnp.sum(xm, axis=-1, keepdims=True) * (1.0 / H)
    diff = jnp.where(valid, last - mean, 0.0)
    var = jnp.sum(diff * diff, axis=-1, keepdims=True) * (1.0 / H)
    y = diff * jax.lax.rsqrt(var + 1e-5) * lnw_ref[...] + lnb_ref[...]
    # Dropout(p=0.1) is the identity in eval mode.
    # FC head (out_features=1) as a VPU reduction; padded lanes of y and fcw are 0.
    logit = jnp.sum(y * fcw_ref[...], axis=-1, keepdims=True) + fcb_ref[...]
    out_ref[...] = jnp.broadcast_to(logit, (Bp, GW)).astype(out_ref.dtype)


# ----------------------------------------------------------------------------
# Wrapper: pack/pad weights & activations, one pallas_call
# ----------------------------------------------------------------------------
def _round_up(n, m):
    return ((n + m - 1) // m) * m


@functools.partial(jax.jit, static_argnames=("num_layers",))
def gru_classifier_forward(x, lengths, params, num_layers):
    """x: (B, T, D_in) batch-first (PyTorch convention). Returns (B, 1) logits.

    Requires 1 <= lengths[b] <= T (same constraint as the reference gather).
    """
    B, T, Din = x.shape
    H = params["ln_w"].shape[0]
    assert Din < LANE, "kernel assumes input_size < 128 (one lane reserved for bias)"
    assert 3 * H <= LANE, "packed-gate kernel assumes 3 * hidden_size <= 128"
    Bp = _round_up(max(B, SUB), SUB)
    L = num_layers
    G3 = 3 * H

    # --- weights: transposed, gates packed r|z|n in one 128-lane block, bf16 ---------
    wih_l, whh_l, bhn_l = [], [], []
    for l in range(L):
        w_ih = params[f"w_ih_l{l}"].astype(jnp.float32)     # (3H, d_in)
        w_hh = params[f"w_hh_l{l}"].astype(jnp.float32)     # (3H, H)
        b_ih = params[f"b_ih_l{l}"].astype(jnp.float32)
        b_hh = params[f"b_hh_l{l}"].astype(jnp.float32)
        d_in = w_ih.shape[1]
        # folded input-side bias row [b_r | b_z | b_in]; b_hh_n stays inside r * (.)
        b_row = jnp.concatenate([b_ih[0:H] + b_hh[0:H],
                                 b_ih[H:2 * H] + b_hh[H:2 * H],
                                 b_ih[2 * H:3 * H]])
        wih = jnp.zeros((LANE, LANE), jnp.float32)
        wih = wih.at[:d_in, :G3].set(w_ih.T)
        wih = wih.at[LANE - 1, :G3].set(b_row)              # bias via constant-1 lane
        whh = jnp.zeros((LANE, LANE), jnp.float32)
        whh = whh.at[:H, :G3].set(w_hh.T)
        wih_l.append(wih)
        whh_l.append(whh)
        bhn = jnp.zeros((LANE,), jnp.float32).at[2 * H:3 * H].set(b_hh[2 * H:3 * H])
        bhn_l.append(bhn.reshape(1, LANE))
    wih_all = jnp.stack(wih_l).astype(jnp.bfloat16)         # (L, 128, 128)
    whh_all = jnp.stack(whh_l).astype(jnp.bfloat16)         # (L, 128, 128)
    bhn_all = jnp.stack(bhn_l)                              # (L, 1, 128) f32

    # --- activations: time-major, batch padded to 16 sublanes, features to 128 lanes --
    x_tm = jnp.transpose(x, (1, 0, 2)).astype(jnp.float32)              # (T, B, Din)
    x_tm = jnp.pad(x_tm, ((0, 0), (0, Bp - B), (0, LANE - Din)))
    x_tm = x_tm.at[:, :, LANE - 1].set(1.0)                 # constant-1 bias lane
    x2d = x_tm.reshape(T * Bp, LANE).astype(jnp.bfloat16)

    len2d = jnp.pad(lengths.astype(jnp.int32), (0, Bp - B),
                    constant_values=1).reshape(Bp, 1)

    lnw = jnp.pad(params["ln_w"].astype(jnp.float32), (0, LANE - H)).reshape(1, LANE)
    lnb = jnp.pad(params["ln_b"].astype(jnp.float32), (0, LANE - H)).reshape(1, LANE)
    fcw = jnp.pad(params["fc_w"].astype(jnp.float32), ((0, 0), (0, LANE - H)))  # (1,128)
    fcb = params["fc_b"].astype(jnp.float32).reshape(1, 1)

    unroll = int(min(T, 8))
    kernel = functools.partial(_fused_gru_kernel, T=T, Bp=Bp, H=H, L=L, unroll=unroll)

    # VMEM budget: bf16 gi + seq slabs + operands + output (+ headroom); v5e's default
    # scoped limit is only 16 MiB, so set it explicitly.
    scratch_bytes = 2 * (T * Bp * LANE * 2)
    oper_bytes = sum(int(a.size) * a.dtype.itemsize for a in
                     (len2d, x2d, wih_all, whh_all, bhn_all, lnw, lnb, fcw, fcb))
    vmem_need = scratch_bytes + oper_bytes + Bp * LANE * 4 + (2 << 20)
    cp_cls = getattr(pltpu, "CompilerParams", None)
    if cp_cls is None:  # older JAX fallback
        cp_cls = pltpu.TPUCompilerParams
    compiler_params = cp_cls(
        vmem_limit_bytes=int(min(max(vmem_need, 16 << 20), 100 << 20)))

    out = pl.pallas_call(
        kernel,
        out_shape=jax.ShapeDtypeStruct((Bp, LANE), jnp.float32),
        scratch_shapes=[
            pltpu.VMEM((T * Bp, LANE), jnp.bfloat16),   # hoisted gate projections (gi)
            pltpu.VMEM((T * Bp, LANE), jnp.bfloat16),   # inter-layer sequence
        ],
        compiler_params=compiler_params,
    )(len2d, x2d, wih_all, whh_all, bhn_all, lnw, lnb, fcw, fcb)
    return out[:B, 0:1].astype(x.dtype)


# ----------------------------------------------------------------------------
# Pure-JAX reference (f32, for correctness check)
# ----------------------------------------------------------------------------
def reference_forward(x, lengths, params, num_layers):
    B, T, _ = x.shape
    seq = x.astype(jnp.float32)
    for l in range(num_layers):
        w_ih = params[f"w_ih_l{l}"]; w_hh = params[f"w_hh_l{l}"]
        b_ih = params[f"b_ih_l{l}"]; b_hh = params[f"b_hh_l{l}"]
        H = w_hh.shape[1]

        def step(h, x_t):
            gi = x_t @ w_ih.T + b_ih
            gh = h @ w_hh.T + b_hh
            i_r, i_z, i_n = gi[:, :H], gi[:, H:2 * H], gi[:, 2 * H:]
            h_r, h_z, h_n = gh[:, :H], gh[:, H:2 * H], gh[:, 2 * H:]
            r = jax.nn.sigmoid(i_r + h_r)
            z = jax.nn.sigmoid(i_z + h_z)
            n = jnp.tanh(i_n + r * h_n)
            h_new = (1.0 - z) * n + z * h
            return h_new, h_new

        h0 = jnp.zeros((B, H), jnp.float32)
        _, ys = jax.lax.scan(step, h0, jnp.transpose(seq, (1, 0, 2)))
        seq = jnp.transpose(ys, (1, 0, 2))
    last = seq[jnp.arange(B), lengths - 1, :]
    mean = jnp.mean(last, axis=-1, keepdims=True)
    var = jnp.mean((last - mean) ** 2, axis=-1, keepdims=True)
    y = (last - mean) * jax.lax.rsqrt(var + 1e-5) * params["ln_w"] + params["ln_b"]
    return y @ params["fc_w"].T + params["fc_b"]


# ----------------------------------------------------------------------------
# Deterministic parameter init (PyTorch-style shapes, U(-1/sqrt(H), 1/sqrt(H)))
# ----------------------------------------------------------------------------
def init_params(key, input_size, hidden_size, num_layers):
    params = {}
    bound = 1.0 / jnp.sqrt(hidden_size)
    for l in range(num_layers):
        d_in = input_size if l == 0 else hidden_size
        key, k1, k2, k3, k4 = jax.random.split(key, 5)
        params[f"w_ih_l{l}"] = jax.random.uniform(k1, (3 * hidden_size, d_in),
                                                  jnp.float32, -bound, bound)
        params[f"w_hh_l{l}"] = jax.random.uniform(k2, (3 * hidden_size, hidden_size),
                                                  jnp.float32, -bound, bound)
        params[f"b_ih_l{l}"] = jax.random.uniform(k3, (3 * hidden_size,),
                                                  jnp.float32, -bound, bound)
        params[f"b_hh_l{l}"] = jax.random.uniform(k4, (3 * hidden_size,),
                                                  jnp.float32, -bound, bound)
    key, k1, k2 = jax.random.split(key, 3)
    params["ln_w"] = jnp.ones((hidden_size,), jnp.float32)
    params["ln_b"] = jnp.zeros((hidden_size,), jnp.float32)
    params["fc_w"] = jax.random.uniform(k1, (1, hidden_size), jnp.float32, -bound, bound)
    params["fc_b"] = jax.random.uniform(k2, (1,), jnp.float32, -bound, bound)
    return params


if __name__ == "__main__":
    B, T, INPUT, HIDDEN, LAYERS = 4, 8, 16, 32, 2

    key = jax.random.PRNGKey(0)
    key, kx = jax.random.split(key)
    x = jax.random.normal(kx, (B, T, INPUT), jnp.float32)        # batch-first like PyTorch
    lengths = jnp.array([8, 5, 3, 8], dtype=jnp.int32)

    params = init_params(key, INPUT, HIDDEN, LAYERS)

    logits = gru_classifier_forward(x, lengths, params, LAYERS)
    logits = jax.block_until_ready(logits)

    ref = reference_forward(x, lengths, params, LAYERS)
    assert logits.shape == (B, 1)
    # bf16 MXU operands (f32 accumulation) vs. a pure-f32 reference -> looser tolerance.
    assert jnp.allclose(logits, ref, atol=5e-2, rtol=5e-2), (logits, ref)

    print("KERNEL_OK")
</pallas_src>

<mosaic_0001>
module attributes {stable_mosaic.version = 11 : i64} {
  func.func @_fused_gru_kernel(%arg0: memref<16x1xi32, #tpu.memory_space<vmem>>, %arg1: memref<128x128xbf16, #tpu.memory_space<vmem>>, %arg2: memref<2x128x128xbf16, #tpu.memory_space<vmem>>, %arg3: memref<2x128x128xbf16, #tpu.memory_space<vmem>>, %arg4: memref<2x1x128xf32, #tpu.memory_space<vmem>>, %arg5: memref<1x128xf32, #tpu.memory_space<vmem>>, %arg6: memref<1x128xf32, #tpu.memory_space<vmem>>, %arg7: memref<1x128xf32, #tpu.memory_space<vmem>>, %arg8: memref<1x1xf32, #tpu.memory_space<vmem>>, %arg9: memref<16x128xf32, #tpu.memory_space<vmem>>, %arg10: memref<128x128xbf16, #tpu.memory_space<vmem>>, %arg11: memref<128x128xbf16, #tpu.memory_space<vmem>>) attributes {dimension_semantics = [], scalar_prefetch = 0 : i64, scratch_operands = 2 : i64, tpu.core_type = #tpu.core_type<tc>} {
    %c0 = arith.constant 0 : index
    %c0_0 = arith.constant 0 : index
    %0 = vector.load %arg0[%c0, %c0_0] : memref<16x1xi32, #tpu.memory_space<vmem>>, vector<16x1xi32>
    %c1_i32 = arith.constant 1 : i32
    %1 = vector.broadcast %c1_i32 : i32 to vector<16x1xi32>
    %2 = arith.subi %0, %1 : vector<16x1xi32>
    %3 = tpu.iota {dimensions = array<i32: 1>} : vector<16x128xi32>
    %c32_i32 = arith.constant 32 : i32
    %4 = vector.broadcast %c32_i32 : i32 to vector<16x128xi32>
    %5 = arith.cmpi slt, %3, %4 : vector<16x128xi32>
    %c127_i32 = arith.constant 127 : i32
    %6 = vector.broadcast %c127_i32 : i32 to vector<16x128xi32>
    %7 = arith.cmpi eq, %3, %6 : vector<16x128xi32>
    %cst = arith.constant 1.000000e+00 : f32
    %cst_1 = arith.constant 0.000000e+00 : f32
    %8 = vector.broadcast %cst : f32 to vector<16x128xf32>
    %9 = vector.broadcast %cst_1 : f32 to vector<16x128xf32>
    %10 = arith.select %7, %8, %9 : vector<16x128xi1>, vector<16x128xf32>
    %cst_2 = arith.constant 0.000000e+00 : f32
    %11 = vector.broadcast %cst_2 : f32 to vector<16x128xf32>
    %c0_3 = arith.constant 0 : index
    %c0_4 = arith.constant 0 : index
    %12 = vector.load %arg1[%c0_3, %c0_4] : memref<128x128xbf16, #tpu.memory_space<vmem>>, vector<128x128xbf16>
    %c0_5 = arith.constant 0 : index
    %c0_6 = arith.constant 0 : index
    %c0_7 = arith.constant 0 : index
    %13 = vector.load %arg2[%c0_5, %c0_6, %c0_7] : memref<2x128x128xbf16, #tpu.memory_space<vmem>>, vector<1x128x128xbf16>
    %14 = vector.shape_cast %13 : vector<1x128x128xbf16> to vector<128x128xbf16>
    %cst_8 = arith.constant dense<0.000000e+00> : vector<128x128xf32>
    %15 = tpu.matmul %12, %14, %cst_8 {dimension_numbers = #tpu.dot_dimension_numbers<[1], [0], [0], [1], [0, 0, 1, 1], [], []>} : vector<128x128xbf16>, vector<128x128xbf16>, vector<128x128xf32> -> vector<128x128xf32>
    %16 = arith.truncf %15 : vector<128x128xf32> to vector<128x128xbf16>
    %c0_9 = arith.constant 0 : index
    %c0_10 = arith.constant 0 : index
    %17 = vector.load %arg10[%c0_9, %c0_10] : memref<128x128xbf16, #tpu.memory_space<vmem>>, vector<128x128xbf16>
    tpu.vector_store %arg10[%c0_9, %c0_10], %16 {strides = array<i32>} : memref<128x128xbf16, #tpu.memory_space<vmem>>, vector<128x128xbf16>,
    %c0_11 = arith.constant 0 : index
    %c0_12 = arith.constant 0 : index
    %c0_13 = arith.constant 0 : index
    %18 = vector.load %arg3[%c0_11, %c0_12, %c0_13] : memref<2x128x128xbf16, #tpu.memory_space<vmem>>, vector<1x128x128xbf16>
    %19 = vector.shape_cast %18 : vector<1x128x128xbf16> to vector<128x128xbf16>
    %c0_14 = arith.constant 0 : index
    %c0_15 = arith.constant 0 : index
    %c0_16 = arith.constant 0 : index
    %20 = vector.load %arg4[%c0_14, %c0_15, %c0_16] : memref<2x1x128xf32, #tpu.memory_space<vmem>>, vector<1x1x128xf32>
    %21 = vector.shape_cast %20 : vector<1x1x128xf32> to vector<1x128xf32>
    %22 = vector.shape_cast %21 : vector<1x128xf32> to vector<1x128xf32>
    %23 = vector.broadcast %22 : vector<1x128xf32> to vector<16x128xf32>
    %cst_17 = arith.constant 0.000000e+00 : f32
    %24 = vector.broadcast %cst_17 : f32 to vector<16x128xf32>
    %c0_i32 = arith.constant 0 : i32
    %c16_i32 = arith.constant 16 : i32
    %25 = arith.muli %c0_i32, %c16_i32 : i32
    %26 = tpu.assume_multiple %25, 16 : i32
    %27 = arith.index_cast %26 : i32 to index
    %c0_18 = arith.constant 0 : index
    %28 = vector.load %arg10[%27, %c0_18] : memref<128x128xbf16, #tpu.memory_space<vmem>>, vector<16x128xbf16>
    %29 = arith.truncf %24 : vector<16x128xf32> to vector<16x128xbf16>
    %cst_19 = arith.constant dense<0.000000e+00> : vector<16x128xf32>
    %30 = tpu.matmul %29, %19, %cst_19 {dimension_numbers = #tpu.dot_dimension_numbers<[1], [0], [0], [1], [0, 0, 1, 1], [], []>} : vector<16x128xbf16>, vector<128x128xbf16>, vector<16x128xf32> -> vector<16x128xf32>
    %31 = arith.extf %28 : vector<16x128xbf16> to vector<16x128xf32>
    %32 = arith.addf %31, %30 : vector<16x128xf32>
    %33 = arith.negf %32 : vector<16x128xf32>
    %34 = math.exp %33 : vector<16x128xf32>
    %cst_20 = arith.constant 1.000000e+00 : f32
    %35 = vector.broadcast %cst_20 : f32 to vector<16x128xf32>
    %36 = arith.addf %35, %34 : vector<16x128xf32>
    %37 = arith.divf %35, %36 : vector<16x128xf32>
    %38 = vector.extract_strided_slice %37 {offsets = [0, 64], sizes = [16, 64], strides = [1, 1]} : vector<16x128xf32> to vector<16x64xf32>
    %39 = vector.extract_strided_slice %37 {offsets = [0, 0], sizes = [16, 64], strides = [1, 1]} : vector<16x128xf32> to vector<16x64xf32>
    %40 = tpu.concatenate %38, %39 in 1 : vector<16x64xf32>, vector<16x64xf32> -> vector<16x128xf32>
    %41 = arith.addf %30, %23 : vector<16x128xf32>
    %42 = arith.mulf %40, %41 : vector<16x128xf32>
    %43 = arith.addf %31, %42 : vector<16x128xf32>
    %44 = math.tanh %43 : vector<16x128xf32>
    %45 = vector.extract_strided_slice %37 {offsets = [0, 32], sizes = [16, 96], strides = [1, 1]} : vector<16x128xf32> to vector<16x96xf32>
    %46 = vector.extract_strided_slice %37 {offsets = [0, 0], sizes = [16, 32], strides = [1, 1]} : vector<16x128xf32> to vector<16x32xf32>
    %47 = tpu.concatenate %45, %46 in 1 : vector<16x96xf32>, vector<16x32xf32> -> vector<16x128xf32>
    %48 = vector.extract_strided_slice %44 {offsets = [0, 64], sizes = [16, 64], strides = [1, 1]} : vector<16x128xf32> to vector<16x64xf32>
    %49 = vector.extract_strided_slice %44 {offsets = [0, 0], sizes = [16, 64], strides = [1, 1]} : vector<16x128xf32> to vector<16x64xf32>
    %50 = tpu.concatenate %48, %49 in 1 : vector<16x64xf32>, vector<16x64xf32> -> vector<16x128xf32>
    %cst_21 = arith.constant 1.000000e+00 : f32
    %51 = vector.broadcast %cst_21 : f32 to vector<16x128xf32>
    %52 = arith.subf %51, %47 : vector<16x128xf32>
    %53 = arith.mulf %52, %50 : vector<16x128xf32>
    %54 = arith.mulf %47, %24 : vector<16x128xf32>
    %55 = arith.addf %53, %54 : vector<16x128xf32>
    %56 = arith.select %5, %55, %10 : vector<16x128xi1>, vector<16x128xf32>
    %57 = arith.truncf %56 : vector<16x128xf32> to vector<16x128xbf16>
    %58 = arith.index_cast %26 : i32 to index
    %c0_22 = arith.constant 0 : index
    %59 = vector.load %arg11[%58, %c0_22] : memref<128x128xbf16, #tpu.memory_space<vmem>>, vector<16x128xbf16>
    tpu.vector_store %arg11[%58, %c0_22], %57 {strides = array<i32>} : memref<128x128xbf16, #tpu.memory_space<vmem>>, vector<16x128xbf16>,
    %c1_i32_23 = arith.constant 1 : i32
    %c16_i32_24 = arith.constant 16 : i32
    %60 = arith.muli %c1_i32_23, %c16_i32_24 : i32
    %61 = tpu.assume_multiple %60, 16 : i32
    %62 = arith.index_cast %61 : i32 to index
    %c0_25 = arith.constant 0 : index
    %63 = vector.load %arg10[%62, %c0_25] : memref<128x128xbf16, #tpu.memory_space<vmem>>, vector<16x128xbf16>
    %64 = arith.truncf %55 : vector<16x128xf32> to vector<16x128xbf16>
    %cst_26 = arith.constant dense<0.000000e+00> : vector<16x128xf32>
    %65 = tpu.matmul %64, %19, %cst_26 {dimension_numbers = #tpu.dot_dimension_numbers<[1], [0], [0], [1], [0, 0, 1, 1], [], []>} : vector<16x128xbf16>, vector<128x128xbf16>, vector<16x128xf32> -> vector<16x128xf32>
    %66 = arith.extf %63 : vector<16x128xbf16> to vector<16x128xf32>
    %67 = arith.addf %66, %65 : vector<16x128xf32>
    %68 = arith.negf %67 : vector<16x128xf32>
    %69 = math.exp %68 : vector<16x128xf32>
    %cst_27 = arith.constant 1.000000e+00 : f32
    %70 = vector.broadcast %cst_27 : f32 to vector<16x128xf32>
    %71 = arith.addf %70, %69 : vector<16x128xf32>
    %72 = arith.divf %70, %71 : vector<16x128xf32>
    %73 = vector.extract_strided_slice %72 {offsets = [0, 64], sizes = [16, 64], strides = [1, 1]} : vector<16x128xf32> to vector<16x64xf32>
    %74 = vector.extract_strided_slice %72 {offsets = [0, 0], sizes = [16, 64], strides = [1, 1]} : vector<16x128xf32> to vector<16x64xf32>
    %75 = tpu.concatenate %73, %74 in 1 : vector<16x64xf32>, vector<16x64xf32> -> vector<16x128xf32>
    %76 = arith.addf %65, %23 : vector<16x128xf32>
    %77 = arith.mulf %75, %76 : vector<16x128xf32>
    %78 = arith.addf %66, %77 : vector<16x128xf32>
    %79 = math.tanh %78 : vector<16x128xf32>
    %80 = vector.extract_strided_slice %72 {offsets = [0, 32], sizes = [16, 96], strides = [1, 1]} : vector<16x128xf32> to vector<16x96xf32>
    %81 = vector.extract_strided_slice %72 {offsets = [0, 0], sizes = [16, 32], strides = [1, 1]} : vector<16x128xf32> to vector<16x32xf32>
    %82 = tpu.concatenate %80, %81 in 1 : vector<16x96xf32>, vector<16x32xf32> -> vector<16x128xf32>
    %83 = vector.extract_strided_slice %79 {offsets = [0, 64], sizes = [16, 64], strides = [1, 1]} : vector<16x128xf32> to vector<16x64xf32>
    %84 = vector.extract_strided_slice %79 {offsets = [0, 0], sizes = [16, 64], strides = [1, 1]} : vector<16x128xf32> to vector<16x64xf32>
    %85 = tpu.concatenate %83, %84 in 1 : vector<16x64xf32>, vector<16x64xf32> -> vector<16x128xf32>
    %cst_28 = arith.constant 1.000000e+00 : f32
    %86 = vector.broadcast %cst_28 : f32 to vector<16x128xf32>
    %87 = arith.subf %86, %82 : vector<16x128xf32>
    %88 = arith.mulf %87, %85 : vector<16x128xf32>
    %89 = arith.mulf %82, %55 : vector<16x128xf32>
    %90 = arith.addf %88, %89 : vector<16x128xf32>
    %91 = arith.select %5, %90, %10 : vector<16x128xi1>, vector<16x128xf32>
    %92 = arith.truncf %91 : vector<16x128xf32> to vector<16x128xbf16>
    %93 = arith.index_cast %61 : i32 to index
    %c0_29 = arith.constant 0 : index
    %94 = vector.load %arg11[%93, %c0_29] : memref<128x128xbf16, #tpu.memory_space<vmem>>, vector<16x128xbf16>
    tpu.vector_store %arg11[%93, %c0_29], %92 {strides = array<i32>} : memref<128x128xbf16, #tpu.memory_space<vmem>>, vector<16x128xbf16>,
    %c2_i32 = arith.constant 2 : i32
    %c16_i32_30 = arith.constant 16 : i32
    %95 = arith.muli %c2_i32, %c16_i32_30 : i32
    %96 = tpu.assume_multiple %95, 16 : i32
    %97 = arith.index_cast %96 : i32 to index
    %c0_31 = arith.constant 0 : index
    %98 = vector.load %arg10[%97, %c0_31] : memref<128x128xbf16, #tpu.memory_space<vmem>>, vector<16x128xbf16>
    %99 = arith.truncf %90 : vector<16x128xf32> to vector<16x128xbf16>
    %cst_32 = arith.constant dense<0.000000e+00> : vector<16x128xf32>
    %100 = tpu.matmul %99, %19, %cst_32 {dimension_numbers = #tpu.dot_dimension_numbers<[1], [0], [0], [1], [0, 0, 1, 1], [], []>} : vector<16x128xbf16>, vector<128x128xbf16>, vector<16x128xf32> -> vector<16x128xf32>
    %101 = arith.extf %98 : vector<16x128xbf16> to vector<16x128xf32>
    %102 = arith.addf %101, %100 : vector<16x128xf32>
    %103 = arith.negf %102 : vector<16x128xf32>
    %104 = math.exp %103 : vector<16x128xf32>
    %cst_33 = arith.constant 1.000000e+00 : f32
    %105 = vector.broadcast %cst_33 : f32 to vector<16x128xf32>
    %106 = arith.addf %105, %104 : vector<16x128xf32>
    %107 = arith.divf %105, %106 : vector<16x128xf32>
    %108 = vector.extract_strided_slice %107 {offsets = [0, 64], sizes = [16, 64], strides = [1, 1]} : vector<16x128xf32> to vector<16x64xf32>
    %109 = vector.extract_strided_slice %107 {offsets = [0, 0], sizes = [16, 64], strides = [1, 1]} : vector<16x128xf32> to vector<16x64xf32>
    %110 = tpu.concatenate %108, %109 in 1 : vector<16x64xf32>, vector<16x64xf32> -> vector<16x128xf32>
    %111 = arith.addf %100, %23 : vector<16x128xf32>
    %112 = arith.mulf %110, %111 : vector<16x128xf32>
    %113 = arith.addf %101, %112 : vector<16x128xf32>
    %114 = math.tanh %113 : vector<16x128xf32>
    %115 = vector.extract_strided_slice %107 {offsets = [0, 32], sizes = [16, 96], strides = [1, 1]} : vector<16x128xf32> to vector<16x96xf32>
    %116 = vector.extract_strided_slice %107 {offsets = [0, 0], sizes = [16, 32], strides = [1, 1]} : vector<16x128xf32> to vector<16x32xf32>
    %117 = tpu.concatenate %115, %116 in 1 : vector<16x96xf32>, vector<16x32xf32> -> vector<16x128xf32>
    %118 = vector.extract_strided_slice %114 {offsets = [0, 64], sizes = [16, 64], strides = [1, 1]} : vector<16x128xf32> to vector<16x64xf32>
    %119 = vector.extract_strided_slice %114 {offsets = [0, 0], sizes = [16, 64], strides = [1, 1]} : vector<16x128xf32> to vector<16x64xf32>
    %120 = tpu.concatenate %118, %119 in 1 : vector<16x64xf32>, vector<16x64xf32> -> vector<16x128xf32>
    %cst_34 = arith.constant 1.000000e+00 : f32
    %121 = vector.broadcast %cst_34 : f32 to vector<16x128xf32>
    %122 = arith.subf %121, %117 : vector<16x128xf32>
    %123 = arith.mulf %122, %120 : vector<16x128xf32>
    %124 = arith.mulf %117, %90 : vector<16x128xf32>
    %125 = arith.addf %123, %124 : vector<16x128xf32>
    %126 = arith.select %5, %125, %10 : vector<16x128xi1>, vector<16x128xf32>
    %127 = arith.truncf %126 : vector<16x128xf32> to vector<16x128xbf16>
    %128 = arith.index_cast %96 : i32 to index
    %c0_35 = arith.constant 0 : index
    %129 = vector.load %arg11[%128, %c0_35] : memref<128x128xbf16, #tpu.memory_space<vmem>>, vector<16x128xbf16>
    tpu.vector_store %arg11[%128, %c0_35], %127 {strides = array<i32>} : memref<128x128xbf16, #tpu.memory_space<vmem>>, vector<16x128xbf16>,
    %c3_i32 = arith.constant 3 : i32
    %c16_i32_36 = arith.constant 16 : i32
    %130 = arith.muli %c3_i32, %c16_i32_36 : i32
    %131 = tpu.assume_multiple %130, 16 : i32
    %132 = arith.index_cast %131 : i32 to index
    %c0_37 = arith.constant 0 : index
    %133 = vector.load %arg10[%132, %c0_37] : memref<128x128xbf16, #tpu.memory_space<vmem>>, vector<16x128xbf16>
    %134 = arith.truncf %125 : vector<16x128xf32> to vector<16x128xbf16>
    %cst_38 = arith.constant dense<0.000000e+00> : vector<16x128xf32>
    %135 = tpu.matmul %134, %19, %cst_38 {dimension_numbers = #tpu.dot_dimension_numbers<[1], [0], [0], [1], [0, 0, 1, 1], [], []>} : vector<16x128xbf16>, vector<128x128xbf16>, vector<16x128xf32> -> vector<16x128xf32>
    %136 = arith.extf %133 : vector<16x128xbf16> to vector<16x128xf32>
    %137 = arith.addf %136, %135 : vector<16x128xf32>
    %138 = arith.negf %137 : vector<16x128xf32>
    %139 = math.exp %138 : vector<16x128xf32>
    %cst_39 = arith.constant 1.000000e+00 : f32
    %140 = vector.broadcast %cst_39 : f32 to vector<16x128xf32>
    %141 = arith.addf %140, %139 : vector<16x128xf32>
    %142 = arith.divf %140, %141 : vector<16x128xf32>
    %143 = vector.extract_strided_slice %142 {offsets = [0, 64], sizes = [16, 64], strides = [1, 1]} : vector<16x128xf32> to vector<16x64xf32>
    %144 = vector.extract_strided_slice %142 {offsets = [0, 0], sizes = [16, 64], strides = [1, 1]} : vector<16x128xf32> to vector<16x64xf32>
    %145 = tpu.concatenate %143, %144 in 1 : vector<16x64xf32>, vector<16x64xf32> -> vector<16x128xf32>
    %146 = arith.addf %135, %23 : vector<16x128xf32>
    %147 = arith.mulf %145, %146 : vector<16x128xf32>
    %148 = arith.addf %136, %147 : vector<16x128xf32>
    %149 = math.tanh %148 : vector<16x128xf32>
    %150 = vector.extract_strided_slice %142 {offsets = [0, 32], sizes = [16, 96], strides = [1, 1]} : vector<16x128xf32> to vector<16x96xf32>
    %151 = vector.extract_strided_slice %142 {offsets = [0, 0], sizes = [16, 32], strides = [1, 1]} : vector<16x128xf32> to vector<16x32xf32>
    %152 = tpu.concatenate %150, %151 in 1 : vector<16x96xf32>, vector<16x32xf32> -> vector<16x128xf32>
    %153 = vector.extract_strided_slice %149 {offsets = [0, 64], sizes = [16, 64], strides = [1, 1]} : vector<16x128xf32> to vector<16x64xf32>
    %154 = vector.extract_strided_slice %149 {offsets = [0, 0], sizes = [16, 64], strides = [1, 1]} : vector<16x128xf32> to vector<16x64xf32>
    %155 = tpu.concatenate %153, %154 in 1 : vector<16x64xf32>, vector<16x64xf32> -> vector<16x128xf32>
    %cst_40 = arith.constant 1.000000e+00 : f32
    %156 = vector.broadcast %cst_40 : f32 to vector<16x128xf32>
    %157 = arith.subf %156, %152 : vector<16x128xf32>
    %158 = arith.mulf %157, %155 : vector<16x128xf32>
    %159 = arith.mulf %152, %125 : vector<16x128xf32>
    %160 = arith.addf %158, %159 : vector<16x128xf32>
    %161 = arith.select %5, %160, %10 : vector<16x128xi1>, vector<16x128xf32>
    %162 = arith.truncf %161 : vector<16x128xf32> to vector<16x128xbf16>
    %163 = arith.index_cast %131 : i32 to index
    %c0_41 = arith.constant 0 : index
    %164 = vector.load %arg11[%163, %c0_41] : memref<128x128xbf16, #tpu.memory_space<vmem>>, vector<16x128xbf16>
    tpu.vector_store %arg11[%163, %c0_41], %162 {strides = array<i32>} : memref<128x128xbf16, #tpu.memory_space<vmem>>, vector<16x128xbf16>,
    %c4_i32 = arith.constant 4 : i32
    %c16_i32_42 = arith.constant 16 : i32
    %165 = arith.muli %c4_i32, %c16_i32_42 : i32
    %166 = tpu.assume_multiple %165, 16 : i32
    %167 = arith.index_cast %166 : i32 to index
    %c0_43 = arith.constant 0 : index
    %168 = vector.load %arg10[%167, %c0_43] : memref<128x128xbf16, #tpu.memory_space<vmem>>, vector<16x128xbf16>
    %169 = arith.truncf %160 : vector<16x128xf32> to vector<16x128xbf16>
    %cst_44 = arith.constant dense<0.000000e+00> : vector<16x128xf32>
    %170 = tpu.matmul %169, %19, %cst_44 {dimension_numbers = #tpu.dot_dimension_numbers<[1], [0], [0], [1], [0, 0, 1, 1], [], []>} : vector<16x128xbf16>, vector<128x128xbf16>, vector<16x128xf32> -> vector<16x128xf32>
    %171 = arith.extf %168 : vector<16x128xbf16> to vector<16x128xf32>
    %172 = arith.addf %171, %170 : vector<16x128xf32>
    %173 = arith.negf %172 : vector<16x128xf32>
    %174 = math.exp %173 : vector<16x128xf32>
    %cst_45 = arith.constant 1.000000e+00 : f32
    %175 = vector.broadcast %cst_45 : f32 to vector<16x128xf32>
    %176 = arith.addf %175, %174 : vector<16x128xf32>
    %177 = arith.divf %175, %176 : vector<16x128xf32>
    %178 = vector.extract_strided_slice %177 {offsets = [0, 64], sizes = [16, 64], strides = [1, 1]} : vector<16x128xf32> to vector<16x64xf32>
    %179 = vector.extract_strided_slice %177 {offsets = [0, 0], sizes = [16, 64], strides = [1, 1]} : vector<16x128xf32> to vector<16x64xf32>
    %180 = tpu.concatenate %178, %179 in 1 : vector<16x64xf32>, vector<16x64xf32> -> vector<16x128xf32>
    %181 = arith.addf %170, %23 : vector<16x128xf32>
    %182 = arith.mulf %180, %181 : vector<16x128xf32>
    %183 = arith.addf %171, %182 : vector<16x128xf32>
    %184 = math.tanh %183 : vector<16x128xf32>
    %185 = vector.extract_strided_slice %177 {offsets = [0, 32], sizes = [16, 96], strides = [1, 1]} : vector<16x128xf32> to vector<16x96xf32>
    %186 = vector.extract_strided_slice %177 {offsets = [0, 0], sizes = [16, 32], strides = [1, 1]} : vector<16x128xf32> to vector<16x32xf32>
    %187 = tpu.concatenate %185, %186 in 1 : vector<16x96xf32>, vector<16x32xf32> -> vector<16x128xf32>
    %188 = vector.extract_strided_slice %184 {offsets = [0, 64], sizes = [16, 64], strides = [1, 1]} : vector<16x128xf32> to vector<16x64xf32>
    %189 = vector.extract_strided_slice %184 {offsets = [0, 0], sizes = [16, 64], strides = [1, 1]} : vector<16x128xf32> to vector<16x64xf32>
    %190 = tpu.concatenate %188, %189 in 1 : vector<16x64xf32>, vector<16x64xf32> -> vector<16x128xf32>
    %cst_46 = arith.constant 1.000000e+00 : f32
    %191 = vector.broadcast %cst_46 : f32 to vector<16x128xf32>
    %192 = arith.subf %191, %187 : vector<16x128xf32>
    %193 = arith.mulf %192, %190 : vector<16x128xf32>
    %194 = arith.mulf %187, %160 : vector<16x128xf32>
    %195 = arith.addf %193, %194 : vector<16x128xf32>
    %196 = arith.select %5, %195, %10 : vector<16x128xi1>, vector<16x128xf32>
    %197 = arith.truncf %196 : vector<16x128xf32> to vector<16x128xbf16>
    %198 = arith.index_cast %166 : i32 to index
    %c0_47 = arith.constant 0 : index
    %199 = vector.load %arg11[%198, %c0_47] : memref<128x128xbf16, #tpu.memory_space<vmem>>, vector<16x128xbf16>
    tpu.vector_store %arg11[%198, %c0_47], %197 {strides = array<i32>} : memref<128x128xbf16, #tpu.memory_space<vmem>>, vector<16x128xbf16>,
    %c5_i32 = arith.constant 5 : i32
    %c16_i32_48 = arith.constant 16 : i32
    %200 = arith.muli %c5_i32, %c16_i32_48 : i32
    %201 = tpu.assume_multiple %200, 16 : i32
    %202 = arith.index_cast %201 : i32 to index
    %c0_49 = arith.constant 0 : index
    %203 = vector.load %arg10[%202, %c0_49] : memref<128x128xbf16, #tpu.memory_space<vmem>>, vector<16x128xbf16>
    %204 = arith.truncf %195 : vector<16x128xf32> to vector<16x128xbf16>
    %cst_50 = arith.constant dense<0.000000e+00> : vector<16x128xf32>
    %205 = tpu.matmul %204, %19, %cst_50 {dimension_numbers = #tpu.dot_dimension_numbers<[1], [0], [0], [1], [0, 0, 1, 1], [], []>} : vector<16x128xbf16>, vector<128x128xbf16>, vector<16x128xf32> -> vector<16x128xf32>
    %206 = arith.extf %203 : vector<16x128xbf16> to vector<16x128xf32>
    %207 = arith.addf %206, %205 : vector<16x128xf32>
    %208 = arith.negf %207 : vector<16x128xf32>
    %209 = math.exp %208 : vector<16x128xf32>
    %cst_51 = arith.constant 1.000000e+00 : f32
    %210 = vector.broadcast %cst_51 : f32 to vector<16x128xf32>
    %211 = arith.addf %210, %209 : vector<16x128xf32>
    %212 = arith.divf %210, %211 : vector<16x128xf32>
    %213 = vector.extract_strided_slice %212 {offsets = [0, 64], sizes = [16, 64], strides = [1, 1]} : vector<16x128xf32> to vector<16x64xf32>
    %214 = vector.extract_strided_slice %212 {offsets = [0, 0], sizes = [16, 64], strides = [1, 1]} : vector<16x128xf32> to vector<16x64xf32>
    %215 = tpu.concatenate %213, %214 in 1 : vector<16x64xf32>, vector<16x64xf32> -> vector<16x128xf32>
    %216 = arith.addf %205, %23 : vector<16x128xf32>
    %217 = arith.mulf %215, %216 : vector<16x128xf32>
    %218 = arith.addf %206, %217 : vector<16x128xf32>
    %219 = math.tanh %218 : vector<16x128xf32>
    %220 = vector.extract_strided_slice %212 {offsets = [0, 32], sizes = [16, 96], strides = [1, 1]} : vector<16x128xf32> to vector<16x96xf32>
    %221 = vector.extract_strided_slice %212 {offsets = [0, 0], sizes = [16, 32], strides = [1, 1]} : vector<16x128xf32> to vector<16x32xf32>
    %222 = tpu.concatenate %220, %221 in 1 : vector<16x96xf32>, vector<16x32xf32> -> vector<16x128xf32>
    %223 = vector.extract_strided_slice %219 {offsets = [0, 64], sizes = [16, 64], strides = [1, 1]} : vector<16x128xf32> to vector<16x64xf32>
    %224 = vector.extract_strided_slice %219 {offsets = [0, 0], sizes = [16, 64], strides = [1, 1]} : vector<16x128xf32> to vector<16x64xf32>
    %225 = tpu.concatenate %223, %224 in 1 : vector<16x64xf32>, vector<16x64xf32> -> vector<16x128xf32>
    %cst_52 = arith.constant 1.000000e+00 : f32
    %226 = vector.broadcast %cst_52 : f32 to vector<16x128xf32>
    %227 = arith.subf %226, %222 : vector<16x128xf32>
    %228 = arith.mulf %227, %225 : vector<16x128xf32>
    %229 = arith.mulf %222, %195 : vector<16x128xf32>
    %230 = arith.addf %228, %229 : vector<16x128xf32>
    %231 = arith.select %5, %230, %10 : vector<16x128xi1>, vector<16x128xf32>
    %232 = arith.truncf %231 : vector<16x128xf32> to vector<16x128xbf16>
    %233 = arith.index_cast %201 : i32 to index
    %c0_53 = arith.constant 0 : index
    %234 = vector.load %arg11[%233, %c0_53] : memref<128x128xbf16, #tpu.memory_space<vmem>>, vector<16x128xbf16>
    tpu.vector_store %arg11[%233, %c0_53], %232 {strides = array<i32>} : memref<128x128xbf16, #tpu.memory_space<vmem>>, vector<16x128xbf16>,
    %c6_i32 = arith.constant 6 : i32
    %c16_i32_54 = arith.constant 16 : i32
    %235 = arith.muli %c6_i32, %c16_i32_54 : i32
    %236 = tpu.assume_multiple %235, 16 : i32
    %237 = arith.index_cast %236 : i32 to index
    %c0_55 = arith.constant 0 : index
    %238 = vector.load %arg10[%237, %c0_55] : memref<128x128xbf16, #tpu.memory_space<vmem>>, vector<16x128xbf16>
    %239 = arith.truncf %230 : vector<16x128xf32> to vector<16x128xbf16>
    %cst_56 = arith.constant dense<0.000000e+00> : vector<16x128xf32>
    %240 = tpu.matmul %239, %19, %cst_56 {dimension_numbers = #tpu.dot_dimension_numbers<[1], [0], [0], [1], [0, 0, 1, 1], [], []>} : vector<16x128xbf16>, vector<128x128xbf16>, vector<16x128xf32> -> vector<16x128xf32>
    %241 = arith.extf %238 : vector<16x128xbf16> to vector<16x128xf32>
    %242 = arith.addf %241, %240 : vector<16x128xf32>
    %243 = arith.negf %242 : vector<16x128xf32>
    %244 = math.exp %243 : vector<16x128xf32>
    %cst_57 = arith.constant 1.000000e+00 : f32
    %245 = vector.broadcast %cst_57 : f32 to vector<16x128xf32>
    %246 = arith.addf %245, %244 : vector<16x128xf32>
    %247 = arith.divf %245, %246 : vector<16x128xf32>
    %248 = vector.extract_strided_slice %247 {offsets = [0, 64], sizes = [16, 64], strides = [1, 1]} : vector<16x128xf32> to vector<16x64xf32>
    %249 = vector.extract_strided_slice %247 {offsets = [0, 0], sizes = [16, 64], strides = [1, 1]} : vector<16x128xf32> to vector<16x64xf32>
    %250 = tpu.concatenate %248, %249 in 1 : vector<16x64xf32>, vector<16x64xf32> -> vector<16x128xf32>
    %251 = arith.addf %240, %23 : vector<16x128xf32>
    %252 = arith.mulf %250, %251 : vector<16x128xf32>
    %253 = arith.addf %241, %252 : vector<16x128xf32>
    %254 = math.tanh %253 : vector<16x128xf32>
    %255 = vector.extract_strided_slice %247 {offsets = [0, 32], sizes = [16, 96], strides = [1, 1]} : vector<16x128xf32> to vector<16x96xf32>
    %256 = vector.extract_strided_slice %247 {offsets = [0, 0], sizes = [16, 32], strides = [1, 1]} : vector<16x128xf32> to vector<16x32xf32>
    %257 = tpu.concatenate %255, %256 in 1 : vector<16x96xf32>, vector<16x32xf32> -> vector<16x128xf32>
    %258 = vector.extract_strided_slice %254 {offsets = [0, 64], sizes = [16, 64], strides = [1, 1]} : vector<16x128xf32> to vector<16x64xf32>
    %259 = vector.extract_strided_slice %254 {offsets = [0, 0], sizes = [16, 64], strides = [1, 1]} : vector<16x128xf32> to vector<16x64xf32>
    %260 = tpu.concatenate %258, %259 in 1 : vector<16x64xf32>, vector<16x64xf32> -> vector<16x128xf32>
    %cst_58 = arith.constant 1.000000e+00 : f32
    %261 = vector.broadcast %cst_58 : f32 to vector<16x128xf32>
    %262 = arith.subf %261, %257 : vector<16x128xf32>
    %263 = arith.mulf %262, %260 : vector<16x128xf32>
    %264 = arith.mulf %257, %230 : vector<16x128xf32>
    %265 = arith.addf %263, %264 : vector<16x128xf32>
    %266 = arith.select %5, %265, %10 : vector<16x128xi1>, vector<16x128xf32>
    %267 = arith.truncf %266 : vector<16x128xf32> to vector<16x128xbf16>
    %268 = arith.index_cast %236 : i32 to index
    %c0_59 = arith.constant 0 : index
    %269 = vector.load %arg11[%268, %c0_59] : memref<128x128xbf16, #tpu.memory_space<vmem>>, vector<16x128xbf16>
    tpu.vector_store %arg11[%268, %c0_59], %267 {strides = array<i32>} : memref<128x128xbf16, #tpu.memory_space<vmem>>, vector<16x128xbf16>,
    %c7_i32 = arith.constant 7 : i32
    %c16_i32_60 = arith.constant 16 : i32
    %270 = arith.muli %c7_i32, %c16_i32_60 : i32
    %271 = tpu.assume_multiple %270, 16 : i32
    %272 = arith.index_cast %271 : i32 to index
    %c0_61 = arith.constant 0 : index
    %273 = vector.load %arg10[%272, %c0_61] : memref<128x128xbf16, #tpu.memory_space<vmem>>, vector<16x128xbf16>
    %274 = arith.truncf %265 : vector<16x128xf32> to vector<16x128xbf16>
    %cst_62 = arith.constant dense<0.000000e+00> : vector<16x128xf32>
    %275 = tpu.matmul %274, %19, %cst_62 {dimension_numbers = #tpu.dot_dimension_numbers<[1], [0], [0], [1], [0, 0, 1, 1], [], []>} : vector<16x128xbf16>, vector<128x128xbf16>, vector<16x128xf32> -> vector<16x128xf32>
    %276 = arith.extf %273 : vector<16x128xbf16> to vector<16x128xf32>
    %277 = arith.addf %276, %275 : vector<16x128xf32>
    %278 = arith.negf %277 : vector<16x128xf32>
    %279 = math.exp %278 : vector<16x128xf32>
    %cst_63 = arith.constant 1.000000e+00 : f32
    %280 = vector.broadcast %cst_63 : f32 to vector<16x128xf32>
    %281 = arith.addf %280, %279 : vector<16x128xf32>
    %282 = arith.divf %280, %281 : vector<16x128xf32>
    %283 = vector.extract_strided_slice %282 {offsets = [0, 64], sizes = [16, 64], strides = [1, 1]} : vector<16x128xf32> to vector<16x64xf32>
    %284 = vector.extract_strided_slice %282 {offsets = [0, 0], sizes = [16, 64], strides = [1, 1]} : vector<16x128xf32> to vector<16x64xf32>
    %285 = tpu.concatenate %283, %284 in 1 : vector<16x64xf32>, vector<16x64xf32> -> vector<16x128xf32>
    %286 = arith.addf %275, %23 : vector<16x128xf32>
    %287 = arith.mulf %285, %286 : vector<16x128xf32>
    %288 = arith.addf %276, %287 : vector<16x128xf32>
    %289 = math.tanh %288 : vector<16x128xf32>
    %290 = vector.extract_strided_slice %282 {offsets = [0, 32], sizes = [16, 96], strides = [1, 1]} : vector<16x128xf32> to vector<16x96xf32>
    %291 = vector.extract_strided_slice %282 {offsets = [0, 0], sizes = [16, 32], strides = [1, 1]} : vector<16x128xf32> to vector<16x32xf32>
    %292 = tpu.concatenate %290, %291 in 1 : vector<16x96xf32>, vector<16x32xf32> -> vector<16x128xf32>
    %293 = vector.extract_strided_slice %289 {offsets = [0, 64], sizes = [16, 64], strides = [1, 1]} : vector<16x128xf32> to vector<16x64xf32>
    %294 = vector.extract_strided_slice %289 {offsets = [0, 0], sizes = [16, 64], strides = [1, 1]} : vector<16x128xf32> to vector<16x64xf32>
    %295 = tpu.concatenate %293, %294 in 1 : vector<16x64xf32>, vector<16x64xf32> -> vector<16x128xf32>
    %cst_64 = arith.constant 1.000000e+00 : f32
    %296 = vector.broadcast %cst_64 : f32 to vector<16x128xf32>
    %297 = arith.subf %296, %292 : vector<16x128xf32>
    %298 = arith.mulf %297, %295 : vector<16x128xf32>
    %299 = arith.mulf %292, %265 : vector<16x128xf32>
    %300 = arith.addf %298, %299 : vector<16x128xf32>
    %301 = arith.select %5, %300, %10 : vector<16x128xi1>, vector<16x128xf32>
    %302 = arith.truncf %301 : vector<16x128xf32> to vector<16x128xbf16>
    %303 = arith.index_cast %271 : i32 to index
    %c0_65 = arith.constant 0 : index
    %304 = vector.load %arg11[%303, %c0_65] : memref<128x128xbf16, #tpu.memory_space<vmem>>, vector<16x128xbf16>
    tpu.vector_store %arg11[%303, %c0_65], %302 {strides = array<i32>} : memref<128x128xbf16, #tpu.memory_space<vmem>>, vector<16x128xbf16>,
    %c8_i32 = arith.constant 8 : i32
    %c0_66 = arith.constant 0 : index
    %c0_67 = arith.constant 0 : index
    %305 = vector.load %arg11[%c0_66, %c0_67] : memref<128x128xbf16, #tpu.memory_space<vmem>>, vector<128x128xbf16>
    %c1 = arith.constant 1 : index
    %c0_68 = arith.constant 0 : index
    %c0_69 = arith.constant 0 : index
    %306 = vector.load %arg2[%c1, %c0_68, %c0_69] : memref<2x128x128xbf16, #tpu.memory_space<vmem>>, vector<1x128x128xbf16>
    %307 = vector.shape_cast %306 : vector<1x128x128xbf16> to vector<128x128xbf16>
    %cst_70 = arith.constant dense<0.000000e+00> : vector<128x128xf32>
    %308 = tpu.matmul %305, %307, %cst_70 {dimension_numbers = #tpu.dot_dimension_numbers<[1], [0], [0], [1], [0, 0, 1, 1], [], []>} : vector<128x128xbf16>, vector<128x128xbf16>, vector<128x128xf32> -> vector<128x128xf32>
    %309 = arith.truncf %308 : vector<128x128xf32> to vector<128x128xbf16>
    %c0_71 = arith.constant 0 : index
    %c0_72 = arith.constant 0 : index
    %310 = vector.load %arg10[%c0_71, %c0_72] : memref<128x128xbf16, #tpu.memory_space<vmem>>, vector<128x128xbf16>
    tpu.vector_store %arg10[%c0_71, %c0_72], %309 {strides = array<i32>} : memref<128x128xbf16, #tpu.memory_space<vmem>>, vector<128x128xbf16>,
    %c1_73 = arith.constant 1 : index
    %c0_74 = arith.constant 0 : index
    %c0_75 = arith.constant 0 : index
    %311 = vector.load %arg3[%c1_73, %c0_74, %c0_75] : memref<2x128x128xbf16, #tpu.memory_space<vmem>>, vector<1x128x128xbf16>
    %312 = vector.shape_cast %311 : vector<1x128x128xbf16> to vector<128x128xbf16>
    %c1_76 = arith.constant 1 : index
    %c0_77 = arith.constant 0 : index
    %c0_78 = arith.constant 0 : index
    %313 = vector.load %arg4[%c1_76, %c0_77, %c0_78] : memref<2x1x128xf32, #tpu.memory_space<vmem>>, vector<1x1x128xf32>
    %314 = vector.shape_cast %313 : vector<1x1x128xf32> to vector<1x128xf32>
    %315 = vector.shape_cast %314 : vector<1x128xf32> to vector<1x128xf32>
    %316 = vector.broadcast %315 : vector<1x128xf32> to vector<16x128xf32>
    %cst_79 = arith.constant 0.000000e+00 : f32
    %317 = vector.broadcast %cst_79 : f32 to vector<16x128xf32>
    %c0_i32_80 = arith.constant 0 : i32
    %c16_i32_81 = arith.constant 16 : i32
    %318 = arith.muli %c0_i32_80, %c16_i32_81 : i32
    %319 = tpu.assume_multiple %318, 16 : i32
    %320 = arith.index_cast %319 : i32 to index
    %c0_82 = arith.constant 0 : index
    %321 = vector.load %arg10[%320, %c0_82] : memref<128x128xbf16, #tpu.memory_space<vmem>>, vector<16x128xbf16>
    %322 = arith.truncf %317 : vector<16x128xf32> to vector<16x128xbf16>
    %cst_83 = arith.constant dense<0.000000e+00> : vector<16x128xf32>
    %323 = tpu.matmul %322, %312, %cst_83 {dimension_numbers = #tpu.dot_dimension_numbers<[1], [0], [0], [1], [0, 0, 1, 1], [], []>} : vector<16x128xbf16>, vector<128x128xbf16>, vector<16x128xf32> -> vector<16x128xf32>
    %324 = arith.extf %321 : vector<16x128xbf16> to vector<16x128xf32>
    %325 = arith.addf %324, %323 : vector<16x128xf32>
    %326 = arith.negf %325 : vector<16x128xf32>
    %327 = math.exp %326 : vector<16x128xf32>
    %cst_84 = arith.constant 1.000000e+00 : f32
    %328 = vector.broadcast %cst_84 : f32 to vector<16x128xf32>
    %329 = arith.addf %328, %327 : vector<16x128xf32>
    %330 = arith.divf %328, %329 : vector<16x128xf32>
    %331 = vector.extract_strided_slice %330 {offsets = [0, 64], sizes = [16, 64], strides = [1, 1]} : vector<16x128xf32> to vector<16x64xf32>
    %332 = vector.extract_strided_slice %330 {offsets = [0, 0], sizes = [16, 64], strides = [1, 1]} : vector<16x128xf32> to vector<16x64xf32>
    %333 = tpu.concatenate %331, %332 in 1 : vector<16x64xf32>, vector<16x64xf32> -> vector<16x128xf32>
    %334 = arith.addf %323, %316 : vector<16x128xf32>
    %335 = arith.mulf %333, %334 : vector<16x128xf32>
    %336 = arith.addf %324, %335 : vector<16x128xf32>
    %337 = math.tanh %336 : vector<16x128xf32>
    %338 = vector.extract_strided_slice %330 {offsets = [0, 32], sizes = [16, 96], strides = [1, 1]} : vector<16x128xf32> to vector<16x96xf32>
    %339 = vector.extract_strided_slice %330 {offsets = [0, 0], sizes = [16, 32], strides = [1, 1]} : vector<16x128xf32> to vector<16x32xf32>
    %340 = tpu.concatenate %338, %339 in 1 : vector<16x96xf32>, vector<16x32xf32> -> vector<16x128xf32>
    %341 = vector.extract_strided_slice %337 {offsets = [0, 64], sizes = [16, 64], strides = [1, 1]} : vector<16x128xf32> to vector<16x64xf32>
    %342 = vector.extract_strided_slice %337 {offsets = [0, 0], sizes = [16, 64], strides = [1, 1]} : vector<16x128xf32> to vector<16x64xf32>
    %343 = tpu.concatenate %341, %342 in 1 : vector<16x64xf32>, vector<16x64xf32> -> vector<16x128xf32>
    %cst_85 = arith.constant 1.000000e+00 : f32
    %344 = vector.broadcast %cst_85 : f32 to vector<16x128xf32>
    %345 = arith.subf %344, %340 : vector<16x128xf32>
    %346 = arith.mulf %345, %343 : vector<16x128xf32>
    %347 = arith.mulf %340, %317 : vector<16x128xf32>
    %348 = arith.addf %346, %347 : vector<16x128xf32>
    %349 = vector.broadcast %c0_i32_80 : i32 to vector<16x1xi32>
    %350 = arith.cmpi eq, %2, %349 : vector<16x1xi32>
    %351 = vector.shape_cast %350 : vector<16x1xi1> to vector<16x1xi1>
    %352 = vector.broadcast %351 : vector<16x1xi1> to vector<16x128xi1>
    %353 = arith.select %352, %348, %11 : vector<16x128xi1>, vector<16x128xf32>
    %c1_i32_86 = arith.constant 1 : i32
    %c16_i32_87 = arith.constant 16 : i32
    %354 = arith.muli %c1_i32_86, %c16_i32_87 : i32
    %355 = tpu.assume_multiple %354, 16 : i32
    %356 = arith.index_cast %355 : i32 to index
    %c0_88 = arith.constant 0 : index
    %357 = vector.load %arg10[%356, %c0_88] : memref<128x128xbf16, #tpu.memory_space<vmem>>, vector<16x128xbf16>
    %358 = arith.truncf %348 : vector<16x128xf32> to vector<16x128xbf16>
    %cst_89 = arith.constant dense<0.000000e+00> : vector<16x128xf32>
    %359 = tpu.matmul %358, %312, %cst_89 {dimension_numbers = #tpu.dot_dimension_numbers<[1], [0], [0], [1], [0, 0, 1, 1], [], []>} : vector<16x128xbf16>, vector<128x128xbf16>, vector<16x128xf32> -> vector<16x128xf32>
    %360 = arith.extf %357 : vector<16x128xbf16> to vector<16x128xf32>
    %361 = arith.addf %360, %359 : vector<16x128xf32>
    %362 = arith.negf %361 : vector<16x128xf32>
    %363 = math.exp %362 : vector<16x128xf32>
    %cst_90 = arith.constant 1.000000e+00 : f32
    %364 = vector.broadcast %cst_90 : f32 to vector<16x128xf32>
    %365 = arith.addf %364, %363 : vector<16x128xf32>
    %366 = arith.divf %364, %365 : vector<16x128xf32>
    %367 = vector.extract_strided_slice %366 {offsets = [0, 64], sizes = [16, 64], strides = [1, 1]} : vector<16x128xf32> to vector<16x64xf32>
    %368 = vector.extract_strided_slice %366 {offsets = [0, 0], sizes = [16, 64], strides = [1, 1]} : vector<16x128xf32> to vector<16x64xf32>
    %369 = tpu.concatenate %367, %368 in 1 : vector<16x64xf32>, vector<16x64xf32> -> vector<16x128xf32>
    %370 = arith.addf %359, %316 : vector<16x128xf32>
    %371 = arith.mulf %369, %370 : vector<16x128xf32>
    %372 = arith.addf %360, %371 : vector<16x128xf32>
    %373 = math.tanh %372 : vector<16x128xf32>
    %374 = vector.extract_strided_slice %366 {offsets = [0, 32], sizes = [16, 96], strides = [1, 1]} : vector<16x128xf32> to vector<16x96xf32>
    %375 = vector.extract_strided_slice %366 {offsets = [0, 0], sizes = [16, 32], strides = [1, 1]} : vector<16x128xf32> to vector<16x32xf32>
    %376 = tpu.concatenate %374, %375 in 1 : vector<16x96xf32>, vector<16x32xf32> -> vector<16x128xf32>
    %377 = vector.extract_strided_slice %373 {offsets = [0, 64], sizes = [16, 64], strides = [1, 1]} : vector<16x128xf32> to vector<16x64xf32>
    %378 = vector.extract_strided_slice %373 {offsets = [0, 0], sizes = [16, 64], strides = [1, 1]} : vector<16x128xf32> to vector<16x64xf32>
    %379 = tpu.concatenate %377, %378 in 1 : vector<16x64xf32>, vector<16x64xf32> -> vector<16x128xf32>
    %cst_91 = arith.constant 1.000000e+00 : f32
    %380 = vector.broadcast %cst_91 : f32 to vector<16x128xf32>
    %381 = arith.subf %380, %376 : vector<16x128xf32>
    %382 = arith.mulf %381, %379 : vector<16x128xf32>
    %383 = arith.mulf %376, %348 : vector<16x128xf32>
    %384 = arith.addf %382, %383 : vector<16x128xf32>
    %385 = vector.broadcast %c1_i32_86 : i32 to vector<16x1xi32>
    %386 = arith.cmpi eq, %2, %385 : vector<16x1xi32>
    %387 = vector.shape_cast %386 : vector<16x1xi1> to vector<16x1xi1>
    %388 = vector.broadcast %387 : vector<16x1xi1> to vector<16x128xi1>
    %389 = arith.select %388, %384, %353 : vector<16x128xi1>, vector<16x128xf32>
    %c2_i32_92 = arith.constant 2 : i32
    %c16_i32_93 = arith.constant 16 : i32
    %390 = arith.muli %c2_i32_92, %c16_i32_93 : i32
    %391 = tpu.assume_multiple %390, 16 : i32
    %392 = arith.index_cast %391 : i32 to index
    %c0_94 = arith.constant 0 : index
    %393 = vector.load %arg10[%392, %c0_94] : memref<128x128xbf16, #tpu.memory_space<vmem>>, vector<16x128xbf16>
    %394 = arith.truncf %384 : vector<16x128xf32> to vector<16x128xbf16>
    %cst_95 = arith.constant dense<0.000000e+00> : vector<16x128xf32>
    %395 = tpu.matmul %394, %312, %cst_95 {dimension_numbers = #tpu.dot_dimension_numbers<[1], [0], [0], [1], [0, 0, 1, 1], [], []>} : vector<16x128xbf16>, vector<128x128xbf16>, vector<16x128xf32> -> vector<16x128xf32>
    %396 = arith.extf %393 : vector<16x128xbf16> to vector<16x128xf32>
    %397 = arith.addf %396, %395 : vector<16x128xf32>
    %398 = arith.negf %397 : vector<16x128xf32>
    %399 = math.exp %398 : vector<16x128xf32>
    %cst_96 = arith.constant 1.000000e+00 : f32
    %400 = vector.broadcast %cst_96 : f32 to vector<16x128xf32>
    %401 = arith.addf %400, %399 : vector<16x128xf32>
    %402 = arith.divf %400, %401 : vector<16x128xf32>
    %403 = vector.extract_strided_slice %402 {offsets = [0, 64], sizes = [16, 64], strides = [1, 1]} : vector<16x128xf32> to vector<16x64xf32>
    %404 = vector.extract_strided_slice %402 {offsets = [0, 0], sizes = [16, 64], strides = [1, 1]} : vector<16x128xf32> to vector<16x64xf32>
    %405 = tpu.concatenate %403, %404 in 1 : vector<16x64xf32>, vector<16x64xf32> -> vector<16x128xf32>
    %406 = arith.addf %395, %316 : vector<16x128xf32>
    %407 = arith.mulf %405, %406 : vector<16x128xf32>
    %408 = arith.addf %396, %407 : vector<16x128xf32>
    %409 = math.tanh %408 : vector<16x128xf32>
    %410 = vector.extract_strided_slice %402 {offsets = [0, 32], sizes = [16, 96], strides = [1, 1]} : vector<16x128xf32> to vector<16x96xf32>
    %411 = vector.extract_strided_slice %402 {offsets = [0, 0], sizes = [16, 32], strides = [1, 1]} : vector<16x128xf32> to vector<16x32xf32>
    %412 = tpu.concatenate %410, %411 in 1 : vector<16x96xf32>, vector<16x32xf32> -> vector<16x128xf32>
    %413 = vector.extract_strided_slice %409 {offsets = [0, 64], sizes = [16, 64], strides = [1, 1]} : vector<16x128xf32> to vector<16x64xf32>
    %414 = vector.extract_strided_slice %409 {offsets = [0, 0], sizes = [16, 64], strides = [1, 1]} : vector<16x128xf32> to vector<16x64xf32>
    %415 = tpu.concatenate %413, %414 in 1 : vector<16x64xf32>, vector<16x64xf32> -> vector<16x128xf32>
    %cst_97 = arith.constant 1.000000e+00 : f32
    %416 = vector.broadcast %cst_97 : f32 to vector<16x128xf32>
    %417 = arith.subf %416, %412 : vector<16x128xf32>
    %418 = arith.mulf %417, %415 : vector<16x128xf32>
    %419 = arith.mulf %412, %384 : vector<16x128xf32>
    %420 = arith.addf %418, %419 : vector<16x128xf32>
    %421 = vector.broadcast %c2_i32_92 : i32 to vector<16x1xi32>
    %422 = arith.cmpi eq, %2, %421 : vector<16x1xi32>
    %423 = vector.shape_cast %422 : vector<16x1xi1> to vector<16x1xi1>
    %424 = vector.broadcast %423 : vector<16x1xi1> to vector<16x128xi1>
    %425 = arith.select %424, %420, %389 : vector<16x128xi1>, vector<16x128xf32>
    %c3_i32_98 = arith.constant 3 : i32
    %c16_i32_99 = arith.constant 16 : i32
    %426 = arith.muli %c3_i32_98, %c16_i32_99 : i32
    %427 = tpu.assume_multiple %426, 16 : i32
    %428 = arith.index_cast %427 : i32 to index
    %c0_100 = arith.constant 0 : index
    %429 = vector.load %arg10[%428, %c0_100] : memref<128x128xbf16, #tpu.memory_space<vmem>>, vector<16x128xbf16>
    %430 = arith.truncf %420 : vector<16x128xf32> to vector<16x128xbf16>
    %cst_101 = arith.constant dense<0.000000e+00> : vector<16x128xf32>
    %431 = tpu.matmul %430, %312, %cst_101 {dimension_numbers = #tpu.dot_dimension_numbers<[1], [0], [0], [1], [0, 0, 1, 1], [], []>} : vector<16x128xbf16>, vector<128x128xbf16>, vector<16x128xf32> -> vector<16x128xf32>
    %432 = arith.extf %429 : vector<16x128xbf16> to vector<16x128xf32>
    %433 = arith.addf %432, %431 : vector<16x128xf32>
    %434 = arith.negf %433 : vector<16x128xf32>
    %435 = math.exp %434 : vector<16x128xf32>
    %cst_102 = arith.constant 1.000000e+00 : f32
    %436 = vector.broadcast %cst_102 : f32 to vector<16x128xf32>
    %437 = arith.addf %436, %435 : vector<16x128xf32>
    %438 = arith.divf %436, %437 : vector<16x128xf32>
    %439 = vector.extract_strided_slice %438 {offsets = [0, 64], sizes = [16, 64], strides = [1, 1]} : vector<16x128xf32> to vector<16x64xf32>
    %440 = vector.extract_strided_slice %438 {offsets = [0, 0], sizes = [16, 64], strides = [1, 1]} : vector<16x128xf32> to vector<16x64xf32>
    %441 = tpu.concatenate %439, %440 in 1 : vector<16x64xf32>, vector<16x64xf32> -> vector<16x128xf32>
    %442 = arith.addf %431, %316 : vector<16x128xf32>
    %443 = arith.mulf %441, %442 : vector<16x128xf32>
    %444 = arith.addf %432, %443 : vector<16x128xf32>
    %445 = math.tanh %444 : vector<16x128xf32>
    %446 = vector.extract_strided_slice %438 {offsets = [0, 32], sizes = [16, 96], strides = [1, 1]} : vector<16x128xf32> to vector<16x96xf32>
    %447 = vector.extract_strided_slice %438 {offsets = [0, 0], sizes = [16, 32], strides = [1, 1]} : vector<16x128xf32> to vector<16x32xf32>
    %448 = tpu.concatenate %446, %447 in 1 : vector<16x96xf32>, vector<16x32xf32> -> vector<16x128xf32>
    %449 = vector.extract_strided_slice %445 {offsets = [0, 64], sizes = [16, 64], strides = [1, 1]} : vector<16x128xf32> to vector<16x64xf32>
    %450 = vector.extract_strided_slice %445 {offsets = [0, 0], sizes = [16, 64], strides = [1, 1]} : vector<16x128xf32> to vector<16x64xf32>
    %451 = tpu.concatenate %449, %450 in 1 : vector<16x64xf32>, vector<16x64xf32> -> vector<16x128xf32>
    %cst_103 = arith.constant 1.000000e+00 : f32
    %452 = vector.broadcast %cst_103 : f32 to vector<16x128xf32>
    %453 = arith.subf %452, %448 : vector<16x128xf32>
    %454 = arith.mulf %453, %451 : vector<16x128xf32>
    %455 = arith.mulf %448, %420 : vector<16x128xf32>
    %456 = arith.addf %454, %455 : vector<16x128xf32>
    %457 = vector.broadcast %c3_i32_98 : i32 to vector<16x1xi32>
    %458 = arith.cmpi eq, %2, %457 : vector<16x1xi32>
    %459 = vector.shape_cast %458 : vector<16x1xi1> to vector<16x1xi1>
    %460 = vector.broadcast %459 : vector<16x1xi1> to vector<16x128xi1>
    %461 = arith.select %460, %456, %425 : vector<16x128xi1>, vector<16x128xf32>
    %c4_i32_104 = arith.constant 4 : i32
    %c16_i32_105 = arith.constant 16 : i32
    %462 = arith.muli %c4_i32_104, %c16_i32_105 : i32
    %463 = tpu.assume_multiple %462, 16 : i32
    %464 = arith.index_cast %463 : i32 to index
    %c0_106 = arith.constant 0 : index
    %465 = vector.load %arg10[%464, %c0_106] : memref<128x128xbf16, #tpu.memory_space<vmem>>, vector<16x128xbf16>
    %466 = arith.truncf %456 : vector<16x128xf32> to vector<16x128xbf16>
    %cst_107 = arith.constant dense<0.000000e+00> : vector<16x128xf32>
    %467 = tpu.matmul %466, %312, %cst_107 {dimension_numbers = #tpu.dot_dimension_numbers<[1], [0], [0], [1], [0, 0, 1, 1], [], []>} : vector<16x128xbf16>, vector<128x128xbf16>, vector<16x128xf32> -> vector<16x128xf32>
    %468 = arith.extf %465 : vector<16x128xbf16> to vector<16x128xf32>
    %469 = arith.addf %468, %467 : vector<16x128xf32>
    %470 = arith.negf %469 : vector<16x128xf32>
    %471 = math.exp %470 : vector<16x128xf32>
    %cst_108 = arith.constant 1.000000e+00 : f32
    %472 = vector.broadcast %cst_108 : f32 to vector<16x128xf32>
    %473 = arith.addf %472, %471 : vector<16x128xf32>
    %474 = arith.divf %472, %473 : vector<16x128xf32>
    %475 = vector.extract_strided_slice %474 {offsets = [0, 64], sizes = [16, 64], strides = [1, 1]} : vector<16x128xf32> to vector<16x64xf32>
    %476 = vector.extract_strided_slice %474 {offsets = [0, 0], sizes = [16, 64], strides = [1, 1]} : vector<16x128xf32> to vector<16x64xf32>
    %477 = tpu.concatenate %475, %476 in 1 : vector<16x64xf32>, vector<16x64xf32> -> vector<16x128xf32>
    %478 = arith.addf %467, %316 : vector<16x128xf32>
    %479 = arith.mulf %477, %478 : vector<16x128xf32>
    %480 = arith.addf %468, %479 : vector<16x128xf32>
    %481 = math.tanh %480 : vector<16x128xf32>
    %482 = vector.extract_strided_slice %474 {offsets = [0, 32], sizes = [16, 96], strides = [1, 1]} : vector<16x128xf32> to vector<16x96xf32>
    %483 = vector.extract_strided_slice %474 {offsets = [0, 0], sizes = [16, 32], strides = [1, 1]} : vector<16x128xf32> to vector<16x32xf32>
    %484 = tpu.concatenate %482, %483 in 1 : vector<16x96xf32>, vector<16x32xf32> -> vector<16x128xf32>
    %485 = vector.extract_strided_slice %481 {offsets = [0, 64], sizes = [16, 64], strides = [1, 1]} : vector<16x128xf32> to vector<16x64xf32>
    %486 = vector.extract_strided_slice %481 {offsets = [0, 0], sizes = [16, 64], strides = [1, 1]} : vector<16x128xf32> to vector<16x64xf32>
    %487 = tpu.concatenate %485, %486 in 1 : vector<16x64xf32>, vector<16x64xf32> -> vector<16x128xf32>
    %cst_109 = arith.constant 1.000000e+00 : f32
    %488 = vector.broadcast %cst_109 : f32 to vector<16x128xf32>
    %489 = arith.subf %488, %484 : vector<16x128xf32>
    %490 = arith.mulf %489, %487 : vector<16x128xf32>
    %491 = arith.mulf %484, %456 : vector<16x128xf32>
    %492 = arith.addf %490, %491 : vector<16x128xf32>
    %493 = vector.broadcast %c4_i32_104 : i32 to vector<16x1xi32>
    %494 = arith.cmpi eq, %2, %493 : vector<16x1xi32>
    %495 = vector.shape_cast %494 : vector<16x1xi1> to vector<16x1xi1>
    %496 = vector.broadcast %495 : vector<16x1xi1> to vector<16x128xi1>
    %497 = arith.select %496, %492, %461 : vector<16x128xi1>, vector<16x128xf32>
    %c5_i32_110 = arith.constant 5 : i32
    %c16_i32_111 = arith.constant 16 : i32
    %498 = arith.muli %c5_i32_110, %c16_i32_111 : i32
    %499 = tpu.assume_multiple %498, 16 : i32
    %500 = arith.index_cast %499 : i32 to index
    %c0_112 = arith.constant 0 : index
    %501 = vector.load %arg10[%500, %c0_112] : memref<128x128xbf16, #tpu.memory_space<vmem>>, vector<16x128xbf16>
    %502 = arith.truncf %492 : vector<16x128xf32> to vector<16x128xbf16>
    %cst_113 = arith.constant dense<0.000000e+00> : vector<16x128xf32>
    %503 = tpu.matmul %502, %312, %cst_113 {dimension_numbers = #tpu.dot_dimension_numbers<[1], [0], [0], [1], [0, 0, 1, 1], [], []>} : vector<16x128xbf16>, vector<128x128xbf16>, vector<16x128xf32> -> vector<16x128xf32>
    %504 = arith.extf %501 : vector<16x128xbf16> to vector<16x128xf32>
    %505 = arith.addf %504, %503 : vector<16x128xf32>
    %506 = arith.negf %505 : vector<16x128xf32>
    %507 = math.exp %506 : vector<16x128xf32>
    %cst_114 = arith.constant 1.000000e+00 : f32
    %508 = vector.broadcast %cst_114 : f32 to vector<16x128xf32>
    %509 = arith.addf %508, %507 : vector<16x128xf32>
    %510 = arith.divf %508, %509 : vector<16x128xf32>
    %511 = vector.extract_strided_slice %510 {offsets = [0, 64], sizes = [16, 64], strides = [1, 1]} : vector<16x128xf32> to vector<16x64xf32>
    %512 = vector.extract_strided_slice %510 {offsets = [0, 0], sizes = [16, 64], strides = [1, 1]} : vector<16x128xf32> to vector<16x64xf32>
    %513 = tpu.concatenate %511, %512 in 1 : vector<16x64xf32>, vector<16x64xf32> -> vector<16x128xf32>
    %514 = arith.addf %503, %316 : vector<16x128xf32>
    %515 = arith.mulf %513, %514 : vector<16x128xf32>
    %516 = arith.addf %504, %515 : vector<16x128xf32>
    %517 = math.tanh %516 : vector<16x128xf32>
    %518 = vector.extract_strided_slice %510 {offsets = [0, 32], sizes = [16, 96], strides = [1, 1]} : vector<16x128xf32> to vector<16x96xf32>
    %519 = vector.extract_strided_slice %510 {offsets = [0, 0], sizes = [16, 32], strides = [1, 1]} : vector<16x128xf32> to vector<16x32xf32>
    %520 = tpu.concatenate %518, %519 in 1 : vector<16x96xf32>, vector<16x32xf32> -> vector<16x128xf32>
    %521 = vector.extract_strided_slice %517 {offsets = [0, 64], sizes = [16, 64], strides = [1, 1]} : vector<16x128xf32> to vector<16x64xf32>
    %522 = vector.extract_strided_slice %517 {offsets = [0, 0], sizes = [16, 64], strides = [1, 1]} : vector<16x128xf32> to vector<16x64xf32>
    %523 = tpu.concatenate %521, %522 in 1 : vector<16x64xf32>, vector<16x64xf32> -> vector<16x128xf32>
    %cst_115 = arith.constant 1.000000e+00 : f32
    %524 = vector.broadcast %cst_115 : f32 to vector<16x128xf32>
    %525 = arith.subf %524, %520 : vector<16x128xf32>
    %526 = arith.mulf %525, %523 : vector<16x128xf32>
    %527 = arith.mulf %520, %492 : vector<16x128xf32>
    %528 = arith.addf %526, %527 : vector<16x128xf32>
    %529 = vector.broadcast %c5_i32_110 : i32 to vector<16x1xi32>
    %530 = arith.cmpi eq, %2, %529 : vector<16x1xi32>
    %531 = vector.shape_cast %530 : vector<16x1xi1> to vector<16x1xi1>
    %532 = vector.broadcast %531 : vector<16x1xi1> to vector<16x128xi1>
    %533 = arith.select %532, %528, %497 : vector<16x128xi1>, vector<16x128xf32>
    %c6_i32_116 = arith.constant 6 : i32
    %c16_i32_117 = arith.constant 16 : i32
    %534 = arith.muli %c6_i32_116, %c16_i32_117 : i32
    %535 = tpu.assume_multiple %534, 16 : i32
    %536 = arith.index_cast %535 : i32 to index
    %c0_118 = arith.constant 0 : index
    %537 = vector.load %arg10[%536, %c0_118] : memref<128x128xbf16, #tpu.memory_space<vmem>>, vector<16x128xbf16>
    %538 = arith.truncf %528 : vector<16x128xf32> to vector<16x128xbf16>
    %cst_119 = arith.constant dense<0.000000e+00> : vector<16x128xf32>
    %539 = tpu.matmul %538, %312, %cst_119 {dimension_numbers = #tpu.dot_dimension_numbers<[1], [0], [0], [1], [0, 0, 1, 1], [], []>} : vector<16x128xbf16>, vector<128x128xbf16>, vector<16x128xf32> -> vector<16x128xf32>
    %540 = arith.extf %537 : vector<16x128xbf16> to vector<16x128xf32>
    %541 = arith.addf %540, %539 : vector<16x128xf32>
    %542 = arith.negf %541 : vector<16x128xf32>
    %543 = math.exp %542 : vector<16x128xf32>
    %cst_120 = arith.constant 1.000000e+00 : f32
    %544 = vector.broadcast %cst_120 : f32 to vector<16x128xf32>
    %545 = arith.addf %544, %543 : vector<16x128xf32>
    %546 = arith.divf %544, %545 : vector<16x128xf32>
    %547 = vector.extract_strided_slice %546 {offsets = [0, 64], sizes = [16, 64], strides = [1, 1]} : vector<16x128xf32> to vector<16x64xf32>
    %548 = vector.extract_strided_slice %546 {offsets = [0, 0], sizes = [16, 64], strides = [1, 1]} : vector<16x128xf32> to vector<16x64xf32>
    %549 = tpu.concatenate %547, %548 in 1 : vector<16x64xf32>, vector<16x64xf32> -> vector<16x128xf32>
    %550 = arith.addf %539, %316 : vector<16x128xf32>
    %551 = arith.mulf %549, %550 : vector<16x128xf32>
    %552 = arith.addf %540, %551 : vector<16x128xf32>
    %553 = math.tanh %552 : vector<16x128xf32>
    %554 = vector.extract_strided_slice %546 {offsets = [0, 32], sizes = [16, 96], strides = [1, 1]} : vector<16x128xf32> to vector<16x96xf32>
    %555 = vector.extract_strided_slice %546 {offsets = [0, 0], sizes = [16, 32], strides = [1, 1]} : vector<16x128xf32> to vector<16x32xf32>
    %556 = tpu.concatenate %554, %555 in 1 : vector<16x96xf32>, vector<16x32xf32> -> vector<16x128xf32>
    %557 = vector.extract_strided_slice %553 {offsets = [0, 64], sizes = [16, 64], strides = [1, 1]} : vector<16x128xf32> to vector<16x64xf32>
    %558 = vector.extract_strided_slice %553 {offsets = [0, 0], sizes = [16, 64], strides = [1, 1]} : vector<16x128xf32> to vector<16x64xf32>
    %559 = tpu.concatenate %557, %558 in 1 : vector<16x64xf32>, vector<16x64xf32> -> vector<16x128xf32>
    %cst_121 = arith.constant 1.000000e+00 : f32
    %560 = vector.broadcast %cst_121 : f32 to vector<16x128xf32>
    %561 = arith.subf %560, %556 : vector<16x128xf32>
    %562 = arith.mulf %561, %559 : vector<16x128xf32>
    %563 = arith.mulf %556, %528 : vector<16x128xf32>
    %564 = arith.addf %562, %563 : vector<16x128xf32>
    %565 = vector.broadcast %c6_i32_116 : i32 to vector<16x1xi32>
    %566 = arith.cmpi eq, %2, %565 : vector<16x1xi32>
    %567 = vector.shape_cast %566 : vector<16x1xi1> to vector<16x1xi1>
    %568 = vector.broadcast %567 : vector<16x1xi1> to vector<16x128xi1>
    %569 = arith.select %568, %564, %533 : vector<16x128xi1>, vector<16x128xf32>
    %c7_i32_122 = arith.constant 7 : i32
    %c16_i32_123 = arith.constant 16 : i32
    %570 = arith.muli %c7_i32_122, %c16_i32_123 : i32
    %571 = tpu.assume_multiple %570, 16 : i32
    %572 = arith.index_cast %571 : i32 to index
    %c0_124 = arith.constant 0 : index
    %573 = vector.load %arg10[%572, %c0_124] : memref<128x128xbf16, #tpu.memory_space<vmem>>, vector<16x128xbf16>
    %574 = arith.truncf %564 : vector<16x128xf32> to vector<16x128xbf16>
    %cst_125 = arith.constant dense<0.000000e+00> : vector<16x128xf32>
    %575 = tpu.matmul %574, %312, %cst_125 {dimension_numbers = #tpu.dot_dimension_numbers<[1], [0], [0], [1], [0, 0, 1, 1], [], []>} : vector<16x128xbf16>, vector<128x128xbf16>, vector<16x128xf32> -> vector<16x128xf32>
    %576 = arith.extf %573 : vector<16x128xbf16> to vector<16x128xf32>
    %577 = arith.addf %576, %575 : vector<16x128xf32>
    %578 = arith.negf %577 : vector<16x128xf32>
    %579 = math.exp %578 : vector<16x128xf32>
    %cst_126 = arith.constant 1.000000e+00 : f32
    %580 = vector.broadcast %cst_126 : f32 to vector<16x128xf32>
    %581 = arith.addf %580, %579 : vector<16x128xf32>
    %582 = arith.divf %580, %581 : vector<16x128xf32>
    %583 = vector.extract_strided_slice %582 {offsets = [0, 64], sizes = [16, 64], strides = [1, 1]} : vector<16x128xf32> to vector<16x64xf32>
    %584 = vector.extract_strided_slice %582 {offsets = [0, 0], sizes = [16, 64], strides = [1, 1]} : vector<16x128xf32> to vector<16x64xf32>
    %585 = tpu.concatenate %583, %584 in 1 : vector<16x64xf32>, vector<16x64xf32> -> vector<16x128xf32>
    %586 = arith.addf %575, %316 : vector<16x128xf32>
    %587 = arith.mulf %585, %586 : vector<16x128xf32>
    %588 = arith.addf %576, %587 : vector<16x128xf32>
    %589 = math.tanh %588 : vector<16x128xf32>
    %590 = vector.extract_strided_slice %582 {offsets = [0, 32], sizes = [16, 96], strides = [1, 1]} : vector<16x128xf32> to vector<16x96xf32>
    %591 = vector.extract_strided_slice %582 {offsets = [0, 0], sizes = [16, 32], strides = [1, 1]} : vector<16x128xf32> to vector<16x32xf32>
    %592 = tpu.concatenate %590, %591 in 1 : vector<16x96xf32>, vector<16x32xf32> -> vector<16x128xf32>
    %593 = vector.extract_strided_slice %589 {offsets = [0, 64], sizes = [16, 64], strides = [1, 1]} : vector<16x128xf32> to vector<16x64xf32>
    %594 = vector.extract_strided_slice %589 {offsets = [0, 0], sizes = [16, 64], strides = [1, 1]} : vector<16x128xf32> to vector<16x64xf32>
    %595 = tpu.concatenate %593, %594 in 1 : vector<16x64xf32>, vector<16x64xf32> -> vector<16x128xf32>
    %cst_127 = arith.constant 1.000000e+00 : f32
    %596 = vector.broadcast %cst_127 : f32 to vector<16x128xf32>
    %597 = arith.subf %596, %592 : vector<16x128xf32>
    %598 = arith.mulf %597, %595 : vector<16x128xf32>
    %599 = arith.mulf %592, %564 : vector<16x128xf32>
    %600 = arith.addf %598, %599 : vector<16x128xf32>
    %601 = vector.broadcast %c7_i32_122 : i32 to vector<16x1xi32>
    %602 = arith.cmpi eq, %2, %601 : vector<16x1xi32>
    %603 = vector.shape_cast %602 : vector<16x1xi1> to vector<16x1xi1>
    %604 = vector.broadcast %603 : vector<16x1xi1> to vector<16x128xi1>
    %605 = arith.select %604, %600, %569 : vector<16x128xi1>, vector<16x128xf32>
    %c8_i32_128 = arith.constant 8 : i32
    %cst_129 = arith.constant 0.000000e+00 : f32
    %606 = vector.broadcast %cst_129 : f32 to vector<16x128xf32>
    %607 = arith.select %5, %605, %606 : vector<16x128xi1>, vector<16x128xf32>
    %cst_130 = arith.constant dense<0.000000e+00> : vector<16xf32>
    %608 = vector.multi_reduction <add>, %607, %cst_130 [1] : vector<16x128xf32> to vector<16xf32>
    %609 = vector.shape_cast %608 : vector<16xf32> to vector<16x1xf32>
    %cst_131 = arith.constant 3.125000e-02 : f32
    %610 = vector.broadcast %cst_131 : f32 to vector<16x1xf32>
    %611 = arith.mulf %609, %610 : vector<16x1xf32>
    %612 = vector.broadcast %611 : vector<16x1xf32> to vector<16x128xf32>
    %613 = arith.subf %605, %612 : vector<16x128xf32>
    %cst_132 = arith.constant 0.000000e+00 : f32
    %614 = vector.broadcast %cst_132 : f32 to vector<16x128xf32>
    %615 = arith.select %5, %613, %614 : vector<16x128xi1>, vector<16x128xf32>
    %616 = arith.mulf %615, %615 : vector<16x128xf32>
    %cst_133 = arith.constant dense<0.000000e+00> : vector<16xf32>
    %617 = vector.multi_reduction <add>, %616, %cst_133 [1] : vector<16x128xf32> to vector<16xf32>
    %618 = vector.shape_cast %617 : vector<16xf32> to vector<16x1xf32>
    %cst_134 = arith.constant 3.125000e-02 : f32
    %619 = vector.broadcast %cst_134 : f32 to vector<16x1xf32>
    %620 = arith.mulf %618, %619 : vector<16x1xf32>
    %cst_135 = arith.constant 9.99999974E-6 : f32
    %621 = vector.broadcast %cst_135 : f32 to vector<16x1xf32>
    %622 = arith.addf %620, %621 : vector<16x1xf32>
    %623 = math.rsqrt %622 : vector<16x1xf32>
    %624 = vector.broadcast %623 : vector<16x1xf32> to vector<16x128xf32>
    %625 = arith.mulf %615, %624 : vector<16x128xf32>
    %c0_136 = arith.constant 0 : index
    %c0_137 = arith.constant 0 : index
    %626 = vector.load %arg5[%c0_136, %c0_137] : memref<1x128xf32, #tpu.memory_space<vmem>>, vector<1x128xf32>
    %627 = vector.broadcast %626 : vector<1x128xf32> to vector<16x128xf32>
    %628 = arith.mulf %625, %627 : vector<16x128xf32>
    %c0_138 = arith.constant 0 : index
    %c0_139 = arith.constant 0 : index
    %629 = vector.load %arg6[%c0_138, %c0_139] : memref<1x128xf32, #tpu.memory_space<vmem>>, vector<1x128xf32>
    %630 = vector.broadcast %629 : vector<1x128xf32> to vector<16x128xf32>
    %631 = arith.addf %628, %630 : vector<16x128xf32>
    %c0_140 = arith.constant 0 : index
    %c0_141 = arith.constant 0 : index
    %632 = vector.load %arg7[%c0_140, %c0_141] : memref<1x128xf32, #tpu.memory_space<vmem>>, vector<1x128xf32>
    %633 = vector.broadcast %632 : vector<1x128xf32> to vector<16x128xf32>
    %634 = arith.mulf %631, %633 : vector<16x128xf32>
    %cst_142 = arith.constant dense<0.000000e+00> : vector<16xf32>
    %635 = vector.multi_reduction <add>, %634, %cst_142 [1] : vector<16x128xf32> to vector<16xf32>
    %636 = vector.shape_cast %635 : vector<16xf32> to vector<16x1xf32>
    %c0_143 = arith.constant 0 : index
    %c0_144 = arith.constant 0 : index
    %637 = vector.load %arg8[%c0_143, %c0_144] : memref<1x1xf32, #tpu.memory_space<vmem>>, vector<1x1xf32>
    %638 = vector.broadcast %637 : vector<1x1xf32> to vector<16x1xf32>
    %639 = arith.addf %636, %638 : vector<16x1xf32>
    %640 = vector.shape_cast %639 : vector<16x1xf32> to vector<16x1xf32>
    %641 = vector.broadcast %640 : vector<16x1xf32> to vector<16x128xf32>
    %c0_145 = arith.constant 0 : index
    %c0_146 = arith.constant 0 : index
    %642 = vector.load %arg9[%c0_145, %c0_146] : memref<16x128xf32, #tpu.memory_space<vmem>>, vector<16x128xf32>
    tpu.vector_store %arg9[%c0_145, %c0_146], %641 {strides = array<i32>} : memref<16x128xf32, #tpu.memory_space<vmem>>, vector<16x128xf32>,
    return
  }
}

</mosaic_0001>

<llo_original>
// kernel: gru_classifier_forward.1
$region0: #{gru_classifier_forward.1}
  #allocation0 [shape = 'u32[]', space=smem, size = 0x4, offset = 0x4, fixed_abs, tag = 'smem constant byte address 0x4 - core index']
  #allocation1 [shape = 'u32[144,128]{1,0:T(1,128)}', space=vmem, size = 0x12000, scoped, tag = 'internal scratch']
  #allocation2 [shape = 'bf16[128,128]{1,0:T(8,128)(2,1)}', space=vmem, size = 0x8000, scoped, tag = 'scratch operand']
  #allocation3 [shape = 'bf16[128,128]{1,0:T(8,128)(2,1)}', space=vmem, size = 0x8000, scoped, tag = 'scratch operand']
  #allocation4 [shape = 'f32[1,1]{1,0:T(1,128)S(1)}', space=vmem, size = 0x200, scoped, tag = 'scoped memory for gru_classifier_forward.1']
  %s0 = inlined_call_operand.vmem [shape: s32[16,1], index: 0, kind: input, shape index: {}]
  %s1 = inlined_call_operand.vmem [shape: bf16[128,128], index: 1, kind: input, shape index: {}]
  %s2 = inlined_call_operand.vmem [shape: bf16[2,128,128], index: 2, kind: input, shape index: {}]
  %s3 = inlined_call_operand.vmem [shape: bf16[2,128,128], index: 3, kind: input, shape index: {}]
  %s4 = inlined_call_operand.vmem [shape: f32[2,1,128], index: 4, kind: input, shape index: {}]
  %s5 = inlined_call_operand.vmem [shape: f32[1,128], index: 5, kind: input, shape index: {}]
  %s6 = inlined_call_operand.vmem [shape: f32[1,128], index: 6, kind: input, shape index: {}]
  %s7 = inlined_call_operand.vmem [shape: f32[1,128], index: 7, kind: input, shape index: {}]
  %s8 = inlined_call_operand.<no memory space> [shape: f32[1,1], index: 8, kind: input, shape index: {}]
  %s9 = inlined_call_operand.vmem [shape: f32[16,128], index: 9, kind: output, shape index: {}]
  %s10 = sld [smem:[#allocation0]]
  $region46: #{gru_classifier_forward.1} parent=0
    _
  %s12 = ssub.s32 1, %s10
  %s13 = scalar_select 0, %s12, %s10
  %v14 = vstv %s8
  %15 = vst [vmem:[#allocation4] sm:$0x1] %v14
  // Predicated region
  $region2: #{gru_classifier_forward.1} parent=0 // pred_check
    _
  $region3: #{gru_classifier_forward.1} parent=0 // pred_check_branch
    %17 = sbr.rel (0) target = $region5
  $region4: #{gru_classifier_forward.1} parent=0 // pred_region
    _
  $region5: #{gru_classifier_forward.1} parent=0 // pred_fallthru
    _
  // Predicated region
  $region6: #{gru_classifier_forward.1} parent=0 // pred_check
    _
  $region7: #{gru_classifier_forward.1} parent=0 // pred_check_branch
    %19 = sbr.rel (0) target = $region9
  $region8: #{gru_classifier_forward.1} parent=0 // pred_region
    _
  $region9: #{gru_classifier_forward.1} parent=0 // pred_fallthru
    _
  // Predicated region
  $region10: #{gru_classifier_forward.1} parent=0 // pred_check
    _
  $region11: #{gru_classifier_forward.1} parent=0 // pred_check_branch
    %21 = sbr.rel (0) target = $region13
  $region12: #{gru_classifier_forward.1} parent=0 // pred_region
    _
  $region13: #{gru_classifier_forward.1} parent=0 // pred_fallthru
    _
  // Predicated region
  $region14: #{gru_classifier_forward.1} parent=0 // pred_check
    _
  $region15: #{gru_classifier_forward.1} parent=0 // pred_check_branch
    %23 = sbr.rel (0) target = $region17
  $region16: #{gru_classifier_forward.1} parent=0 // pred_region
    _
  $region17: #{gru_classifier_forward.1} parent=0 // pred_fallthru
    _
  // Predicated region
  $region18: #{gru_classifier_forward.1} parent=0 // pred_check
    _
  $region19: #{gru_classifier_forward.1} parent=0 // pred_check_branch
    %25 = sbr.rel (0) target = $region21
  $region20: #{gru_classifier_forward.1} parent=0 // pred_region
    _
  $region21: #{gru_classifier_forward.1} parent=0 // pred_fallthru
    _
  // Predicated region
  $region22: #{gru_classifier_forward.1} parent=0 // pred_check
    _
  $region23: #{gru_classifier_forward.1} parent=0 // pred_check_branch
    %27 = sbr.rel (0) target = $region25
  $region24: #{gru_classifier_forward.1} parent=0 // pred_region
    _
  $region25: #{gru_classifier_forward.1} parent=0 // pred_fallthru
    _
  // Predicated region
  $region26: #{gru_classifier_forward.1} parent=0 // pred_check
    _
  $region27: #{gru_classifier_forward.1} parent=0 // pred_check_branch
    %29 = sbr.rel (0) target = $region29
  $region28: #{gru_classifier_forward.1} parent=0 // pred_region
    _
  $region29: #{gru_classifier_forward.1} parent=0 // pred_fallthru
    _
  // Predicated region
  $region30: #{gru_classifier_forward.1} parent=0 // pred_check
    _
  $region31: #{gru_classifier_forward.1} parent=0 // pred_check_branch
    %31 = sbr.rel (0) target = $region33
  $region32: #{gru_classifier_forward.1} parent=0 // pred_region
    _
  $region33: #{gru_classifier_forward.1} parent=0 // pred_fallthru
    _
  // Predicated region
  $region34: #{gru_classifier_forward.1} parent=0 // pred_check
    _
  $region35: #{gru_classifier_forward.1} parent=0 // pred_check_branch
    %33 = sbr.rel (0) target = $region37
  $region36: #{gru_classifier_forward.1} parent=0 // pred_region
    _
  $region37: #{gru_classifier_forward.1} parent=0 // pred_fallthru
    _
  %v35 = vld [vmem:[%s0] sm:$0xff]
  %v36 = vld [vmem:[%s0 + $0x8] sm:$0xff]
  %v37 = vsub.s32 %v35, 1
  %v38 = vsub.s32 %v36, 1
  %v39 = vlaneseq
  %v40 = vand.u32 %v39, 127
  %vm41 = vcmp.lt.s32.totalorder %v40, 32
  %vm42 = vcmp.eq.s32.totalorder %v40, 127
  %v43 = vsel %vm42, 1.0, 0.0
  %v44 = vld [vmem:[%s1] sm:$0xf]
  %v45 = vld [vmem:[%s1 + $0x4] sm:$0xf]
  %v46 = vld [vmem:[%s1 + $0x8] sm:$0xf]
  %v47 = vld [vmem:[%s1 + $0xc] sm:$0xf]
  %v48 = vld [vmem:[%s1 + $0x10] sm:$0xf]
  %v49 = vld [vmem:[%s1 + $0x14] sm:$0xf]
  %v50 = vld [vmem:[%s1 + $0x18] sm:$0xf]
  %v51 = vld [vmem:[%s1 + $0x1c] sm:$0xf]
  %v52 = vld [vmem:[%s1 + $0x20] sm:$0xf]
  %v53 = vld [vmem:[%s1 + $0x24] sm:$0xf]
  %v54 = vld [vmem:[%s1 + $0x28] sm:$0xf]
  %v55 = vld [vmem:[%s1 + $0x2c] sm:$0xf]
  %v56 = vld [vmem:[%s1 + $0x30] sm:$0xf]
  %v57 = vld [vmem:[%s1 + $0x34] sm:$0xf]
  %v58 = vld [vmem:[%s1 + $0x38] sm:$0xf]
  %v59 = vld [vmem:[%s1 + $0x3c] sm:$0xf]
  %v60 = vld [vmem:[%s2] sm:$0xf]
  %v61 = vld [vmem:[%s2 + $0x4] sm:$0xf]
  %v62 = vld [vmem:[%s2 + $0x8] sm:$0xf]
  %v63 = vld [vmem:[%s2 + $0xc] sm:$0xf]
  %v64 = vld [vmem:[%s2 + $0x10] sm:$0xf]
  %v65 = vld [vmem:[%s2 + $0x14] sm:$0xf]
  %v66 = vld [vmem:[%s2 + $0x18] sm:$0xf]
  %v67 = vld [vmem:[%s2 + $0x1c] sm:$0xf]
  %v68 = vld [vmem:[%s2 + $0x20] sm:$0xf]
  %v69 = vld [vmem:[%s2 + $0x24] sm:$0xf]
  %v70 = vld [vmem:[%s2 + $0x28] sm:$0xf]
  %v71 = vld [vmem:[%s2 + $0x2c] sm:$0xf]
  %v72 = vld [vmem:[%s2 + $0x30] sm:$0xf]
  %v73 = vld [vmem:[%s2 + $0x34] sm:$0xf]
  %v74 = vld [vmem:[%s2 + $0x38] sm:$0xf]
  %v75 = vld [vmem:[%s2 + $0x3c] sm:$0xf]
  %v92 = vunpack.c.l.b16 %v44
  %v93 = vunpack.c.l.b16 %v45
  %v94 = vunpack.c.l.b16 %v46
  %v95 = vunpack.c.l.b16 %v47
  %v96 = vunpack.c.l.b16 %v48
  %v97 = vunpack.c.l.b16 %v49
  %v98 = vunpack.c.l.b16 %v50
  %v99 = vunpack.c.l.b16 %v51
  %v100 = vunpack.c.l.b16 %v52
  %v101 = vunpack.c.l.b16 %v53
  %v102 = vunpack.c.l.b16 %v54
  %v103 = vunpack.c.l.b16 %v55
  %v104 = vunpack.c.l.b16 %v56
  %v105 = vunpack.c.l.b16 %v57
  %v106 = vunpack.c.l.b16 %v58
  %v107 = vunpack.c.l.b16 %v59
  %v108 = vpack.c.b16 %v93, %v92
  %v109 = vpack.c.b16 %v95, %v94
  %v110 = vpack.c.b16 %v97, %v96
  %v111 = vpack.c.b16 %v99, %v98
  %v112 = vpack.c.b16 %v101, %v100
  %v113 = vpack.c.b16 %v103, %v102
  %v114 = vpack.c.b16 %v105, %v104
  %v115 = vpack.c.b16 %v107, %v106
  %v140 = vunpack.c.l.b16 %v60
  %v141 = vunpack.c.l.b16 %v61
  %v142 = vunpack.c.l.b16 %v62
  %v143 = vunpack.c.l.b16 %v63
  %v144 = vunpack.c.l.b16 %v64
  %v145 = vunpack.c.l.b16 %v65
  %v146 = vunpack.c.l.b16 %v66
  %v147 = vunpack.c.l.b16 %v67
  %v148 = vunpack.c.l.b16 %v68
  %v149 = vunpack.c.l.b16 %v69
  %v150 = vunpack.c.l.b16 %v70
  %v151 = vunpack.c.l.b16 %v71
  %v152 = vunpack.c.l.b16 %v72
  %v153 = vunpack.c.l.b16 %v73
  %v154 = vunpack.c.l.b16 %v74
  %v155 = vunpack.c.l.b16 %v75
  %v156 = vpack.c.b16 %v141, %v140
  %v157 = vpack.c.b16 %v143, %v142
  %v158 = vpack.c.b16 %v145, %v144
  %v159 = vpack.c.b16 %v147, %v146
  %v160 = vpack.c.b16 %v149, %v148
  %v161 = vpack.c.b16 %v151, %v150
  %v162 = vpack.c.b16 %v153, %v152
  %v163 = vpack.c.b16 %v155, %v154
  %172 = vmatprep.subr.bf16.mxu0 0
  %173 = vmatpush1.bf16.msra.mxu0 %v163
  %174 = vmatprep.subr.bf16.mxu0 0
  %175 = vmatpush1.bf16.msra.mxu0 %v162
  %176 = vmatprep.subr.bf16.mxu0 0
  %177 = vmatpush1.bf16.msra.mxu0 %v161
  %178 = vmatprep.subr.bf16.mxu0 0
  %179 = vmatpush1.bf16.msra.mxu0 %v160
  %180 = vmatprep.subr.bf16.mxu0 0
  %181 = vmatpush1.bf16.msra.mxu0 %v159
  %182 = vmatprep.subr.bf16.mxu0 0
  %183 = vmatpush1.bf16.msra.mxu0 %v158
  %184 = vmatprep.subr.bf16.mxu0 0
  %185 = vmatpush1.bf16.msra.mxu0 %v157
  %186 = vmatprep.subr.bf16.mxu0 0
  %187 = vmatpush1.bf16.msra.mxu0 %v156
  %188 = vmatprep.subr.bf16.mxu0 0
  %189 = vmatpush2.bf16.msra.mxu0 0
  %190 = vmatprep.subr.bf16.mxu0 0
  %191 = vmatpush2.bf16.msra.mxu0 0
  %192 = vmatprep.subr.bf16.mxu0 0
  %193 = vmatpush2.bf16.msra.mxu0 0
  %194 = vmatprep.subr.bf16.mxu0 0
  %195 = vmatpush2.bf16.msra.mxu0 0
  %196 = vmatprep.subr.bf16.mxu0 0
  %197 = vmatpush2.bf16.msra.mxu0 0
  %198 = vmatprep.subr.bf16.mxu0 0
  %199 = vmatpush2.bf16.msra.mxu0 0
  %200 = vmatprep.subr.bf16.mxu0 0
  %201 = vmatpush2.bf16.msra.mxu0 0
  %202 = vmatprep.subr.bf16.mxu0 0
  %203 = vmatpush2.bf16.msra.mxu0 0
  %204 = vmatprep.mubr.bf16.mxu0 0
  %205 = vmatmul.mubr.bf16.gmra.mxu0 %v108
  %v206 = vpop.f32.mrf.mxu0
  %v207 = vadd.f32 0.0, %v206
  %v208 = vpop.f32.mrf.mxu0
  %v209 = vpop.f32.mrf.mxu0
  %v210 = vadd.f32 0.0, %v209
  %v211 = vpop.f32.mrf.mxu0
  %212 = vmatprep.mubr.bf16.mxu0 0
  %213 = vmatmul.mubr.bf16.gmra.mxu0 %v109
  %v214 = vpop.f32.mrf.mxu0
  %v215 = vadd.f32 0.0, %v214
  %v216 = vpop.f32.mrf.mxu0
  %v217 = vpop.f32.mrf.mxu0
  %v218 = vadd.f32 0.0, %v217
  %v219 = vpop.f32.mrf.mxu0
  %220 = vmatprep.mubr.bf16.mxu0 0
  %221 = vmatmul.mubr.bf16.gmra.mxu0 %v110
  %v222 = vpop.f32.mrf.mxu0
  %v223 = vadd.f32 0.0, %v222
  %v224 = vpop.f32.mrf.mxu0
  %v225 = vpop.f32.mrf.mxu0
  %v226 = vadd.f32 0.0, %v225
  %v227 = vpop.f32.mrf.mxu0
  %228 = vmatprep.mubr.bf16.mxu0 0
  %229 = vmatmul.mubr.bf16.gmra.mxu0 %v111
  %v230 = vpop.f32.mrf.mxu0
  %v231 = vadd.f32 0.0, %v230
  %v232 = vpop.f32.mrf.mxu0
  %v233 = vpop.f32.mrf.mxu0
  %v234 = vadd.f32 0.0, %v233
  %v235 = vpop.f32.mrf.mxu0
  %236 = vmatprep.mubr.bf16.mxu0 0
  %237 = vmatmul.mubr.bf16.gmra.mxu0 %v112
  %v238 = vpop.f32.mrf.mxu0
  %v239 = vadd.f32 0.0, %v238
  %v240 = vpop.f32.mrf.mxu0
  %v241 = vpop.f32.mrf.mxu0
  %v242 = vadd.f32 0.0, %v241
  %v243 = vpop.f32.mrf.mxu0
  %244 = vmatprep.mubr.bf16.mxu0 0
  %245 = vmatmul.mubr.bf16.gmra.mxu0 %v113
  %v246 = vpop.f32.mrf.mxu0
  %v247 = vadd.f32 0.0, %v246
  %v248 = vpop.f32.mrf.mxu0
  %v249 = vpop.f32.mrf.mxu0
  %v250 = vadd.f32 0.0, %v249
  %v251 = vpop.f32.mrf.mxu0
  %252 = vmatprep.mubr.bf16.mxu0 0
  %253 = vmatmul.mubr.bf16.gmra.mxu0 %v114
  %v254 = vpop.f32.mrf.mxu0
  %v255 = vadd.f32 0.0, %v254
  %v256 = vpop.f32.mrf.mxu0
  %v257 = vpop.f32.mrf.mxu0
  %v258 = vadd.f32 0.0, %v257
  %v259 = vpop.f32.mrf.mxu0
  %260 = vmatprep.mubr.bf16.mxu0 0
  %261 = vmatmul.mubr.bf16.gmra.mxu0 %v115
  %v262 = vpop.f32.mrf.mxu0
  %v263 = vadd.f32 0.0, %v262
  %v264 = vpop.f32.mrf.mxu0
  %v265 = vpop.f32.mrf.mxu0
  %v266 = vadd.f32 0.0, %v265
  %v267 = vpop.f32.mrf.mxu0
  %268 = vdwg.mxu0
  %v269 = vpack.c.bf16 %v210, %v207
  %v270 = vpack.c.bf16 %v218, %v215
  %v271 = vpack.c.bf16 %v226, %v223
  %v272 = vpack.c.bf16 %v234, %v231
  %v273 = vpack.c.bf16 %v242, %v239
  %v274 = vpack.c.bf16 %v250, %v247
  %v275 = vpack.c.bf16 %v258, %v255
  %v276 = vpack.c.bf16 %v266, %v263
  %v285 = vunpack.c.l.b16 %v269
  %v286 = vunpack.c.h.b16 %v269
  %v287 = vunpack.c.l.b16 %v270
  %v288 = vunpack.c.h.b16 %v270
  %v289 = vunpack.c.l.b16 %v271
  %v290 = vunpack.c.h.b16 %v271
  %v291 = vunpack.c.l.b16 %v272
  %v292 = vunpack.c.h.b16 %v272
  %v293 = vunpack.c.l.b16 %v273
  %v294 = vunpack.c.h.b16 %v273
  %v295 = vunpack.c.l.b16 %v274
  %v296 = vunpack.c.h.b16 %v274
  %v297 = vunpack.c.l.b16 %v275
  %v298 = vunpack.c.h.b16 %v275
  %v299 = vunpack.c.l.b16 %v276
  %v300 = vunpack.c.h.b16 %v276
  %v301 = vpack.c.b16 %v285, %v285
  %v302 = vpack.c.b16 %v286, %v286
  %v303 = vpack.c.b16 %v287, %v287
  %v304 = vpack.c.b16 %v288, %v288
  %v305 = vpack.c.b16 %v289, %v289
  %v306 = vpack.c.b16 %v290, %v290
  %v307 = vpack.c.b16 %v291, %v291
  %v308 = vpack.c.b16 %v292, %v292
  %v309 = vpack.c.b16 %v293, %v293
  %v310 = vpack.c.b16 %v294, %v294
  %v311 = vpack.c.b16 %v295, %v295
  %v312 = vpack.c.b16 %v296, %v296
  %v313 = vpack.c.b16 %v297, %v297
  %v314 = vpack.c.b16 %v298, %v298
  %v315 = vpack.c.b16 %v299, %v299
  %v316 = vpack.c.b16 %v300, %v300
  %333 = vst [vmem:[#allocation2] sm:$0xf] %v301
  %334 = vst [vmem:[#allocation2 + $0x4] sm:$0xf] %v302
  %335 = vst [vmem:[#allocation2 + $0x8] sm:$0xf] %v303
  %336 = vst [vmem:[#allocation2 + $0xc] sm:$0xf] %v304
  %337 = vst [vmem:[#allocation2 + $0x10] sm:$0xf] %v305
  %338 = vst [vmem:[#allocation2 + $0x14] sm:$0xf] %v306
  %339 = vst [vmem:[#allocation2 + $0x18] sm:$0xf] %v307
  %340 = vst [vmem:[#allocation2 + $0x1c] sm:$0xf] %v308
  %341 = vst [vmem:[#allocation2 + $0x20] sm:$0xf] %v309
  %342 = vst [vmem:[#allocation2 + $0x24] sm:$0xf] %v310
  %343 = vst [vmem:[#allocation2 + $0x28] sm:$0xf] %v311
  %344 = vst [vmem:[#allocation2 + $0x2c] sm:$0xf] %v312
  %345 = vst [vmem:[#allocation2 + $0x30] sm:$0xf] %v313
  %346 = vst [vmem:[#allocation2 + $0x34] sm:$0xf] %v314
  %347 = vst [vmem:[#allocation2 + $0x38] sm:$0xf] %v315
  %348 = vst [vmem:[#allocation2 + $0x3c] sm:$0xf] %v316
  %v349 = vld [vmem:[%s3] sm:$0xf]
  %v350 = vld [vmem:[%s3 + $0x4] sm:$0xf]
  %v351 = vld [vmem:[%s3 + $0x8] sm:$0xf]
  %v352 = vld [vmem:[%s3 + $0xc] sm:$0xf]
  %v353 = vld [vmem:[%s3 + $0x10] sm:$0xf]
  %v354 = vld [vmem:[%s3 + $0x14] sm:$0xf]
  %v355 = vld [vmem:[%s3 + $0x18] sm:$0xf]
  %v356 = vld [vmem:[%s3 + $0x1c] sm:$0xf]
  %v357 = vld [vmem:[%s3 + $0x20] sm:$0xf]
  %v358 = vld [vmem:[%s3 + $0x24] sm:$0xf]
  %v359 = vld [vmem:[%s3 + $0x28] sm:$0xf]
  %v360 = vld [vmem:[%s3 + $0x2c] sm:$0xf]
  %v361 = vld [vmem:[%s3 + $0x30] sm:$0xf]
  %v362 = vld [vmem:[%s3 + $0x34] sm:$0xf]
  %v363 = vld [vmem:[%s3 + $0x38] sm:$0xf]
  %v364 = vld [vmem:[%s3 + $0x3c] sm:$0xf]
  %v365 = vld [vmem:[%s4] sm:$0x1]
  %v367 = vlaneseq
  %v368 = vshrl.u32 %v367, 7
  %v369 = vsub.s32 0, %v368
  %v370 = vrot.slane %v365, %v369
  %v372 = vld [vmem:[#allocation2] sm:$0xf]
  %v373 = vld [vmem:[#allocation2 + $0x4] sm:$0xf]
  %v390 = vunpack.c.l.b16 %v349
  %v391 = vunpack.c.l.b16 %v350
  %v392 = vunpack.c.l.b16 %v351
  %v393 = vunpack.c.l.b16 %v352
  %v394 = vunpack.c.l.b16 %v353
  %v395 = vunpack.c.l.b16 %v354
  %v396 = vunpack.c.l.b16 %v355
  %v397 = vunpack.c.l.b16 %v356
  %v398 = vunpack.c.l.b16 %v357
  %v399 = vunpack.c.l.b16 %v358
  %v400 = vunpack.c.l.b16 %v359
  %v401 = vunpack.c.l.b16 %v360
  %v402 = vunpack.c.l.b16 %v361
  %v403 = vunpack.c.l.b16 %v362
  %v404 = vunpack.c.l.b16 %v363
  %v405 = vunpack.c.l.b16 %v364
  %v406 = vpack.c.b16 %v391, %v390
  %v407 = vpack.c.b16 %v393, %v392
  %v408 = vpack.c.b16 %v395, %v394
  %v409 = vpack.c.b16 %v397, %v396
  %v410 = vpack.c.b16 %v399, %v398
  %v411 = vpack.c.b16 %v401, %v400
  %v412 = vpack.c.b16 %v403, %v402
  %v413 = vpack.c.b16 %v405, %v404
  %422 = vmatprep.subr.bf16.mxu0 0
  %423 = vmatpush1.bf16.msra.mxu0 %v413
  %424 = vmatprep.subr.bf16.mxu0 0
  %425 = vmatpush1.bf16.msra.mxu0 %v412
  %426 = vmatprep.subr.bf16.mxu0 0
  %427 = vmatpush1.bf16.msra.mxu0 %v411
  %428 = vmatprep.subr.bf16.mxu0 0
  %429 = vmatpush1.bf16.msra.mxu0 %v410
  %430 = vmatprep.subr.bf16.mxu0 0
  %431 = vmatpush1.bf16.msra.mxu0 %v409
  %432 = vmatprep.subr.bf16.mxu0 0
  %433 = vmatpush1.bf16.msra.mxu0 %v408
  %434 = vmatprep.subr.bf16.mxu0 0
  %435 = vmatpush1.bf16.msra.mxu0 %v407
  %436 = vmatprep.subr.bf16.mxu0 0
  %437 = vmatpush1.bf16.msra.mxu0 %v406
  %438 = vmatprep.subr.bf16.mxu0 0
  %439 = vmatpush2.bf16.msra.mxu0 0
  %440 = vmatprep.subr.bf16.mxu0 0
  %441 = vmatpush2.bf16.msra.mxu0 0
  %442 = vmatprep.subr.bf16.mxu0 0
  %443 = vmatpush2.bf16.msra.mxu0 0
  %444 = vmatprep.subr.bf16.mxu0 0
  %445 = vmatpush2.bf16.msra.mxu0 0
  %446 = vmatprep.subr.bf16.mxu0 0
  %447 = vmatpush2.bf16.msra.mxu0 0
  %448 = vmatprep.subr.bf16.mxu0 0
  %449 = vmatpush2.bf16.msra.mxu0 0
  %450 = vmatprep.subr.bf16.mxu0 0
  %451 = vmatpush2.bf16.msra.mxu0 0
  %452 = vmatprep.subr.bf16.mxu0 0
  %453 = vmatpush2.bf16.msra.mxu0 0
  %454 = vmatprep.mubr.bf16.mxu0 0
  %455 = vmatmul.mubr.bf16.gmra.mxu0 0
  %v456 = vpop.f32.mrf.mxu0
  %v457 = vadd.f32 0.0, %v456
  %v458 = vpop.f32.mrf.mxu0
  %v459 = vpop.f32.mrf.mxu0
  %v460 = vadd.f32 0.0, %v459
  %v461 = vpop.f32.mrf.mxu0
  %462 = vdwg.mxu0
  %v463 = vunpack.c.l.bf16 %v372
  %v464 = vunpack.c.l.bf16 %v373
  %v465 = vadd.f32 %v463, %v457
  %v466 = vadd.f32 %v464, %v460
  %v467 = vxor.u32 %v465, 2147483648
  %v468 = vxor.u32 %v466, 2147483648
  %v469 = vmul.f32 %v467, 1.442695
  %v470 = vpow.pop %v469
  %v471 = vmul.f32 %v468, 1.442695
  %v472 = vpow.pop %v471
  %v473 = vadd.f32 %v470, 1.0
  %v474 = vadd.f32 %v472, 1.0
  %v475 = vrcp.pop %v473
  %v476 = vmul.f32 1.0, %v475
  %v477 = vrcp.pop %v474
  %v478 = vmul.f32 1.0, %v477
  %481 = vrot.lane.b32.xlu0 %v476, 64
  %v482 = vpop.permute.xlu0 %481
  %483 = vrot.lane.b32.xlu0 %v478, 64
  %v484 = vpop.permute.xlu0 %483
  %v487 = vadd.f32 %v457, %v370
  %v488 = vadd.f32 %v460, %v370
  %v489 = vmul.f32 %v482, %v487
  %v490 = vmul.f32 %v484, %v488
  %v491 = vadd.f32 %v463, %v489
  %v492 = vadd.f32 %v464, %v490
  %v493 = vtanh.pop %v491
  %v494 = vtanh.pop %v492
  %495 = vrot.lane.b32.xlu0 %v476, 96
  %v496 = vpop.permute.xlu0 %495
  %497 = vrot.lane.b32.xlu0 %v478, 96
  %v498 = vpop.permute.xlu0 %497
  %503 = vrot.lane.b32.xlu0 %v493, 64
  %v504 = vpop.permute.xlu0 %503
  %505 = vrot.lane.b32.xlu0 %v494, 64
  %v506 = vpop.permute.xlu0 %505
  %v509 = vsub.f32 1.0, %v496
  %v510 = vsub.f32 1.0, %v498
  %v511 = vmul.f32 %v509, %v504
  %v512 = vmul.f32 %v510, %v506
  %v513 = vmul.f32 %v496, 0.0
  %v514 = vmul.f32 %v498, 0.0
  %v515 = vadd.f32 %v511, %v513
  %v516 = vadd.f32 %v512, %v514
  %v517 = vsel %vm41, %v515, %v43
  %v518 = vsel %vm41, %v516, %v43
  %v519 = vpack.c.bf16 %v518, %v517
  %v521 = vunpack.c.l.b16 %v519
  %v522 = vunpack.c.h.b16 %v519
  %v523 = vpack.c.b16 %v521, %v521
  %v524 = vpack.c.b16 %v522, %v522
  %527 = vst [vmem:[#allocation3] sm:$0xf] %v523
  %528 = vst [vmem:[#allocation3 + $0x4] sm:$0xf] %v524
  %s529 = scalar_lea.vmem [#allocation2], 8
  %v530 = vld [vmem:[%s529] sm:$0xf]
  %v531 = vld [vmem:[%s529 + $0x4] sm:$0xf]
  %v532 = vpack.c.bf16 %v516, %v515
  %533 = vmatprep.subr.bf16.mxu0 0
  %534 = vmatpush1.bf16.msra.mxu0 %v413
  %535 = vmatprep.subr.bf16.mxu0 0
  %536 = vmatpush1.bf16.msra.mxu0 %v412
  %537 = vmatprep.subr.bf16.mxu0 0
  %538 = vmatpush1.bf16.msra.mxu0 %v411
  %539 = vmatprep.subr.bf16.mxu0 0
  %540 = vmatpush1.bf16.msra.mxu0 %v410
  %541 = vmatprep.subr.bf16.mxu0 0
  %542 = vmatpush1.bf16.msra.mxu0 %v409
  %543 = vmatprep.subr.bf16.mxu0 0
  %544 = vmatpush1.bf16.msra.mxu0 %v408
  %545 = vmatprep.subr.bf16.mxu0 0
  %546 = vmatpush1.bf16.msra.mxu0 %v407
  %547 = vmatprep.subr.bf16.mxu0 0
  %548 = vmatpush1.bf16.msra.mxu0 %v406
  %549 = vmatprep.subr.bf16.mxu0 0
  %550 = vmatpush2.bf16.msra.mxu0 0
  %551 = vmatprep.subr.bf16.mxu0 0
  %552 = vmatpush2.bf16.msra.mxu0 0
  %553 = vmatprep.subr.bf16.mxu0 0
  %554 = vmatpush2.bf16.msra.mxu0 0
  %555 = vmatprep.subr.bf16.mxu0 0
  %556 = vmatpush2.bf16.msra.mxu0 0
  %557 = vmatprep.subr.bf16.mxu0 0
  %558 = vmatpush2.bf16.msra.mxu0 0
  %559 = vmatprep.subr.bf16.mxu0 0
  %560 = vmatpush2.bf16.msra.mxu0 0
  %561 = vmatprep.subr.bf16.mxu0 0
  %562 = vmatpush2.bf16.msra.mxu0 0
  %563 = vmatprep.subr.bf16.mxu0 0
  %564 = vmatpush2.bf16.msra.mxu0 0
  %565 = vmatprep.mubr.bf16.mxu0 0
  %566 = vmatmul.mubr.bf16.gmra.mxu0 %v532
  %v567 = vpop.f32.mrf.mxu0
  %v568 = vadd.f32 0.0, %v567
  %v569 = vpop.f32.mrf.mxu0
  %v570 = vpop.f32.mrf.mxu0
  %v571 = vadd.f32 0.0, %v570
  %v572 = vpop.f32.mrf.mxu0
  %573 = vdwg.mxu0
  %v574 = vunpack.c.l.bf16 %v530
  %v575 = vunpack.c.l.bf16 %v531
  %v576 = vadd.f32 %v574, %v568
  %v577 = vadd.f32 %v575, %v571
  %v578 = vxor.u32 %v576, 2147483648
  %v579 = vxor.u32 %v577, 2147483648
  %v580 = vmul.f32 %v578, 1.442695
  %v581 = vpow.pop %v580
  %v582 = vmul.f32 %v579, 1.442695
  %v583 = vpow.pop %v582
  %v584 = vadd.f32 %v581, 1.0
  %v585 = vadd.f32 %v583, 1.0
  %v586 = vrcp.pop %v584
  %v587 = vmul.f32 1.0, %v586
  %v588 = vrcp.pop %v585
  %v589 = vmul.f32 1.0, %v588
  %592 = vrot.lane.b32.xlu0 %v587, 64
  %v593 = vpop.permute.xlu0 %592
  %594 = vrot.lane.b32.xlu0 %v589, 64
  %v595 = vpop.permute.xlu0 %594
  %v598 = vadd.f32 %v568, %v370
  %v599 = vadd.f32 %v571, %v370
  %v600 = vmul.f32 %v593, %v598
  %v601 = vmul.f32 %v595, %v599
  %v602 = vadd.f32 %v574, %v600
  %v603 = vadd.f32 %v575, %v601
  %v604 = vtanh.pop %v602
  %v605 = vtanh.pop %v603
  %606 = vrot.lane.b32.xlu0 %v587, 96
  %v607 = vpop.permute.xlu0 %606
  %608 = vrot.lane.b32.xlu0 %v589, 96
  %v609 = vpop.permute.xlu0 %608
  %614 = vrot.lane.b32.xlu0 %v604, 64
  %v615 = vpop.permute.xlu0 %614
  %616 = vrot.lane.b32.xlu0 %v605, 64
  %v617 = vpop.permute.xlu0 %616
  %v620 = vsub.f32 1.0, %v607
  %v621 = vsub.f32 1.0, %v609
  %v622 = vmul.f32 %v620, %v615
  %v623 = vmul.f32 %v621, %v617
  %v624 = vmul.f32 %v607, %v515
  %v625 = vmul.f32 %v609, %v516
  %v626 = vadd.f32 %v622, %v624
  %v627 = vadd.f32 %v623, %v625
  %v628 = vsel %vm41, %v626, %v43
  %v629 = vsel %vm41, %v627, %v43
  %v630 = vpack.c.bf16 %v629, %v628
  %v632 = vunpack.c.l.b16 %v630
  %v633 = vunpack.c.h.b16 %v630
  %v634 = vpack.c.b16 %v632, %v632
  %v635 = vpack.c.b16 %v633, %v633
  %s638 = scalar_lea.vmem [#allocation3], 8
  %639 = vst [vmem:[%s638] sm:$0xf] %v634
  %640 = vst [vmem:[%s638 + $0x4] sm:$0xf] %v635
  %s641 = scalar_lea.vmem [#allocation2], 16
  %v642 = vld [vmem:[%s641] sm:$0xf]
  %v643 = vld [vmem:[%s641 + $0x4] sm:$0xf]
  %v644 = vpack.c.bf16 %v627, %v626
  %645 = vmatprep.subr.bf16.mxu0 0
  %646 = vmatpush1.bf16.msra.mxu0 %v413
  %647 = vmatprep.subr.bf16.mxu0 0
  %648 = vmatpush1.bf16.msra.mxu0 %v412
  %649 = vmatprep.subr.bf16.mxu0 0
  %650 = vmatpush1.bf16.msra.mxu0 %v411
  %651 = vmatprep.subr.bf16.mxu0 0
  %652 = vmatpush1.bf16.msra.mxu0 %v410
  %653 = vmatprep.subr.bf16.mxu0 0
  %654 = vmatpush1.bf16.msra.mxu0 %v409
  %655 = vmatprep.subr.bf16.mxu0 0
  %656 = vmatpush1.bf16.msra.mxu0 %v408
  %657 = vmatprep.subr.bf16.mxu0 0
  %658 = vmatpush1.bf16.msra.mxu0 %v407
  %659 = vmatprep.subr.bf16.mxu0 0
  %660 = vmatpush1.bf16.msra.mxu0 %v406
  %661 = vmatprep.subr.bf16.mxu0 0
  %662 = vmatpush2.bf16.msra.mxu0 0
  %663 = vmatprep.subr.bf16.mxu0 0
  %664 = vmatpush2.bf16.msra.mxu0 0
  %665 = vmatprep.subr.bf16.mxu0 0
  %666 = vmatpush2.bf16.msra.mxu0 0
  %667 = vmatprep.subr.bf16.mxu0 0
  %668 = vmatpush2.bf16.msra.mxu0 0
  %669 = vmatprep.subr.bf16.mxu0 0
  %670 = vmatpush2.bf16.msra.mxu0 0
  %671 = vmatprep.subr.bf16.mxu0 0
  %672 = vmatpush2.bf16.msra.mxu0 0
  %673 = vmatprep.subr.bf16.mxu0 0
  %674 = vmatpush2.bf16.msra.mxu0 0
  %675 = vmatprep.subr.bf16.mxu0 0
  %676 = vmatpush2.bf16.msra.mxu0 0
  %677 = vmatprep.mubr.bf16.mxu0 0
  %678 = vmatmul.mubr.bf16.gmra.mxu0 %v644
  %v679 = vpop.f32.mrf.mxu0
  %v680 = vadd.f32 0.0, %v679
  %v681 = vpop.f32.mrf.mxu0
  %v682 = vpop.f32.mrf.mxu0
  %v683 = vadd.f32 0.0, %v682
  %v684 = vpop.f32.mrf.mxu0
  %685 = vdwg.mxu0
  %v686 = vunpack.c.l.bf16 %v642
  %v687 = vunpack.c.l.bf16 %v643
  %v688 = vadd.f32 %v686, %v680
  %v689 = vadd.f32 %v687, %v683
  %v690 = vxor.u32 %v688, 2147483648
  %v691 = vxor.u32 %v689, 2147483648
  %v692 = vmul.f32 %v690, 1.442695
  %v693 = vpow.pop %v692
  %v694 = vmul.f32 %v691, 1.442695
  %v695 = vpow.pop %v694
  %v696 = vadd.f32 %v693, 1.0
  %v697 = vadd.f32 %v695, 1.0
  %v698 = vrcp.pop %v696
  %v699 = vmul.f32 1.0, %v698
  %v700 = vrcp.pop %v697
  %v701 = vmul.f32 1.0, %v700
  %704 = vrot.lane.b32.xlu0 %v699, 64
  %v705 = vpop.permute.xlu0 %704
  %706 = vrot.lane.b32.xlu0 %v701, 64
  %v707 = vpop.permute.xlu0 %706
  %v710 = vadd.f32 %v680, %v370
  %v711 = vadd.f32 %v683, %v370
  %v712 = vmul.f32 %v705, %v710
  %v713 = vmul.f32 %v707, %v711
  %v714 = vadd.f32 %v686, %v712
  %v715 = vadd.f32 %v687, %v713
  %v716 = vtanh.pop %v714
  %v717 = vtanh.pop %v715
  %718 = vrot.lane.b32.xlu0 %v699, 96
  %v719 = vpop.permute.xlu0 %718
  %720 = vrot.lane.b32.xlu0 %v701, 96
  %v721 = vpop.permute.xlu0 %720
  %726 = vrot.lane.b32.xlu0 %v716, 64
  %v727 = vpop.permute.xlu0 %726
  %728 = vrot.lane.b32.xlu0 %v717, 64
  %v729 = vpop.permute.xlu0 %728
  %v732 = vsub.f32 1.0, %v719
  %v733 = vsub.f32 1.0, %v721
  %v734 = vmul.f32 %v732, %v727
  %v735 = vmul.f32 %v733, %v729
  %v736 = vmul.f32 %v719, %v626
  %v737 = vmul.f32 %v721, %v627
  %v738 = vadd.f32 %v734, %v736
  %v739 = vadd.f32 %v735, %v737
  %v740 = vsel %vm41, %v738, %v43
  %v741 = vsel %vm41, %v739, %v43
  %v742 = vpack.c.bf16 %v741, %v740
  %v744 = vunpack.c.l.b16 %v742
  %v745 = vunpack.c.h.b16 %v742
  %v746 = vpack.c.b16 %v744, %v744
  %v747 = vpack.c.b16 %v745, %v745
  %s750 = scalar_lea.vmem [#allocation3], 16
  %751 = vst [vmem:[%s750] sm:$0xf] %v746
  %752 = vst [vmem:[%s750 + $0x4] sm:$0xf] %v747
  %s753 = scalar_lea.vmem [#allocation2], 24
  %v754 = vld [vmem:[%s753] sm:$0xf]
  %v755 = vld [vmem:[%s753 + $0x4] sm:$0xf]
  %v756 = vpack.c.bf16 %v739, %v738
  %757 = vmatprep.subr.bf16.mxu0 0
  %758 = vmatpush1.bf16.msra.mxu0 %v413
  %759 = vmatprep.subr.bf16.mxu0 0
  %760 = vmatpush1.bf16.msra.mxu0 %v412
  %761 = vmatprep.subr.bf16.mxu0 0
  %762 = vmatpush1.bf16.msra.mxu0 %v411
  %763 = vmatprep.subr.bf16.mxu0 0
  %764 = vmatpush1.bf16.msra.mxu0 %v410
  %765 = vmatprep.subr.bf16.mxu0 0
  %766 = vmatpush1.bf16.msra.mxu0 %v409
  %767 = vmatprep.subr.bf16.mxu0 0
  %768 = vmatpush1.bf16.msra.mxu0 %v408
  %769 = vmatprep.subr.bf16.mxu0 0
  %770 = vmatpush1.bf16.msra.mxu0 %v407
  %771 = vmatprep.subr.bf16.mxu0 0
  %772 = vmatpush1.bf16.msra.mxu0 %v406
  %773 = vmatprep.subr.bf16.mxu0 0
  %774 = vmatpush2.bf16.msra.mxu0 0
  %775 = vmatprep.subr.bf16.mxu0 0
  %776 = vmatpush2.bf16.msra.mxu0 0
  %777 = vmatprep.subr.bf16.mxu0 0
  %778 = vmatpush2.bf16.msra.mxu0 0
  %779 = vmatprep.subr.bf16.mxu0 0
  %780 = vmatpush2.bf16.msra.mxu0 0
  %781 = vmatprep.subr.bf16.mxu0 0
  %782 = vmatpush2.bf16.msra.mxu0 0
  %783 = vmatprep.subr.bf16.mxu0 0
  %784 = vmatpush2.bf16.msra.mxu0 0
  %785 = vmatprep.subr.bf16.mxu0 0
  %786 = vmatpush2.bf16.msra.mxu0 0
  %787 = vmatprep.subr.bf16.mxu0 0
  %788 = vmatpush2.bf16.msra.mxu0 0
  %789 = vmatprep.mubr.bf16.mxu0 0
  %790 = vmatmul.mubr.bf16.gmra.mxu0 %v756
  %v791 = vpop.f32.mrf.mxu0
  %v792 = vadd.f32 0.0, %v791
  %v793 = vpop.f32.mrf.mxu0
  %v794 = vpop.f32.mrf.mxu0
  %v795 = vadd.f32 0.0, %v794
  %v796 = vpop.f32.mrf.mxu0
  %797 = vdwg.mxu0
  %v798 = vunpack.c.l.bf16 %v754
  %v799 = vunpack.c.l.bf16 %v755
  %v800 = vadd.f32 %v798, %v792
  %v801 = vadd.f32 %v799, %v795
  %v802 = vxor.u32 %v800, 2147483648
  %v803 = vxor.u32 %v801, 2147483648
  %v804 = vmul.f32 %v802, 1.442695
  %v805 = vpow.pop %v804
  %v806 = vmul.f32 %v803, 1.442695
  %v807 = vpow.pop %v806
  %v808 = vadd.f32 %v805, 1.0
  %v809 = vadd.f32 %v807, 1.0
  %v810 = vrcp.pop %v808
  %v811 = vmul.f32 1.0, %v810
  %v812 = vrcp.pop %v809
  %v813 = vmul.f32 1.0, %v812
  %816 = vrot.lane.b32.xlu0 %v811, 64
  %v817 = vpop.permute.xlu0 %816
  %818 = vrot.lane.b32.xlu0 %v813, 64
  %v819 = vpop.permute.xlu0 %818
  %v822 = vadd.f32 %v792, %v370
  %v823 = vadd.f32 %v795, %v370
  %v824 = vmul.f32 %v817, %v822
  %v825 = vmul.f32 %v819, %v823
  %v826 = vadd.f32 %v798, %v824
  %v827 = vadd.f32 %v799, %v825
  %v828 = vtanh.pop %v826
  %v829 = vtanh.pop %v827
  %830 = vrot.lane.b32.xlu0 %v811, 96
  %v831 = vpop.permute.xlu0 %830
  %832 = vrot.lane.b32.xlu0 %v813, 96
  %v833 = vpop.permute.xlu0 %832
  %838 = vrot.lane.b32.xlu0 %v828, 64
  %v839 = vpop.permute.xlu0 %838
  %840 = vrot.lane.b32.xlu0 %v829, 64
  %v841 = vpop.permute.xlu0 %840
  %v844 = vsub.f32 1.0, %v831
  %v845 = vsub.f32 1.0, %v833
  %v846 = vmul.f32 %v844, %v839
  %v847 = vmul.f32 %v845, %v841
  %v848 = vmul.f32 %v831, %v738
  %v849 = vmul.f32 %v833, %v739
  %v850 = vadd.f32 %v846, %v848
  %v851 = vadd.f32 %v847, %v849
  %v852 = vsel %vm41, %v850, %v43
  %v853 = vsel %vm41, %v851, %v43
  %v854 = vpack.c.bf16 %v853, %v852
  %v856 = vunpack.c.l.b16 %v854
  %v857 = vunpack.c.h.b16 %v854
  %v858 = vpack.c.b16 %v856, %v856
  %v859 = vpack.c.b16 %v857, %v857
  %s862 = scalar_lea.vmem [#allocation3], 24
  %863 = vst [vmem:[%s862] sm:$0xf] %v858
  %864 = vst [vmem:[%s862 + $0x4] sm:$0xf] %v859
  %s865 = scalar_lea.vmem [#allocation2], 32
  %v866 = vld [vmem:[%s865] sm:$0xf]
  %v867 = vld [vmem:[%s865 + $0x4] sm:$0xf]
  %v868 = vpack.c.bf16 %v851, %v850
  %869 = vmatprep.subr.bf16.mxu0 0
  %870 = vmatpush1.bf16.msra.mxu0 %v413
  %871 = vmatprep.subr.bf16.mxu0 0
  %872 = vmatpush1.bf16.msra.mxu0 %v412
  %873 = vmatprep.subr.bf16.mxu0 0
  %874 = vmatpush1.bf16.msra.mxu0 %v411
  %875 = vmatprep.subr.bf16.mxu0 0
  %876 = vmatpush1.bf16.msra.mxu0 %v410
  %877 = vmatprep.subr.bf16.mxu0 0
  %878 = vmatpush1.bf16.msra.mxu0 %v409
  %879 = vmatprep.subr.bf16.mxu0 0
  %880 = vmatpush1.bf16.msra.mxu0 %v408
  %881 = vmatprep.subr.bf16.mxu0 0
  %882 = vmatpush1.bf16.msra.mxu0 %v407
  %883 = vmatprep.subr.bf16.mxu0 0
  %884 = vmatpush1.bf16.msra.mxu0 %v406
  %885 = vmatprep.subr.bf16.mxu0 0
  %886 = vmatpush2.bf16.msra.mxu0 0
  %887 = vmatprep.subr.bf16.mxu0 0
  %888 = vmatpush2.bf16.msra.mxu0 0
  %889 = vmatprep.subr.bf16.mxu0 0
  %890 = vmatpush2.bf16.msra.mxu0 0
  %891 = vmatprep.subr.bf16.mxu0 0
  %892 = vmatpush2.bf16.msra.mxu0 0
  %893 = vmatprep.subr.bf16.mxu0 0
  %894 = vmatpush2.bf16.msra.mxu0 0
  %895 = vmatprep.subr.bf16.mxu0 0
  %896 = vmatpush2.bf16.msra.mxu0 0
  %897 = vmatprep.subr.bf16.mxu0 0
  %898 = vmatpush2.bf16.msra.mxu0 0
  %899 = vmatprep.subr.bf16.mxu0 0
  %900 = vmatpush2.bf16.msra.mxu0 0
  %901 = vmatprep.mubr.bf16.mxu0 0
  %902 = vmatmul.mubr.bf16.gmra.mxu0 %v868
  %v903 = vpop.f32.mrf.mxu0
  %v904 = vadd.f32 0.0, %v903
  %v905 = vpop.f32.mrf.mxu0
  %v906 = vpop.f32.mrf.mxu0
  %v907 = vadd.f32 0.0, %v906
  %v908 = vpop.f32.mrf.mxu0
  %909 = vdwg.mxu0
  %v910 = vunpack.c.l.bf16 %v866
  %v911 = vunpack.c.l.bf16 %v867
  %v912 = vadd.f32 %v910, %v904
  %v913 = vadd.f32 %v911, %v907
  %v914 = vxor.u32 %v912, 2147483648
  %v915 = vxor.u32 %v913, 2147483648
  %v916 = vmul.f32 %v914, 1.442695
  %v917 = vpow.pop %v916
  %v918 = vmul.f32 %v915, 1.442695
  %v919 = vpow.pop %v918
  %v920 = vadd.f32 %v917, 1.0
  %v921 = vadd.f32 %v919, 1.0
  %v922 = vrcp.pop %v920
  %v923 = vmul.f32 1.0, %v922
  %v924 = vrcp.pop %v921
  %v925 = vmul.f32 1.0, %v924
  %928 = vrot.lane.b32.xlu0 %v923, 64
  %v929 = vpop.permute.xlu0 %928
  %930 = vrot.lane.b32.xlu0 %v925, 64
  %v931 = vpop.permute.xlu0 %930
  %v934 = vadd.f32 %v904, %v370
  %v935 = vadd.f32 %v907, %v370
  %v936 = vmul.f32 %v929, %v934
  %v937 = vmul.f32 %v931, %v935
  %v938 = vadd.f32 %v910, %v936
  %v939 = vadd.f32 %v911, %v937
  %v940 = vtanh.pop %v938
  %v941 = vtanh.pop %v939
  %942 = vrot.lane.b32.xlu0 %v923, 96
  %v943 = vpop.permute.xlu0 %942
  %944 = vrot.lane.b32.xlu0 %v925, 96
  %v945 = vpop.permute.xlu0 %944
  %950 = vrot.lane.b32.xlu0 %v940, 64
  %v951 = vpop.permute.xlu0 %950
  %952 = vrot.lane.b32.xlu0 %v941, 64
  %v953 = vpop.permute.xlu0 %952
  %v956 = vsub.f32 1.0, %v943
  %v957 = vsub.f32 1.0, %v945
  %v958 = vmul.f32 %v956, %v951
  %v959 = vmul.f32 %v957, %v953
  %v960 = vmul.f32 %v943, %v850
  %v961 = vmul.f32 %v945, %v851
  %v962 = vadd.f32 %v958, %v960
  %v963 = vadd.f32 %v959, %v961
  %v964 = vsel %vm41, %v962, %v43
  %v965 = vsel %vm41, %v963, %v43
  %v966 = vpack.c.bf16 %v965, %v964
  %v968 = vunpack.c.l.b16 %v966
  %v969 = vunpack.c.h.b16 %v966
  %v970 = vpack.c.b16 %v968, %v968
  %v971 = vpack.c.b16 %v969, %v969
  %s974 = scalar_lea.vmem [#allocation3], 32
  %975 = vst [vmem:[%s974] sm:$0xf] %v970
  %976 = vst [vmem:[%s974 + $0x4] sm:$0xf] %v971
  %s977 = scalar_lea.vmem [#allocation2], 40
  %v978 = vld [vmem:[%s977] sm:$0xf]
  %v979 = vld [vmem:[%s977 + $0x4] sm:$0xf]
  %v980 = vpack.c.bf16 %v963, %v962
  %981 = vmatprep.subr.bf16.mxu0 0
  %982 = vmatpush1.bf16.msra.mxu0 %v413
  %983 = vmatprep.subr.bf16.mxu0 0
  %984 = vmatpush1.bf16.msra.mxu0 %v412
  %985 = vmatprep.subr.bf16.mxu0 0
  %986 = vmatpush1.bf16.msra.mxu0 %v411
  %987 = vmatprep.subr.bf16.mxu0 0
  %988 = vmatpush1.bf16.msra.mxu0 %v410
  %989 = vmatprep.subr.bf16.mxu0 0
  %990 = vmatpush1.bf16.msra.mxu0 %v409
  %991 = vmatprep.subr.bf16.mxu0 0
  %992 = vmatpush1.bf16.msra.mxu0 %v408
  %993 = vmatprep.subr.bf16.mxu0 0
  %994 = vmatpush1.bf16.msra.mxu0 %v407
  %995 = vmatprep.subr.bf16.mxu0 0
  %996 = vmatpush1.bf16.msra.mxu0 %v406
  %997 = vmatprep.subr.bf16.mxu0 0
  %998 = vmatpush2.bf16.msra.mxu0 0
  %999 = vmatprep.subr.bf16.mxu0 0
  %1000 = vmatpush2.bf16.msra.mxu0 0
  %1001 = vmatprep.subr.bf16.mxu0 0
  %1002 = vmatpush2.bf16.msra.mxu0 0
  %1003 = vmatprep.subr.bf16.mxu0 0
  %1004 = vmatpush2.bf16.msra.mxu0 0
  %1005 = vmatprep.subr.bf16.mxu0 0
  %1006 = vmatpush2.bf16.msra.mxu0 0
  %1007 = vmatprep.subr.bf16.mxu0 0
  %1008 = vmatpush2.bf16.msra.mxu0 0
  %1009 = vmatprep.subr.bf16.mxu0 0
  %1010 = vmatpush2.bf16.msra.mxu0 0
  %1011 = vmatprep.subr.bf16.mxu0 0
  %1012 = vmatpush2.bf16.msra.mxu0 0
  %1013 = vmatprep.mubr.bf16.mxu0 0
  %1014 = vmatmul.mubr.bf16.gmra.mxu0 %v980
  %v1015 = vpop.f32.mrf.mxu0
  %v1016 = vadd.f32 0.0, %v1015
  %v1017 = vpop.f32.mrf.mxu0
  %v1018 = vpop.f32.mrf.mxu0
  %v1019 = vadd.f32 0.0, %v1018
  %v1020 = vpop.f32.mrf.mxu0
  %1021 = vdwg.mxu0
  %v1022 = vunpack.c.l.bf16 %v978
  %v1023 = vunpack.c.l.bf16 %v979
  %v1024 = vadd.f32 %v1022, %v1016
  %v1025 = vadd.f32 %v1023, %v1019
  %v1026 = vxor.u32 %v1024, 2147483648
  %v1027 = vxor.u32 %v1025, 2147483648
  %v1028 = vmul.f32 %v1026, 1.442695
  %v1029 = vpow.pop %v1028
  %v1030 = vmul.f32 %v1027, 1.442695
  %v1031 = vpow.pop %v1030
  %v1032 = vadd.f32 %v1029, 1.0
  %v1033 = vadd.f32 %v1031, 1.0
  %v1034 = vrcp.pop %v1032
  %v1035 = vmul.f32 1.0, %v1034
  %v1036 = vrcp.pop %v1033
  %v1037 = vmul.f32 1.0, %v1036
  %1040 = vrot.lane.b32.xlu0 %v1035, 64
  %v1041 = vpop.permute.xlu0 %1040
  %1042 = vrot.lane.b32.xlu0 %v1037, 64
  %v1043 = vpop.permute.xlu0 %1042
  %v1046 = vadd.f32 %v1016, %v370
  %v1047 = vadd.f32 %v1019, %v370
  %v1048 = vmul.f32 %v1041, %v1046
  %v1049 = vmul.f32 %v1043, %v1047
  %v1050 = vadd.f32 %v1022, %v1048
  %v1051 = vadd.f32 %v1023, %v1049
  %v1052 = vtanh.pop %v1050
  %v1053 = vtanh.pop %v1051
  %1054 = vrot.lane.b32.xlu0 %v1035, 96
  %v1055 = vpop.permute.xlu0 %1054
  %1056 = vrot.lane.b32.xlu0 %v1037, 96
  %v1057 = vpop.permute.xlu0 %1056
  %1062 = vrot.lane.b32.xlu0 %v1052, 64
  %v1063 = vpop.permute.xlu0 %1062
  %1064 = vrot.lane.b32.xlu0 %v1053, 64
  %v1065 = vpop.permute.xlu0 %1064
  %v1068 = vsub.f32 1.0, %v1055
  %v1069 = vsub.f32 1.0, %v1057
  %v1070 = vmul.f32 %v1068, %v1063
  %v1071 = vmul.f32 %v1069, %v1065
  %v1072 = vmul.f32 %v1055, %v962
  %v1073 = vmul.f32 %v1057, %v963
  %v1074 = vadd.f32 %v1070, %v1072
  %v1075 = vadd.f32 %v1071, %v1073
  %v1076 = vsel %vm41, %v1074, %v43
  %v1077 = vsel %vm41, %v1075, %v43
  %v1078 = vpack.c.bf16 %v1077, %v1076
  %v1080 = vunpack.c.l.b16 %v1078
  %v1081 = vunpack.c.h.b16 %v1078
  %v1082 = vpack.c.b16 %v1080, %v1080
  %v1083 = vpack.c.b16 %v1081, %v1081
  %s1086 = scalar_lea.vmem [#allocation3], 40
  %1087 = vst [vmem:[%s1086] sm:$0xf] %v1082
  %1088 = vst [vmem:[%s1086 + $0x4] sm:$0xf] %v1083
  %s1089 = scalar_lea.vmem [#allocation2], 48
  %v1090 = vld [vmem:[%s1089] sm:$0xf]
  %v1091 = vld [vmem:[%s1089 + $0x4] sm:$0xf]
  %v1092 = vpack.c.bf16 %v1075, %v1074
  %1093 = vmatprep.subr.bf16.mxu0 0
  %1094 = vmatpush1.bf16.msra.mxu0 %v413
  %1095 = vmatprep.subr.bf16.mxu0 0
  %1096 = vmatpush1.bf16.msra.mxu0 %v412
  %1097 = vmatprep.subr.bf16.mxu0 0
  %1098 = vmatpush1.bf16.msra.mxu0 %v411
  %1099 = vmatprep.subr.bf16.mxu0 0
  %1100 = vmatpush1.bf16.msra.mxu0 %v410
  %1101 = vmatprep.subr.bf16.mxu0 0
  %1102 = vmatpush1.bf16.msra.mxu0 %v409
  %1103 = vmatprep.subr.bf16.mxu0 0
  %1104 = vmatpush1.bf16.msra.mxu0 %v408
  %1105 = vmatprep.subr.bf16.mxu0 0
  %1106 = vmatpush1.bf16.msra.mxu0 %v407
  %1107 = vmatprep.subr.bf16.mxu0 0
  %1108 = vmatpush1.bf16.msra.mxu0 %v406
  %1109 = vmatprep.subr.bf16.mxu0 0
  %1110 = vmatpush2.bf16.msra.mxu0 0
  %1111 = vmatprep.subr.bf16.mxu0 0
  %1112 = vmatpush2.bf16.msra.mxu0 0
  %1113 = vmatprep.subr.bf16.mxu0 0
  %1114 = vmatpush2.bf16.msra.mxu0 0
  %1115 = vmatprep.subr.bf16.mxu0 0
  %1116 = vmatpush2.bf16.msra.mxu0 0
  %1117 = vmatprep.subr.bf16.mxu0 0
  %1118 = vmatpush2.bf16.msra.mxu0 0
  %1119 = vmatprep.subr.bf16.mxu0 0
  %1120 = vmatpush2.bf16.msra.mxu0 0
  %1121 = vmatprep.subr.bf16.mxu0 0
  %1122 = vmatpush2.bf16.msra.mxu0 0
  %1123 = vmatprep.subr.bf16.mxu0 0
  %1124 = vmatpush2.bf16.msra.mxu0 0
  %1125 = vmatprep.mubr.bf16.mxu0 0
  %1126 = vmatmul.mubr.bf16.gmra.mxu0 %v1092
  %v1127 = vpop.f32.mrf.mxu0
  %v1128 = vadd.f32 0.0, %v1127
  %v1129 = vpop.f32.mrf.mxu0
  %v1130 = vpop.f32.mrf.mxu0
  %v1131 = vadd.f32 0.0, %v1130
  %v1132 = vpop.f32.mrf.mxu0
  %1133 = vdwg.mxu0
  %v1134 = vunpack.c.l.bf16 %v1090
  %v1135 = vunpack.c.l.bf16 %v1091
  %v1136 = vadd.f32 %v1134, %v1128
  %v1137 = vadd.f32 %v1135, %v1131
  %v1138 = vxor.u32 %v1136, 2147483648
  %v1139 = vxor.u32 %v1137, 2147483648
  %v1140 = vmul.f32 %v1138, 1.442695
  %v1141 = vpow.pop %v1140
  %v1142 = vmul.f32 %v1139, 1.442695
  %v1143 = vpow.pop %v1142
  %v1144 = vadd.f32 %v1141, 1.0
  %v1145 = vadd.f32 %v1143, 1.0
  %v1146 = vrcp.pop %v1144
  %v1147 = vmul.f32 1.0, %v1146
  %v1148 = vrcp.pop %v1145
  %v1149 = vmul.f32 1.0, %v1148
  %1152 = vrot.lane.b32.xlu0 %v1147, 64
  %v1153 = vpop.permute.xlu0 %1152
  %1154 = vrot.lane.b32.xlu0 %v1149, 64
  %v1155 = vpop.permute.xlu0 %1154
  %v1158 = vadd.f32 %v1128, %v370
  %v1159 = vadd.f32 %v1131, %v370
  %v1160 = vmul.f32 %v1153, %v1158
  %v1161 = vmul.f32 %v1155, %v1159
  %v1162 = vadd.f32 %v1134, %v1160
  %v1163 = vadd.f32 %v1135, %v1161
  %v1164 = vtanh.pop %v1162
  %v1165 = vtanh.pop %v1163
  %1166 = vrot.lane.b32.xlu0 %v1147, 96
  %v1167 = vpop.permute.xlu0 %1166
  %1168 = vrot.lane.b32.xlu0 %v1149, 96
  %v1169 = vpop.permute.xlu0 %1168
  %1174 = vrot.lane.b32.xlu0 %v1164, 64
  %v1175 = vpop.permute.xlu0 %1174
  %1176 = vrot.lane.b32.xlu0 %v1165, 64
  %v1177 = vpop.permute.xlu0 %1176
  %v1180 = vsub.f32 1.0, %v1167
  %v1181 = vsub.f32 1.0, %v1169
  %v1182 = vmul.f32 %v1180, %v1175
  %v1183 = vmul.f32 %v1181, %v1177
  %v1184 = vmul.f32 %v1167, %v1074
  %v1185 = vmul.f32 %v1169, %v1075
  %v1186 = vadd.f32 %v1182, %v1184
  %v1187 = vadd.f32 %v1183, %v1185
  %v1188 = vsel %vm41, %v1186, %v43
  %v1189 = vsel %vm41, %v1187, %v43
  %v1190 = vpack.c.bf16 %v1189, %v1188
  %v1192 = vunpack.c.l.b16 %v1190
  %v1193 = vunpack.c.h.b16 %v1190
  %v1194 = vpack.c.b16 %v1192, %v1192
  %v1195 = vpack.c.b16 %v1193, %v1193
  %s1198 = scalar_lea.vmem [#allocation3], 48
  %1199 = vst [vmem:[%s1198] sm:$0xf] %v1194
  %1200 = vst [vmem:[%s1198 + $0x4] sm:$0xf] %v1195
  %s1201 = scalar_lea.vmem [#allocation2], 56
  %v1202 = vld [vmem:[%s1201] sm:$0xf]
  %v1203 = vld [vmem:[%s1201 + $0x4] sm:$0xf]
  %v1204 = vpack.c.bf16 %v1187, %v1186
  %1205 = vmatprep.subr.bf16.mxu0 0
  %1206 = vmatpush1.bf16.msra.mxu0 %v413
  %1207 = vmatprep.subr.bf16.mxu0 0
  %1208 = vmatpush1.bf16.msra.mxu0 %v412
  %1209 = vmatprep.subr.bf16.mxu0 0
  %1210 = vmatpush1.bf16.msra.mxu0 %v411
  %1211 = vmatprep.subr.bf16.mxu0 0
  %1212 = vmatpush1.bf16.msra.mxu0 %v410
  %1213 = vmatprep.subr.bf16.mxu0 0
  %1214 = vmatpush1.bf16.msra.mxu0 %v409
  %1215 = vmatprep.subr.bf16.mxu0 0
  %1216 = vmatpush1.bf16.msra.mxu0 %v408
  %1217 = vmatprep.subr.bf16.mxu0 0
  %1218 = vmatpush1.bf16.msra.mxu0 %v407
  %1219 = vmatprep.subr.bf16.mxu0 0
  %1220 = vmatpush1.bf16.msra.mxu0 %v406
  %1221 = vmatprep.subr.bf16.mxu0 0
  %1222 = vmatpush2.bf16.msra.mxu0 0
  %1223 = vmatprep.subr.bf16.mxu0 0
  %1224 = vmatpush2.bf16.msra.mxu0 0
  %1225 = vmatprep.subr.bf16.mxu0 0
  %1226 = vmatpush2.bf16.msra.mxu0 0
  %1227 = vmatprep.subr.bf16.mxu0 0
  %1228 = vmatpush2.bf16.msra.mxu0 0
  %1229 = vmatprep.subr.bf16.mxu0 0
  %1230 = vmatpush2.bf16.msra.mxu0 0
  %1231 = vmatprep.subr.bf16.mxu0 0
  %1232 = vmatpush2.bf16.msra.mxu0 0
  %1233 = vmatprep.subr.bf16.mxu0 0
  %1234 = vmatpush2.bf16.msra.mxu0 0
  %1235 = vmatprep.subr.bf16.mxu0 0
  %1236 = vmatpush2.bf16.msra.mxu0 0
  %1237 = vmatprep.mubr.bf16.mxu0 0
  %1238 = vmatmul.mubr.bf16.gmra.mxu0 %v1204
  %v1239 = vpop.f32.mrf.mxu0
  %v1240 = vadd.f32 0.0, %v1239
  %v1241 = vpop.f32.mrf.mxu0
  %v1242 = vpop.f32.mrf.mxu0
  %v1243 = vadd.f32 0.0, %v1242
  %v1244 = vpop.f32.mrf.mxu0
  %1245 = vdwg.mxu0
  %v1246 = vunpack.c.l.bf16 %v1202
  %v1247 = vunpack.c.l.bf16 %v1203
  %v1248 = vadd.f32 %v1246, %v1240
  %v1249 = vadd.f32 %v1247, %v1243
  %v1250 = vxor.u32 %v1248, 2147483648
  %v1251 = vxor.u32 %v1249, 2147483648
  %v1252 = vmul.f32 %v1250, 1.442695
  %v1253 = vpow.pop %v1252
  %v1254 = vmul.f32 %v1251, 1.442695
  %v1255 = vpow.pop %v1254
  %v1256 = vadd.f32 %v1253, 1.0
  %v1257 = vadd.f32 %v1255, 1.0
  %v1258 = vrcp.pop %v1256
  %v1259 = vmul.f32 1.0, %v1258
  %v1260 = vrcp.pop %v1257
  %v1261 = vmul.f32 1.0, %v1260
  %1264 = vrot.lane.b32.xlu0 %v1259, 64
  %v1265 = vpop.permute.xlu0 %1264
  %1266 = vrot.lane.b32.xlu0 %v1261, 64
  %v1267 = vpop.permute.xlu0 %1266
  %v1270 = vadd.f32 %v1240, %v370
  %v1271 = vadd.f32 %v1243, %v370
  %v1272 = vmul.f32 %v1265, %v1270
  %v1273 = vmul.f32 %v1267, %v1271
  %v1274 = vadd.f32 %v1246, %v1272
  %v1275 = vadd.f32 %v1247, %v1273
  %v1276 = vtanh.pop %v1274
  %v1277 = vtanh.pop %v1275
  %1278 = vrot.lane.b32.xlu0 %v1259, 96
  %v1279 = vpop.permute.xlu0 %1278
  %1280 = vrot.lane.b32.xlu0 %v1261, 96
  %v1281 = vpop.permute.xlu0 %1280
  %1286 = vrot.lane.b32.xlu0 %v1276, 64
  %v1287 = vpop.permute.xlu0 %1286
  %1288 = vrot.lane.b32.xlu0 %v1277, 64
  %v1289 = vpop.permute.xlu0 %1288
  %v1292 = vsub.f32 1.0, %v1279
  %v1293 = vsub.f32 1.0, %v1281
  %v1294 = vmul.f32 %v1292, %v1287
  %v1295 = vmul.f32 %v1293, %v1289
  %v1296 = vmul.f32 %v1279, %v1186
  %v1297 = vmul.f32 %v1281, %v1187
  %v1298 = vadd.f32 %v1294, %v1296
  %v1299 = vadd.f32 %v1295, %v1297
  %v1300 = vsel %vm41, %v1298, %v43
  %v1301 = vsel %vm41, %v1299, %v43
  %v1302 = vpack.c.bf16 %v1301, %v1300
  %v1304 = vunpack.c.l.b16 %v1302
  %v1305 = vunpack.c.h.b16 %v1302
  %v1306 = vpack.c.b16 %v1304, %v1304
  %v1307 = vpack.c.b16 %v1305, %v1305
  %s1310 = scalar_lea.vmem [#allocation3], 56
  %1311 = vst [vmem:[%s1310] sm:$0xf] %v1306
  %1312 = vst [vmem:[%s1310 + $0x4] sm:$0xf] %v1307
  %v1313 = vld [vmem:[#allocation3] sm:$0xf]
  %v1314 = vld [vmem:[#allocation3 + $0x4] sm:$0xf]
  %v1315 = vld [vmem:[#allocation3 + $0x8] sm:$0xf]
  %v1316 = vld [vmem:[#allocation3 + $0xc] sm:$0xf]
  %v1317 = vld [vmem:[#allocation3 + $0x10] sm:$0xf]
  %v1318 = vld [vmem:[#allocation3 + $0x14] sm:$0xf]
  %v1319 = vld [vmem:[#allocation3 + $0x18] sm:$0xf]
  %v1320 = vld [vmem:[#allocation3 + $0x1c] sm:$0xf]
  %v1321 = vld [vmem:[#allocation3 + $0x20] sm:$0xf]
  %v1322 = vld [vmem:[#allocation3 + $0x24] sm:$0xf]
  %v1323 = vld [vmem:[#allocation3 + $0x28] sm:$0xf]
  %v1324 = vld [vmem:[#allocation3 + $0x2c] sm:$0xf]
  %v1325 = vld [vmem:[#allocation3 + $0x30] sm:$0xf]
  %v1326 = vld [vmem:[#allocation3 + $0x34] sm:$0xf]
  %v1327 = vld [vmem:[#allocation3 + $0x38] sm:$0xf]
  %v1328 = vld [vmem:[#allocation3 + $0x3c] sm:$0xf]
  %s1329 = scalar_lea.vmem %s2, 64
  %v1330 = vld [vmem:[%s1329] sm:$0xf]
  %v1331 = vld [vmem:[%s1329 + $0x4] sm:$0xf]
  %v1332 = vld [vmem:[%s1329 + $0x8] sm:$0xf]
  %v1333 = vld [vmem:[%s1329 + $0xc] sm:$0xf]
  %v1334 = vld [vmem:[%s1329 + $0x10] sm:$0xf]
  %v1335 = vld [vmem:[%s1329 + $0x14] sm:$0xf]
  %v1336 = vld [vmem:[%s1329 + $0x18] sm:$0xf]
  %v1337 = vld [vmem:[%s1329 + $0x1c] sm:$0xf]
  %v1338 = vld [vmem:[%s1329 + $0x20] sm:$0xf]
  %v1339 = vld [vmem:[%s1329 + $0x24] sm:$0xf]
  %v1340 = vld [vmem:[%s1329 + $0x28] sm:$0xf]
  %v1341 = vld [vmem:[%s1329 + $0x2c] sm:$0xf]
  %v1342 = vld [vmem:[%s1329 + $0x30] sm:$0xf]
  %v1343 = vld [vmem:[%s1329 + $0x34] sm:$0xf]
  %v1344 = vld [vmem:[%s1329 + $0x38] sm:$0xf]
  %v1345 = vld [vmem:[%s1329 + $0x3c] sm:$0xf]
  %v1362 = vunpack.c.l.b16 %v1313
  %v1363 = vunpack.c.l.b16 %v1314
  %v1364 = vunpack.c.l.b16 %v1315
  %v1365 = vunpack.c.l.b16 %v1316
  %v1366 = vunpack.c.l.b16 %v1317
  %v1367 = vunpack.c.l.b16 %v1318
  %v1368 = vunpack.c.l.b16 %v1319
  %v1369 = vunpack.c.l.b16 %v1320
  %v1370 = vunpack.c.l.b16 %v1321
  %v1371 = vunpack.c.l.b16 %v1322
  %v1372 = vunpack.c.l.b16 %v1323
  %v1373 = vunpack.c.l.b16 %v1324
  %v1374 = vunpack.c.l.b16 %v1325
  %v1375 = vunpack.c.l.b16 %v1326
  %v1376 = vunpack.c.l.b16 %v1327
  %v1377 = vunpack.c.l.b16 %v1328
  %v1378 = vpack.c.b16 %v1363, %v1362
  %v1379 = vpack.c.b16 %v1365, %v1364
  %v1380 = vpack.c.b16 %v1367, %v1366
  %v1381 = vpack.c.b16 %v1369, %v1368
  %v1382 = vpack.c.b16 %v1371, %v1370
  %v1383 = vpack.c.b16 %v1373, %v1372
  %v1384 = vpack.c.b16 %v1375, %v1374
  %v1385 = vpack.c.b16 %v1377, %v1376
  %v1410 = vunpack.c.l.b16 %v1330
  %v1411 = vunpack.c.l.b16 %v1331
  %v1412 = vunpack.c.l.b16 %v1332
  %v1413 = vunpack.c.l.b16 %v1333
  %v1414 = vunpack.c.l.b16 %v1334
  %v1415 = vunpack.c.l.b16 %v1335
  %v1416 = vunpack.c.l.b16 %v1336
  %v1417 = vunpack.c.l.b16 %v1337
  %v1418 = vunpack.c.l.b16 %v1338
  %v1419 = vunpack.c.l.b16 %v1339
  %v1420 = vunpack.c.l.b16 %v1340
  %v1421 = vunpack.c.l.b16 %v1341
  %v1422 = vunpack.c.l.b16 %v1342
  %v1423 = vunpack.c.l.b16 %v1343
  %v1424 = vunpack.c.l.b16 %v1344
  %v1425 = vunpack.c.l.b16 %v1345
  %v1426 = vpack.c.b16 %v1411, %v1410
  %v1427 = vpack.c.b16 %v1413, %v1412
  %v1428 = vpack.c.b16 %v1415, %v1414
  %v1429 = vpack.c.b16 %v1417, %v1416
  %v1430 = vpack.c.b16 %v1419, %v1418
  %v1431 = vpack.c.b16 %v1421, %v1420
  %v1432 = vpack.c.b16 %v1423, %v1422
  %v1433 = vpack.c.b16 %v1425, %v1424
  %1442 = vmatprep.subr.bf16.mxu0 0
  %1443 = vmatpush1.bf16.msra.mxu0 %v1433
  %1444 = vmatprep.subr.bf16.mxu0 0
  %1445 = vmatpush1.bf16.msra.mxu0 %v1432
  %1446 = vmatprep.subr.bf16.mxu0 0
  %1447 = vmatpush1.bf16.msra.mxu0 %v1431
  %1448 = vmatprep.subr.bf16.mxu0 0
  %1449 = vmatpush1.bf16.msra.mxu0 %v1430
  %1450 = vmatprep.subr.bf16.mxu0 0
  %1451 = vmatpush1.bf16.msra.mxu0 %v1429
  %1452 = vmatprep.subr.bf16.mxu0 0
  %1453 = vmatpush1.bf16.msra.mxu0 %v1428
  %1454 = vmatprep.subr.bf16.mxu0 0
  %1455 = vmatpush1.bf16.msra.mxu0 %v1427
  %1456 = vmatprep.subr.bf16.mxu0 0
  %1457 = vmatpush1.bf16.msra.mxu0 %v1426
  %1458 = vmatprep.subr.bf16.mxu0 0
  %1459 = vmatpush2.bf16.msra.mxu0 0
  %1460 = vmatprep.subr.bf16.mxu0 0
  %1461 = vmatpush2.bf16.msra.mxu0 0
  %1462 = vmatprep.subr.bf16.mxu0 0
  %1463 = vmatpush2.bf16.msra.mxu0 0
  %1464 = vmatprep.subr.bf16.mxu0 0
  %1465 = vmatpush2.bf16.msra.mxu0 0
  %1466 = vmatprep.subr.bf16.mxu0 0
  %1467 = vmatpush2.bf16.msra.mxu0 0
  %1468 = vmatprep.subr.bf16.mxu0 0
  %1469 = vmatpush2.bf16.msra.mxu0 0
  %1470 = vmatprep.subr.bf16.mxu0 0
  %1471 = vmatpush2.bf16.msra.mxu0 0
  %1472 = vmatprep.subr.bf16.mxu0 0
  %1473 = vmatpush2.bf16.msra.mxu0 0
  %1474 = vmatprep.mubr.bf16.mxu0 0
  %1475 = vmatmul.mubr.bf16.gmra.mxu0 %v1378
  %v1476 = vpop.f32.mrf.mxu0
  %v1477 = vadd.f32 0.0, %v1476
  %v1478 = vpop.f32.mrf.mxu0
  %v1479 = vpop.f32.mrf.mxu0
  %v1480 = vadd.f32 0.0, %v1479
  %v1481 = vpop.f32.mrf.mxu0
  %1482 = vmatprep.mubr.bf16.mxu0 0
  %1483 = vmatmul.mubr.bf16.gmra.mxu0 %v1379
  %v1484 = vpop.f32.mrf.mxu0
  %v1485 = vadd.f32 0.0, %v1484
  %v1486 = vpop.f32.mrf.mxu0
  %v1487 = vpop.f32.mrf.mxu0
  %v1488 = vadd.f32 0.0, %v1487
  %v1489 = vpop.f32.mrf.mxu0
  %1490 = vmatprep.mubr.bf16.mxu0 0
  %1491 = vmatmul.mubr.bf16.gmra.mxu0 %v1380
  %v1492 = vpop.f32.mrf.mxu0
  %v1493 = vadd.f32 0.0, %v1492
  %v1494 = vpop.f32.mrf.mxu0
  %v1495 = vpop.f32.mrf.mxu0
  %v1496 = vadd.f32 0.0, %v1495
  %v1497 = vpop.f32.mrf.mxu0
  %1498 = vmatprep.mubr.bf16.mxu0 0
  %1499 = vmatmul.mubr.bf16.gmra.mxu0 %v1381
  %v1500 = vpop.f32.mrf.mxu0
  %v1501 = vadd.f32 0.0, %v1500
  %v1502 = vpop.f32.mrf.mxu0
  %v1503 = vpop.f32.mrf.mxu0
  %v1504 = vadd.f32 0.0, %v1503
  %v1505 = vpop.f32.mrf.mxu0
  %1506 = vmatprep.mubr.bf16.mxu0 0
  %1507 = vmatmul.mubr.bf16.gmra.mxu0 %v1382
  %v1508 = vpop.f32.mrf.mxu0
  %v1509 = vadd.f32 0.0, %v1508
  %v1510 = vpop.f32.mrf.mxu0
  %v1511 = vpop.f32.mrf.mxu0
  %v1512 = vadd.f32 0.0, %v1511
  %v1513 = vpop.f32.mrf.mxu0
  %1514 = vmatprep.mubr.bf16.mxu0 0
  %1515 = vmatmul.mubr.bf16.gmra.mxu0 %v1383
  %v1516 = vpop.f32.mrf.mxu0
  %v1517 = vadd.f32 0.0, %v1516
  %v1518 = vpop.f32.mrf.mxu0
  %v1519 = vpop.f32.mrf.mxu0
  %v1520 = vadd.f32 0.0, %v1519
  %v1521 = vpop.f32.mrf.mxu0
  %1522 = vmatprep.mubr.bf16.mxu0 0
  %1523 = vmatmul.mubr.bf16.gmra.mxu0 %v1384
  %v1524 = vpop.f32.mrf.mxu0
  %v1525 = vadd.f32 0.0, %v1524
  %v1526 = vpop.f32.mrf.mxu0
  %v1527 = vpop.f32.mrf.mxu0
  %v1528 = vadd.f32 0.0, %v1527
  %v1529 = vpop.f32.mrf.mxu0
  %1530 = vmatprep.mubr.bf16.mxu0 0
  %1531 = vmatmul.mubr.bf16.gmra.mxu0 %v1385
  %v1532 = vpop.f32.mrf.mxu0
  %v1533 = vadd.f32 0.0, %v1532
  %v1534 = vpop.f32.mrf.mxu0
  %v1535 = vpop.f32.mrf.mxu0
  %v1536 = vadd.f32 0.0, %v1535
  %v1537 = vpop.f32.mrf.mxu0
  %1538 = vdwg.mxu0
  %v1539 = vpack.c.bf16 %v1480, %v1477
  %v1540 = vpack.c.bf16 %v1488, %v1485
  %v1541 = vpack.c.bf16 %v1496, %v1493
  %v1542 = vpack.c.bf16 %v1504, %v1501
  %v1543 = vpack.c.bf16 %v1512, %v1509
  %v1544 = vpack.c.bf16 %v1520, %v1517
  %v1545 = vpack.c.bf16 %v1528, %v1525
  %v1546 = vpack.c.bf16 %v1536, %v1533
  %v1555 = vunpack.c.l.b16 %v1539
  %v1556 = vunpack.c.h.b16 %v1539
  %v1557 = vunpack.c.l.b16 %v1540
  %v1558 = vunpack.c.h.b16 %v1540
  %v1559 = vunpack.c.l.b16 %v1541
  %v1560 = vunpack.c.h.b16 %v1541
  %v1561 = vunpack.c.l.b16 %v1542
  %v1562 = vunpack.c.h.b16 %v1542
  %v1563 = vunpack.c.l.b16 %v1543
  %v1564 = vunpack.c.h.b16 %v1543
  %v1565 = vunpack.c.l.b16 %v1544
  %v1566 = vunpack.c.h.b16 %v1544
  %v1567 = vunpack.c.l.b16 %v1545
  %v1568 = vunpack.c.h.b16 %v1545
  %v1569 = vunpack.c.l.b16 %v1546
  %v1570 = vunpack.c.h.b16 %v1546
  %v1571 = vpack.c.b16 %v1555, %v1555
  %v1572 = vpack.c.b16 %v1556, %v1556
  %v1573 = vpack.c.b16 %v1557, %v1557
  %v1574 = vpack.c.b16 %v1558, %v1558
  %v1575 = vpack.c.b16 %v1559, %v1559
  %v1576 = vpack.c.b16 %v1560, %v1560
  %v1577 = vpack.c.b16 %v1561, %v1561
  %v1578 = vpack.c.b16 %v1562, %v1562
  %v1579 = vpack.c.b16 %v1563, %v1563
  %v1580 = vpack.c.b16 %v1564, %v1564
  %v1581 = vpack.c.b16 %v1565, %v1565
  %v1582 = vpack.c.b16 %v1566, %v1566
  %v1583 = vpack.c.b16 %v1567, %v1567
  %v1584 = vpack.c.b16 %v1568, %v1568
  %v1585 = vpack.c.b16 %v1569, %v1569
  %v1586 = vpack.c.b16 %v1570, %v1570
  %1603 = vst [vmem:[#allocation2] sm:$0xf] %v1571
  %1604 = vst [vmem:[#allocation2 + $0x4] sm:$0xf] %v1572
  %1605 = vst [vmem:[#allocation2 + $0x8] sm:$0xf] %v1573
  %1606 = vst [vmem:[#allocation2 + $0xc] sm:$0xf] %v1574
  %1607 = vst [vmem:[#allocation2 + $0x10] sm:$0xf] %v1575
  %1608 = vst [vmem:[#allocation2 + $0x14] sm:$0xf] %v1576
  %1609 = vst [vmem:[#allocation2 + $0x18] sm:$0xf] %v1577
  %1610 = vst [vmem:[#allocation2 + $0x1c] sm:$0xf] %v1578
  %1611 = vst [vmem:[#allocation2 + $0x20] sm:$0xf] %v1579
  %1612 = vst [vmem:[#allocation2 + $0x24] sm:$0xf] %v1580
  %1613 = vst [vmem:[#allocation2 + $0x28] sm:$0xf] %v1581
  %1614 = vst [vmem:[#allocation2 + $0x2c] sm:$0xf] %v1582
  %1615 = vst [vmem:[#allocation2 + $0x30] sm:$0xf] %v1583
  %1616 = vst [vmem:[#allocation2 + $0x34] sm:$0xf] %v1584
  %1617 = vst [vmem:[#allocation2 + $0x38] sm:$0xf] %v1585
  %1618 = vst [vmem:[#allocation2 + $0x3c] sm:$0xf] %v1586
  %s1619 = scalar_lea.vmem %s3, 64
  %v1620 = vld [vmem:[%s1619] sm:$0xf]
  %v1621 = vld [vmem:[%s1619 + $0x4] sm:$0xf]
  %v1622 = vld [vmem:[%s1619 + $0x8] sm:$0xf]
  %v1623 = vld [vmem:[%s1619 + $0xc] sm:$0xf]
  %v1624 = vld [vmem:[%s1619 + $0x10] sm:$0xf]
  %v1625 = vld [vmem:[%s1619 + $0x14] sm:$0xf]
  %v1626 = vld [vmem:[%s1619 + $0x18] sm:$0xf]
  %v1627 = vld [vmem:[%s1619 + $0x1c] sm:$0xf]
  %v1628 = vld [vmem:[%s1619 + $0x20] sm:$0xf]
  %v1629 = vld [vmem:[%s1619 + $0x24] sm:$0xf]
  %v1630 = vld [vmem:[%s1619 + $0x28] sm:$0xf]
  %v1631 = vld [vmem:[%s1619 + $0x2c] sm:$0xf]
  %v1632 = vld [vmem:[%s1619 + $0x30] sm:$0xf]
  %v1633 = vld [vmem:[%s1619 + $0x34] sm:$0xf]
  %v1634 = vld [vmem:[%s1619 + $0x38] sm:$0xf]
  %v1635 = vld [vmem:[%s1619 + $0x3c] sm:$0xf]
  %s1636 = scalar_lea.vmem %s4, 1
  %v1637 = vld [vmem:[%s1636] sm:$0x1]
  %v1639 = vlaneseq
  %v1640 = vshrl.u32 %v1639, 7
  %v1641 = vsub.s32 0, %v1640
  %v1642 = vrot.slane %v1637, %v1641
  %v1644 = vld [vmem:[#allocation2] sm:$0xf]
  %v1645 = vld [vmem:[#allocation2 + $0x4] sm:$0xf]
  %v1662 = vunpack.c.l.b16 %v1620
  %v1663 = vunpack.c.l.b16 %v1621
  %v1664 = vunpack.c.l.b16 %v1622
  %v1665 = vunpack.c.l.b16 %v1623
  %v1666 = vunpack.c.l.b16 %v1624
  %v1667 = vunpack.c.l.b16 %v1625
  %v1668 = vunpack.c.l.b16 %v1626
  %v1669 = vunpack.c.l.b16 %v1627
  %v1670 = vunpack.c.l.b16 %v1628
  %v1671 = vunpack.c.l.b16 %v1629
  %v1672 = vunpack.c.l.b16 %v1630
  %v1673 = vunpack.c.l.b16 %v1631
  %v1674 = vunpack.c.l.b16 %v1632
  %v1675 = vunpack.c.l.b16 %v1633
  %v1676 = vunpack.c.l.b16 %v1634
  %v1677 = vunpack.c.l.b16 %v1635
  %v1678 = vpack.c.b16 %v1663, %v1662
  %v1679 = vpack.c.b16 %v1665, %v1664
  %v1680 = vpack.c.b16 %v1667, %v1666
  %v1681 = vpack.c.b16 %v1669, %v1668
  %v1682 = vpack.c.b16 %v1671, %v1670
  %v1683 = vpack.c.b16 %v1673, %v1672
  %v1684 = vpack.c.b16 %v1675, %v1674
  %v1685 = vpack.c.b16 %v1677, %v1676
  %1694 = vmatprep.subr.bf16.mxu0 0
  %1695 = vmatpush1.bf16.msra.mxu0 %v1685
  %1696 = vmatprep.subr.bf16.mxu0 0
  %1697 = vmatpush1.bf16.msra.mxu0 %v1684
  %1698 = vmatprep.subr.bf16.mxu0 0
  %1699 = vmatpush1.bf16.msra.mxu0 %v1683
  %1700 = vmatprep.subr.bf16.mxu0 0
  %1701 = vmatpush1.bf16.msra.mxu0 %v1682
  %1702 = vmatprep.subr.bf16.mxu0 0
  %1703 = vmatpush1.bf16.msra.mxu0 %v1681
  %1704 = vmatprep.subr.bf16.mxu0 0
  %1705 = vmatpush1.bf16.msra.mxu0 %v1680
  %1706 = vmatprep.subr.bf16.mxu0 0
  %1707 = vmatpush1.bf16.msra.mxu0 %v1679
  %1708 = vmatprep.subr.bf16.mxu0 0
  %1709 = vmatpush1.bf16.msra.mxu0 %v1678
  %1710 = vmatprep.subr.bf16.mxu0 0
  %1711 = vmatpush2.bf16.msra.mxu0 0
  %1712 = vmatprep.subr.bf16.mxu0 0
  %1713 = vmatpush2.bf16.msra.mxu0 0
  %1714 = vmatprep.subr.bf16.mxu0 0
  %1715 = vmatpush2.bf16.msra.mxu0 0
  %1716 = vmatprep.subr.bf16.mxu0 0
  %1717 = vmatpush2.bf16.msra.mxu0 0
  %1718 = vmatprep.subr.bf16.mxu0 0
  %1719 = vmatpush2.bf16.msra.mxu0 0
  %1720 = vmatprep.subr.bf16.mxu0 0
  %1721 = vmatpush2.bf16.msra.mxu0 0
  %1722 = vmatprep.subr.bf16.mxu0 0
  %1723 = vmatpush2.bf16.msra.mxu0 0
  %1724 = vmatprep.subr.bf16.mxu0 0
  %1725 = vmatpush2.bf16.msra.mxu0 0
  %1726 = vmatprep.mubr.bf16.mxu0 0
  %1727 = vmatmul.mubr.bf16.gmra.mxu0 0
  %v1728 = vpop.f32.mrf.mxu0
  %v1729 = vadd.f32 0.0, %v1728
  %v1730 = vpop.f32.mrf.mxu0
  %v1731 = vpop.f32.mrf.mxu0
  %v1732 = vadd.f32 0.0, %v1731
  %v1733 = vpop.f32.mrf.mxu0
  %1734 = vdwg.mxu0
  %v1735 = vunpack.c.l.bf16 %v1644
  %v1736 = vunpack.c.l.bf16 %v1645
  %v1737 = vadd.f32 %v1735, %v1729
  %v1738 = vadd.f32 %v1736, %v1732
  %v1739 = vxor.u32 %v1737, 2147483648
  %v1740 = vxor.u32 %v1738, 2147483648
  %v1741 = vmul.f32 %v1739, 1.442695
  %v1742 = vpow.pop %v1741
  %v1743 = vmul.f32 %v1740, 1.442695
  %v1744 = vpow.pop %v1743
  %v1745 = vadd.f32 %v1742, 1.0
  %v1746 = vadd.f32 %v1744, 1.0
  %v1747 = vrcp.pop %v1745
  %v1748 = vmul.f32 1.0, %v1747
  %v1749 = vrcp.pop %v1746
  %v1750 = vmul.f32 1.0, %v1749
  %1753 = vrot.lane.b32.xlu0 %v1748, 64
  %v1754 = vpop.permute.xlu0 %1753
  %1755 = vrot.lane.b32.xlu0 %v1750, 64
  %v1756 = vpop.permute.xlu0 %1755
  %v1759 = vadd.f32 %v1729, %v1642
  %v1760 = vadd.f32 %v1732, %v1642
  %v1761 = vmul.f32 %v1754, %v1759
  %v1762 = vmul.f32 %v1756, %v1760
  %v1763 = vadd.f32 %v1735, %v1761
  %v1764 = vadd.f32 %v1736, %v1762
  %v1765 = vtanh.pop %v1763
  %v1766 = vtanh.pop %v1764
  %1767 = vrot.lane.b32.xlu0 %v1748, 96
  %v1768 = vpop.permute.xlu0 %1767
  %1769 = vrot.lane.b32.xlu0 %v1750, 96
  %v1770 = vpop.permute.xlu0 %1769
  %1775 = vrot.lane.b32.xlu0 %v1765, 64
  %v1776 = vpop.permute.xlu0 %1775
  %1777 = vrot.lane.b32.xlu0 %v1766, 64
  %v1778 = vpop.permute.xlu0 %1777
  %v1781 = vsub.f32 1.0, %v1768
  %v1782 = vsub.f32 1.0, %v1770
  %v1783 = vmul.f32 %v1781, %v1776
  %v1784 = vmul.f32 %v1782, %v1778
  %v1785 = vmul.f32 %v1768, 0.0
  %v1786 = vmul.f32 %v1770, 0.0
  %v1787 = vadd.f32 %v1783, %v1785
  %v1788 = vadd.f32 %v1784, %v1786
  %vm1789 = vcmp.eq.s32.totalorder %v37, 0
  %vm1790 = vcmp.eq.s32.totalorder %v38, 0
  %v1791 = vsel %vm1789, 1, 0
  %v1792 = vsel %vm1790, 1, 0
  %1793 = vset.pattern.permute.xlu0 0
  %1794 = vperm.xlu0 %1793, %v1791
  %v1795 = vpop.permute.xlu0 %1794
  %1796 = vset.pattern.permute.xlu0 0
  %1797 = vperm.xlu0 %1796, %v1792
  %v1798 = vpop.permute.xlu0 %1797
  %vm1799 = vcmp.eq.s32.totalorder %v1795, 1
  %vm1800 = vcmp.eq.s32.totalorder %v1798, 1
  %v1801 = vsel %vm1799, %v1787, 0.0
  %v1802 = vsel %vm1800, %v1788, 0.0
  %v1803 = vld [vmem:[%s529] sm:$0xf]
  %v1804 = vld [vmem:[%s529 + $0x4] sm:$0xf]
  %v1805 = vpack.c.bf16 %v1788, %v1787
  %1806 = vmatprep.subr.bf16.mxu0 0
  %1807 = vmatpush1.bf16.msra.mxu0 %v1685
  %1808 = vmatprep.subr.bf16.mxu0 0
  %1809 = vmatpush1.bf16.msra.mxu0 %v1684
  %1810 = vmatprep.subr.bf16.mxu0 0
  %1811 = vmatpush1.bf16.msra.mxu0 %v1683
  %1812 = vmatprep.subr.bf16.mxu0 0
  %1813 = vmatpush1.bf16.msra.mxu0 %v1682
  %1814 = vmatprep.subr.bf16.mxu0 0
  %1815 = vmatpush1.bf16.msra.mxu0 %v1681
  %1816 = vmatprep.subr.bf16.mxu0 0
  %1817 = vmatpush1.bf16.msra.mxu0 %v1680
  %1818 = vmatprep.subr.bf16.mxu0 0
  %1819 = vmatpush1.bf16.msra.mxu0 %v1679
  %1820 = vmatprep.subr.bf16.mxu0 0
  %1821 = vmatpush1.bf16.msra.mxu0 %v1678
  %1822 = vmatprep.subr.bf16.mxu0 0
  %1823 = vmatpush2.bf16.msra.mxu0 0
  %1824 = vmatprep.subr.bf16.mxu0 0
  %1825 = vmatpush2.bf16.msra.mxu0 0
  %1826 = vmatprep.subr.bf16.mxu0 0
  %1827 = vmatpush2.bf16.msra.mxu0 0
  %1828 = vmatprep.subr.bf16.mxu0 0
  %1829 = vmatpush2.bf16.msra.mxu0 0
  %1830 = vmatprep.subr.bf16.mxu0 0
  %1831 = vmatpush2.bf16.msra.mxu0 0
  %1832 = vmatprep.subr.bf16.mxu0 0
  %1833 = vmatpush2.bf16.msra.mxu0 0
  %1834 = vmatprep.subr.bf16.mxu0 0
  %1835 = vmatpush2.bf16.msra.mxu0 0
  %1836 = vmatprep.subr.bf16.mxu0 0
  %1837 = vmatpush2.bf16.msra.mxu0 0
  %1838 = vmatprep.mubr.bf16.mxu0 0
  %1839 = vmatmul.mubr.bf16.gmra.mxu0 %v1805
  %v1840 = vpop.f32.mrf.mxu0
  %v1841 = vadd.f32 0.0, %v1840
  %v1842 = vpop.f32.mrf.mxu0
  %v1843 = vpop.f32.mrf.mxu0
  %v1844 = vadd.f32 0.0, %v1843
  %v1845 = vpop.f32.mrf.mxu0
  %1846 = vdwg.mxu0
  %v1847 = vunpack.c.l.bf16 %v1803
  %v1848 = vunpack.c.l.bf16 %v1804
  %v1849 = vadd.f32 %v1847, %v1841
  %v1850 = vadd.f32 %v1848, %v1844
  %v1851 = vxor.u32 %v1849, 2147483648
  %v1852 = vxor.u32 %v1850, 2147483648
  %v1853 = vmul.f32 %v1851, 1.442695
  %v1854 = vpow.pop %v1853
  %v1855 = vmul.f32 %v1852, 1.442695
  %v1856 = vpow.pop %v1855
  %v1857 = vadd.f32 %v1854, 1.0
  %v1858 = vadd.f32 %v1856, 1.0
  %v1859 = vrcp.pop %v1857
  %v1860 = vmul.f32 1.0, %v1859
  %v1861 = vrcp.pop %v1858
  %v1862 = vmul.f32 1.0, %v1861
  %1865 = vrot.lane.b32.xlu0 %v1860, 64
  %v1866 = vpop.permute.xlu0 %1865
  %1867 = vrot.lane.b32.xlu0 %v1862, 64
  %v1868 = vpop.permute.xlu0 %1867
  %v1871 = vadd.f32 %v1841, %v1642
  %v1872 = vadd.f32 %v1844, %v1642
  %v1873 = vmul.f32 %v1866, %v1871
  %v1874 = vmul.f32 %v1868, %v1872
  %v1875 = vadd.f32 %v1847, %v1873
  %v1876 = vadd.f32 %v1848, %v1874
  %v1877 = vtanh.pop %v1875
  %v1878 = vtanh.pop %v1876
  %1879 = vrot.lane.b32.xlu0 %v1860, 96
  %v1880 = vpop.permute.xlu0 %1879
  %1881 = vrot.lane.b32.xlu0 %v1862, 96
  %v1882 = vpop.permute.xlu0 %1881
  %1887 = vrot.lane.b32.xlu0 %v1877, 64
  %v1888 = vpop.permute.xlu0 %1887
  %1889 = vrot.lane.b32.xlu0 %v1878, 64
  %v1890 = vpop.permute.xlu0 %1889
  %v1893 = vsub.f32 1.0, %v1880
  %v1894 = vsub.f32 1.0, %v1882
  %v1895 = vmul.f32 %v1893, %v1888
  %v1896 = vmul.f32 %v1894, %v1890
  %v1897 = vmul.f32 %v1880, %v1787
  %v1898 = vmul.f32 %v1882, %v1788
  %v1899 = vadd.f32 %v1895, %v1897
  %v1900 = vadd.f32 %v1896, %v1898
  %vm1901 = vcmp.eq.s32.totalorder %v37, 1
  %vm1902 = vcmp.eq.s32.totalorder %v38, 1
  %v1903 = vsel %vm1901, 1, 0
  %v1904 = vsel %vm1902, 1, 0
  %1905 = vset.pattern.permute.xlu0 0
  %1906 = vperm.xlu0 %1905, %v1903
  %v1907 = vpop.permute.xlu0 %1906
  %1908 = vset.pattern.permute.xlu0 0
  %1909 = vperm.xlu0 %1908, %v1904
  %v1910 = vpop.permute.xlu0 %1909
  %vm1911 = vcmp.eq.s32.totalorder %v1907, 1
  %vm1912 = vcmp.eq.s32.totalorder %v1910, 1
  %v1913 = vsel %vm1911, %v1899, %v1801
  %v1914 = vsel %vm1912, %v1900, %v1802
  %v1915 = vld [vmem:[%s641] sm:$0xf]
  %v1916 = vld [vmem:[%s641 + $0x4] sm:$0xf]
  %v1917 = vpack.c.bf16 %v1900, %v1899
  %1918 = vmatprep.subr.bf16.mxu0 0
  %1919 = vmatpush1.bf16.msra.mxu0 %v1685
  %1920 = vmatprep.subr.bf16.mxu0 0
  %1921 = vmatpush1.bf16.msra.mxu0 %v1684
  %1922 = vmatprep.subr.bf16.mxu0 0
  %1923 = vmatpush1.bf16.msra.mxu0 %v1683
  %1924 = vmatprep.subr.bf16.mxu0 0
  %1925 = vmatpush1.bf16.msra.mxu0 %v1682
  %1926 = vmatprep.subr.bf16.mxu0 0
  %1927 = vmatpush1.bf16.msra.mxu0 %v1681
  %1928 = vmatprep.subr.bf16.mxu0 0
  %1929 = vmatpush1.bf16.msra.mxu0 %v1680
  %1930 = vmatprep.subr.bf16.mxu0 0
  %1931 = vmatpush1.bf16.msra.mxu0 %v1679
  %1932 = vmatprep.subr.bf16.mxu0 0
  %1933 = vmatpush1.bf16.msra.mxu0 %v1678
  %1934 = vmatprep.subr.bf16.mxu0 0
  %1935 = vmatpush2.bf16.msra.mxu0 0
  %1936 = vmatprep.subr.bf16.mxu0 0
  %1937 = vmatpush2.bf16.msra.mxu0 0
  %1938 = vmatprep.subr.bf16.mxu0 0
  %1939 = vmatpush2.bf16.msra.mxu0 0
  %1940 = vmatprep.subr.bf16.mxu0 0
  %1941 = vmatpush2.bf16.msra.mxu0 0
  %1942 = vmatprep.subr.bf16.mxu0 0
  %1943 = vmatpush2.bf16.msra.mxu0 0
  %1944 = vmatprep.subr.bf16.mxu0 0
  %1945 = vmatpush2.bf16.msra.mxu0 0
  %1946 = vmatprep.subr.bf16.mxu0 0
  %1947 = vmatpush2.bf16.msra.mxu0 0
  %1948 = vmatprep.subr.bf16.mxu0 0
  %1949 = vmatpush2.bf16.msra.mxu0 0
  %1950 = vmatprep.mubr.bf16.mxu0 0
  %1951 = vmatmul.mubr.bf16.gmra.mxu0 %v1917
  %v1952 = vpop.f32.mrf.mxu0
  %v1953 = vadd.f32 0.0, %v1952
  %v1954 = vpop.f32.mrf.mxu0
  %v1955 = vpop.f32.mrf.mxu0
  %v1956 = vadd.f32 0.0, %v1955
  %v1957 = vpop.f32.mrf.mxu0
  %1958 = vdwg.mxu0
  %v1959 = vunpack.c.l.bf16 %v1915
  %v1960 = vunpack.c.l.bf16 %v1916
  %v1961 = vadd.f32 %v1959, %v1953
  %v1962 = vadd.f32 %v1960, %v1956
  %v1963 = vxor.u32 %v1961, 2147483648
  %v1964 = vxor.u32 %v1962, 2147483648
  %v1965 = vmul.f32 %v1963, 1.442695
  %v1966 = vpow.pop %v1965
  %v1967 = vmul.f32 %v1964, 1.442695
  %v1968 = vpow.pop %v1967
  %v1969 = vadd.f32 %v1966, 1.0
  %v1970 = vadd.f32 %v1968, 1.0
  %v1971 = vrcp.pop %v1969
  %v1972 = vmul.f32 1.0, %v1971
  %v1973 = vrcp.pop %v1970
  %v1974 = vmul.f32 1.0, %v1973
  %1977 = vrot.lane.b32.xlu0 %v1972, 64
  %v1978 = vpop.permute.xlu0 %1977
  %1979 = vrot.lane.b32.xlu0 %v1974, 64
  %v1980 = vpop.permute.xlu0 %1979
  %v1983 = vadd.f32 %v1953, %v1642
  %v1984 = vadd.f32 %v1956, %v1642
  %v1985 = vmul.f32 %v1978, %v1983
  %v1986 = vmul.f32 %v1980, %v1984
  %v1987 = vadd.f32 %v1959, %v1985
  %v1988 = vadd.f32 %v1960, %v1986
  %v1989 = vtanh.pop %v1987
  %v1990 = vtanh.pop %v1988
  %1991 = vrot.lane.b32.xlu0 %v1972, 96
  %v1992 = vpop.permute.xlu0 %1991
  %1993 = vrot.lane.b32.xlu0 %v1974, 96
  %v1994 = vpop.permute.xlu0 %1993
  %1999 = vrot.lane.b32.xlu0 %v1989, 64
  %v2000 = vpop.permute.xlu0 %1999
  %2001 = vrot.lane.b32.xlu0 %v1990, 64
  %v2002 = vpop.permute.xlu0 %2001
  %v2005 = vsub.f32 1.0, %v1992
  %v2006 = vsub.f32 1.0, %v1994
  %v2007 = vmul.f32 %v2005, %v2000
  %v2008 = vmul.f32 %v2006, %v2002
  %v2009 = vmul.f32 %v1992, %v1899
  %v2010 = vmul.f32 %v1994, %v1900
  %v2011 = vadd.f32 %v2007, %v2009
  %v2012 = vadd.f32 %v2008, %v2010
  %vm2013 = vcmp.eq.s32.totalorder %v37, 2
  %vm2014 = vcmp.eq.s32.totalorder %v38, 2
  %v2015 = vsel %vm2013, 1, 0
  %v2016 = vsel %vm2014, 1, 0
  %2017 = vset.pattern.permute.xlu0 0
  %2018 = vperm.xlu0 %2017, %v2015
  %v2019 = vpop.permute.xlu0 %2018
  %2020 = vset.pattern.permute.xlu0 0
  %2021 = vperm.xlu0 %2020, %v2016
  %v2022 = vpop.permute.xlu0 %2021
  %vm2023 = vcmp.eq.s32.totalorder %v2019, 1
  %vm2024 = vcmp.eq.s32.totalorder %v2022, 1
  %v2025 = vsel %vm2023, %v2011, %v1913
  %v2026 = vsel %vm2024, %v2012, %v1914
  %v2027 = vld [vmem:[%s753] sm:$0xf]
  %v2028 = vld [vmem:[%s753 + $0x4] sm:$0xf]
  %v2029 = vpack.c.bf16 %v2012, %v2011
  %2030 = vmatprep.subr.bf16.mxu0 0
  %2031 = vmatpush1.bf16.msra.mxu0 %v1685
  %2032 = vmatprep.subr.bf16.mxu0 0
  %2033 = vmatpush1.bf16.msra.mxu0 %v1684
  %2034 = vmatprep.subr.bf16.mxu0 0
  %2035 = vmatpush1.bf16.msra.mxu0 %v1683
  %2036 = vmatprep.subr.bf16.mxu0 0
  %2037 = vmatpush1.bf16.msra.mxu0 %v1682
  %2038 = vmatprep.subr.bf16.mxu0 0
  %2039 = vmatpush1.bf16.msra.mxu0 %v1681
  %2040 = vmatprep.subr.bf16.mxu0 0
  %2041 = vmatpush1.bf16.msra.mxu0 %v1680
  %2042 = vmatprep.subr.bf16.mxu0 0
  %2043 = vmatpush1.bf16.msra.mxu0 %v1679
  %2044 = vmatprep.subr.bf16.mxu0 0
  %2045 = vmatpush1.bf16.msra.mxu0 %v1678
  %2046 = vmatprep.subr.bf16.mxu0 0
  %2047 = vmatpush2.bf16.msra.mxu0 0
  %2048 = vmatprep.subr.bf16.mxu0 0
  %2049 = vmatpush2.bf16.msra.mxu0 0
  %2050 = vmatprep.subr.bf16.mxu0 0
  %2051 = vmatpush2.bf16.msra.mxu0 0
  %2052 = vmatprep.subr.bf16.mxu0 0
  %2053 = vmatpush2.bf16.msra.mxu0 0
  %2054 = vmatprep.subr.bf16.mxu0 0
  %2055 = vmatpush2.bf16.msra.mxu0 0
  %2056 = vmatprep.subr.bf16.mxu0 0
  %2057 = vmatpush2.bf16.msra.mxu0 0
  %2058 = vmatprep.subr.bf16.mxu0 0
  %2059 = vmatpush2.bf16.msra.mxu0 0
  %2060 = vmatprep.subr.bf16.mxu0 0
  %2061 = vmatpush2.bf16.msra.mxu0 0
  %2062 = vmatprep.mubr.bf16.mxu0 0
  %2063 = vmatmul.mubr.bf16.gmra.mxu0 %v2029
  %v2064 = vpop.f32.mrf.mxu0
  %v2065 = vadd.f32 0.0, %v2064
  %v2066 = vpop.f32.mrf.mxu0
  %v2067 = vpop.f32.mrf.mxu0
  %v2068 = vadd.f32 0.0, %v2067
  %v2069 = vpop.f32.mrf.mxu0
  %2070 = vdwg.mxu0
  %v2071 = vunpack.c.l.bf16 %v2027
  %v2072 = vunpack.c.l.bf16 %v2028
  %v2073 = vadd.f32 %v2071, %v2065
  %v2074 = vadd.f32 %v2072, %v2068
  %v2075 = vxor.u32 %v2073, 2147483648
  %v2076 = vxor.u32 %v2074, 2147483648
  %v2077 = vmul.f32 %v2075, 1.442695
  %v2078 = vpow.pop %v2077
  %v2079 = vmul.f32 %v2076, 1.442695
  %v2080 = vpow.pop %v2079
  %v2081 = vadd.f32 %v2078, 1.0
  %v2082 = vadd.f32 %v2080, 1.0
  %v2083 = vrcp.pop %v2081
  %v2084 = vmul.f32 1.0, %v2083
  %v2085 = vrcp.pop %v2082
  %v2086 = vmul.f32 1.0, %v2085
  %2089 = vrot.lane.b32.xlu0 %v2084, 64
  %v2090 = vpop.permute.xlu0 %2089
  %2091 = vrot.lane.b32.xlu0 %v2086, 64
  %v2092 = vpop.permute.xlu0 %2091
  %v2095 = vadd.f32 %v2065, %v1642
  %v2096 = vadd.f32 %v2068, %v1642
  %v2097 = vmul.f32 %v2090, %v2095
  %v2098 = vmul.f32 %v2092, %v2096
  %v2099 = vadd.f32 %v2071, %v2097
  %v2100 = vadd.f32 %v2072, %v2098
  %v2101 = vtanh.pop %v2099
  %v2102 = vtanh.pop %v2100
  %2103 = vrot.lane.b32.xlu0 %v2084, 96
  %v2104 = vpop.permute.xlu0 %2103
  %2105 = vrot.lane.b32.xlu0 %v2086, 96
  %v2106 = vpop.permute.xlu0 %2105
  %2111 = vrot.lane.b32.xlu0 %v2101, 64
  %v2112 = vpop.permute.xlu0 %2111
  %2113 = vrot.lane.b32.xlu0 %v2102, 64
  %v2114 = vpop.permute.xlu0 %2113
  %v2117 = vsub.f32 1.0, %v2104
  %v2118 = vsub.f32 1.0, %v2106
  %v2119 = vmul.f32 %v2117, %v2112
  %v2120 = vmul.f32 %v2118, %v2114
  %v2121 = vmul.f32 %v2104, %v2011
  %v2122 = vmul.f32 %v2106, %v2012
  %v2123 = vadd.f32 %v2119, %v2121
  %v2124 = vadd.f32 %v2120, %v2122
  %vm2125 = vcmp.eq.s32.totalorder %v37, 3
  %vm2126 = vcmp.eq.s32.totalorder %v38, 3
  %v2127 = vsel %vm2125, 1, 0
  %v2128 = vsel %vm2126, 1, 0
  %2129 = vset.pattern.permute.xlu0 0
  %2130 = vperm.xlu0 %2129, %v2127
  %v2131 = vpop.permute.xlu0 %2130
  %2132 = vset.pattern.permute.xlu0 0
  %2133 = vperm.xlu0 %2132, %v2128
  %v2134 = vpop.permute.xlu0 %2133
  %vm2135 = vcmp.eq.s32.totalorder %v2131, 1
  %vm2136 = vcmp.eq.s32.totalorder %v2134, 1
  %v2137 = vsel %vm2135, %v2123, %v2025
  %v2138 = vsel %vm2136, %v2124, %v2026
  %v2139 = vld [vmem:[%s865] sm:$0xf]
  %v2140 = vld [vmem:[%s865 + $0x4] sm:$0xf]
  %v2141 = vpack.c.bf16 %v2124, %v2123
  %2142 = vmatprep.subr.bf16.mxu0 0
  %2143 = vmatpush1.bf16.msra.mxu0 %v1685
  %2144 = vmatprep.subr.bf16.mxu0 0
  %2145 = vmatpush1.bf16.msra.mxu0 %v1684
  %2146 = vmatprep.subr.bf16.mxu0 0
  %2147 = vmatpush1.bf16.msra.mxu0 %v1683
  %2148 = vmatprep.subr.bf16.mxu0 0
  %2149 = vmatpush1.bf16.msra.mxu0 %v1682
  %2150 = vmatprep.subr.bf16.mxu0 0
  %2151 = vmatpush1.bf16.msra.mxu0 %v1681
  %2152 = vmatprep.subr.bf16.mxu0 0
  %2153 = vmatpush1.bf16.msra.mxu0 %v1680
  %2154 = vmatprep.subr.bf16.mxu0 0
  %2155 = vmatpush1.bf16.msra.mxu0 %v1679
  %2156 = vmatprep.subr.bf16.mxu0 0
  %2157 = vmatpush1.bf16.msra.mxu0 %v1678
  %2158 = vmatprep.subr.bf16.mxu0 0
  %2159 = vmatpush2.bf16.msra.mxu0 0
  %2160 = vmatprep.subr.bf16.mxu0 0
  %2161 = vmatpush2.bf16.msra.mxu0 0
  %2162 = vmatprep.subr.bf16.mxu0 0
  %2163 = vmatpush2.bf16.msra.mxu0 0
  %2164 = vmatprep.subr.bf16.mxu0 0
  %2165 = vmatpush2.bf16.msra.mxu0 0
  %2166 = vmatprep.subr.bf16.mxu0 0
  %2167 = vmatpush2.bf16.msra.mxu0 0
  %2168 = vmatprep.subr.bf16.mxu0 0
  %2169 = vmatpush2.bf16.msra.mxu0 0
  %2170 = vmatprep.subr.bf16.mxu0 0
  %2171 = vmatpush2.bf16.msra.mxu0 0
  %2172 = vmatprep.subr.bf16.mxu0 0
  %2173 = vmatpush2.bf16.msra.mxu0 0
  %2174 = vmatprep.mubr.bf16.mxu0 0
  %2175 = vmatmul.mubr.bf16.gmra.mxu0 %v2141
  %v2176 = vpop.f32.mrf.mxu0
  %v2177 = vadd.f32 0.0, %v2176
  %v2178 = vpop.f32.mrf.mxu0
  %v2179 = vpop.f32.mrf.mxu0
  %v2180 = vadd.f32 0.0, %v2179
  %v2181 = vpop.f32.mrf.mxu0
  %2182 = vdwg.mxu0
  %v2183 = vunpack.c.l.bf16 %v2139
  %v2184 = vunpack.c.l.bf16 %v2140
  %v2185 = vadd.f32 %v2183, %v2177
  %v2186 = vadd.f32 %v2184, %v2180
  %v2187 = vxor.u32 %v2185, 2147483648
  %v2188 = vxor.u32 %v2186, 2147483648
  %v2189 = vmul.f32 %v2187, 1.442695
  %v2190 = vpow.pop %v2189
  %v2191 = vmul.f32 %v2188, 1.442695
  %v2192 = vpow.pop %v2191
  %v2193 = vadd.f32 %v2190, 1.0
  %v2194 = vadd.f32 %v2192, 1.0
  %v2195 = vrcp.pop %v2193
  %v2196 = vmul.f32 1.0, %v2195
  %v2197 = vrcp.pop %v2194
  %v2198 = vmul.f32 1.0, %v2197
  %2201 = vrot.lane.b32.xlu0 %v2196, 64
  %v2202 = vpop.permute.xlu0 %2201
  %2203 = vrot.lane.b32.xlu0 %v2198, 64
  %v2204 = vpop.permute.xlu0 %2203
  %v2207 = vadd.f32 %v2177, %v1642
  %v2208 = vadd.f32 %v2180, %v1642
  %v2209 = vmul.f32 %v2202, %v2207
  %v2210 = vmul.f32 %v2204, %v2208
  %v2211 = vadd.f32 %v2183, %v2209
  %v2212 = vadd.f32 %v2184, %v2210
  %v2213 = vtanh.pop %v2211
  %v2214 = vtanh.pop %v2212
  %2215 = vrot.lane.b32.xlu0 %v2196, 96
  %v2216 = vpop.permute.xlu0 %2215
  %2217 = vrot.lane.b32.xlu0 %v2198, 96
  %v2218 = vpop.permute.xlu0 %2217
  %2223 = vrot.lane.b32.xlu0 %v2213, 64
  %v2224 = vpop.permute.xlu0 %2223
  %2225 = vrot.lane.b32.xlu0 %v2214, 64
  %v2226 = vpop.permute.xlu0 %2225
  %v2229 = vsub.f32 1.0, %v2216
  %v2230 = vsub.f32 1.0, %v2218
  %v2231 = vmul.f32 %v2229, %v2224
  %v2232 = vmul.f32 %v2230, %v2226
  %v2233 = vmul.f32 %v2216, %v2123
  %v2234 = vmul.f32 %v2218, %v2124
  %v2235 = vadd.f32 %v2231, %v2233
  %v2236 = vadd.f32 %v2232, %v2234
  %vm2237 = vcmp.eq.s32.totalorder %v37, 4
  %vm2238 = vcmp.eq.s32.totalorder %v38, 4
  %v2239 = vsel %vm2237, 1, 0
  %v2240 = vsel %vm2238, 1, 0
  %2241 = vset.pattern.permute.xlu0 0
  %2242 = vperm.xlu0 %2241, %v2239
  %v2243 = vpop.permute.xlu0 %2242
  %2244 = vset.pattern.permute.xlu0 0
  %2245 = vperm.xlu0 %2244, %v2240
  %v2246 = vpop.permute.xlu0 %2245
  %vm2247 = vcmp.eq.s32.totalorder %v2243, 1
  %vm2248 = vcmp.eq.s32.totalorder %v2246, 1
  %v2249 = vsel %vm2247, %v2235, %v2137
  %v2250 = vsel %vm2248, %v2236, %v2138
  %v2251 = vld [vmem:[%s977] sm:$0xf]
  %v2252 = vld [vmem:[%s977 + $0x4] sm:$0xf]
  %v2253 = vpack.c.bf16 %v2236, %v2235
  %2254 = vmatprep.subr.bf16.mxu0 0
  %2255 = vmatpush1.bf16.msra.mxu0 %v1685
  %2256 = vmatprep.subr.bf16.mxu0 0
  %2257 = vmatpush1.bf16.msra.mxu0 %v1684
  %2258 = vmatprep.subr.bf16.mxu0 0
  %2259 = vmatpush1.bf16.msra.mxu0 %v1683
  %2260 = vmatprep.subr.bf16.mxu0 0
  %2261 = vmatpush1.bf16.msra.mxu0 %v1682
  %2262 = vmatprep.subr.bf16.mxu0 0
  %2263 = vmatpush1.bf16.msra.mxu0 %v1681
  %2264 = vmatprep.subr.bf16.mxu0 0
  %2265 = vmatpush1.bf16.msra.mxu0 %v1680
  %2266 = vmatprep.subr.bf16.mxu0 0
  %2267 = vmatpush1.bf16.msra.mxu0 %v1679
  %2268 = vmatprep.subr.bf16.mxu0 0
  %2269 = vmatpush1.bf16.msra.mxu0 %v1678
  %2270 = vmatprep.subr.bf16.mxu0 0
  %2271 = vmatpush2.bf16.msra.mxu0 0
  %2272 = vmatprep.subr.bf16.mxu0 0
  %2273 = vmatpush2.bf16.msra.mxu0 0
  %2274 = vmatprep.subr.bf16.mxu0 0
  %2275 = vmatpush2.bf16.msra.mxu0 0
  %2276 = vmatprep.subr.bf16.mxu0 0
  %2277 = vmatpush2.bf16.msra.mxu0 0
  %2278 = vmatprep.subr.bf16.mxu0 0
  %2279 = vmatpush2.bf16.msra.mxu0 0
  %2280 = vmatprep.subr.bf16.mxu0 0
  %2281 = vmatpush2.bf16.msra.mxu0 0
  %2282 = vmatprep.subr.bf16.mxu0 0
  %2283 = vmatpush2.bf16.msra.mxu0 0
  %2284 = vmatprep.subr.bf16.mxu0 0
  %2285 = vmatpush2.bf16.msra.mxu0 0
  %2286 = vmatprep.mubr.bf16.mxu0 0
  %2287 = vmatmul.mubr.bf16.gmra.mxu0 %v2253
  %v2288 = vpop.f32.mrf.mxu0
  %v2289 = vadd.f32 0.0, %v2288
  %v2290 = vpop.f32.mrf.mxu0
  %v2291 = vpop.f32.mrf.mxu0
  %v2292 = vadd.f32 0.0, %v2291
  %v2293 = vpop.f32.mrf.mxu0
  %2294 = vdwg.mxu0
  %v2295 = vunpack.c.l.bf16 %v2251
  %v2296 = vunpack.c.l.bf16 %v2252
  %v2297 = vadd.f32 %v2295, %v2289
  %v2298 = vadd.f32 %v2296, %v2292
  %v2299 = vxor.u32 %v2297, 2147483648
  %v2300 = vxor.u32 %v2298, 2147483648
  %v2301 = vmul.f32 %v2299, 1.442695
  %v2302 = vpow.pop %v2301
  %v2303 = vmul.f32 %v2300, 1.442695
  %v2304 = vpow.pop %v2303
  %v2305 = vadd.f32 %v2302, 1.0
  %v2306 = vadd.f32 %v2304, 1.0
  %v2307 = vrcp.pop %v2305
  %v2308 = vmul.f32 1.0, %v2307
  %v2309 = vrcp.pop %v2306
  %v2310 = vmul.f32 1.0, %v2309
  %2313 = vrot.lane.b32.xlu0 %v2308, 64
  %v2314 = vpop.permute.xlu0 %2313
  %2315 = vrot.lane.b32.xlu0 %v2310, 64
  %v2316 = vpop.permute.xlu0 %2315
  %v2319 = vadd.f32 %v2289, %v1642
  %v2320 = vadd.f32 %v2292, %v1642
  %v2321 = vmul.f32 %v2314, %v2319
  %v2322 = vmul.f32 %v2316, %v2320
  %v2323 = vadd.f32 %v2295, %v2321
  %v2324 = vadd.f32 %v2296, %v2322
  %v2325 = vtanh.pop %v2323
  %v2326 = vtanh.pop %v2324
  %2327 = vrot.lane.b32.xlu0 %v2308, 96
  %v2328 = vpop.permute.xlu0 %2327
  %2329 = vrot.lane.b32.xlu0 %v2310, 96
  %v2330 = vpop.permute.xlu0 %2329
  %2335 = vrot.lane.b32.xlu0 %v2325, 64
  %v2336 = vpop.permute.xlu0 %2335
  %2337 = vrot.lane.b32.xlu0 %v2326, 64
  %v2338 = vpop.permute.xlu0 %2337
  %v2341 = vsub.f32 1.0, %v2328
  %v2342 = vsub.f32 1.0, %v2330
  %v2343 = vmul.f32 %v2341, %v2336
  %v2344 = vmul.f32 %v2342, %v2338
  %v2345 = vmul.f32 %v2328, %v2235
  %v2346 = vmul.f32 %v2330, %v2236
  %v2347 = vadd.f32 %v2343, %v2345
  %v2348 = vadd.f32 %v2344, %v2346
  %vm2349 = vcmp.eq.s32.totalorder %v37, 5
  %vm2350 = vcmp.eq.s32.totalorder %v38, 5
  %v2351 = vsel %vm2349, 1, 0
  %v2352 = vsel %vm2350, 1, 0
  %2353 = vset.pattern.permute.xlu0 0
  %2354 = vperm.xlu0 %2353, %v2351
  %v2355 = vpop.permute.xlu0 %2354
  %2356 = vset.pattern.permute.xlu0 0
  %2357 = vperm.xlu0 %2356, %v2352
  %v2358 = vpop.permute.xlu0 %2357
  %vm2359 = vcmp.eq.s32.totalorder %v2355, 1
  %vm2360 = vcmp.eq.s32.totalorder %v2358, 1
  %v2361 = vsel %vm2359, %v2347, %v2249
  %v2362 = vsel %vm2360, %v2348, %v2250
  %v2363 = vld [vmem:[%s1089] sm:$0xf]
  %v2364 = vld [vmem:[%s1089 + $0x4] sm:$0xf]
  %v2365 = vpack.c.bf16 %v2348, %v2347
  %2366 = vmatprep.subr.bf16.mxu0 0
  %2367 = vmatpush1.bf16.msra.mxu0 %v1685
  %2368 = vmatprep.subr.bf16.mxu0 0
  %2369 = vmatpush1.bf16.msra.mxu0 %v1684
  %2370 = vmatprep.subr.bf16.mxu0 0
  %2371 = vmatpush1.bf16.msra.mxu0 %v1683
  %2372 = vmatprep.subr.bf16.mxu0 0
  %2373 = vmatpush1.bf16.msra.mxu0 %v1682
  %2374 = vmatprep.subr.bf16.mxu0 0
  %2375 = vmatpush1.bf16.msra.mxu0 %v1681
  %2376 = vmatprep.subr.bf16.mxu0 0
  %2377 = vmatpush1.bf16.msra.mxu0 %v1680
  %2378 = vmatprep.subr.bf16.mxu0 0
  %2379 = vmatpush1.bf16.msra.mxu0 %v1679
  %2380 = vmatprep.subr.bf16.mxu0 0
  %2381 = vmatpush1.bf16.msra.mxu0 %v1678
  %2382 = vmatprep.subr.bf16.mxu0 0
  %2383 = vmatpush2.bf16.msra.mxu0 0
  %2384 = vmatprep.subr.bf16.mxu0 0
  %2385 = vmatpush2.bf16.msra.mxu0 0
  %2386 = vmatprep.subr.bf16.mxu0 0
  %2387 = vmatpush2.bf16.msra.mxu0 0
  %2388 = vmatprep.subr.bf16.mxu0 0
  %2389 = vmatpush2.bf16.msra.mxu0 0
  %2390 = vmatprep.subr.bf16.mxu0 0
  %2391 = vmatpush2.bf16.msra.mxu0 0
  %2392 = vmatprep.subr.bf16.mxu0 0
  %2393 = vmatpush2.bf16.msra.mxu0 0
  %2394 = vmatprep.subr.bf16.mxu0 0
  %2395 = vmatpush2.bf16.msra.mxu0 0
  %2396 = vmatprep.subr.bf16.mxu0 0
  %2397 = vmatpush2.bf16.msra.mxu0 0
  %2398 = vmatprep.mubr.bf16.mxu0 0
  %2399 = vmatmul.mubr.bf16.gmra.mxu0 %v2365
  %v2400 = vpop.f32.mrf.mxu0
  %v2401 = vadd.f32 0.0, %v2400
  %v2402 = vpop.f32.mrf.mxu0
  %v2403 = vpop.f32.mrf.mxu0
  %v2404 = vadd.f32 0.0, %v2403
  %v2405 = vpop.f32.mrf.mxu0
  %2406 = vdwg.mxu0
  %v2407 = vunpack.c.l.bf16 %v2363
  %v2408 = vunpack.c.l.bf16 %v2364
  %v2409 = vadd.f32 %v2407, %v2401
  %v2410 = vadd.f32 %v2408, %v2404
  %v2411 = vxor.u32 %v2409, 2147483648
  %v2412 = vxor.u32 %v2410, 2147483648
  %v2413 = vmul.f32 %v2411, 1.442695
  %v2414 = vpow.pop %v2413
  %v2415 = vmul.f32 %v2412, 1.442695
  %v2416 = vpow.pop %v2415
  %v2417 = vadd.f32 %v2414, 1.0
  %v2418 = vadd.f32 %v2416, 1.0
  %v2419 = vrcp.pop %v2417
  %v2420 = vmul.f32 1.0, %v2419
  %v2421 = vrcp.pop %v2418
  %v2422 = vmul.f32 1.0, %v2421
  %2425 = vrot.lane.b32.xlu0 %v2420, 64
  %v2426 = vpop.permute.xlu0 %2425
  %2427 = vrot.lane.b32.xlu0 %v2422, 64
  %v2428 = vpop.permute.xlu0 %2427
  %v2431 = vadd.f32 %v2401, %v1642
  %v2432 = vadd.f32 %v2404, %v1642
  %v2433 = vmul.f32 %v2426, %v2431
  %v2434 = vmul.f32 %v2428, %v2432
  %v2435 = vadd.f32 %v2407, %v2433
  %v2436 = vadd.f32 %v2408, %v2434
  %v2437 = vtanh.pop %v2435
  %v2438 = vtanh.pop %v2436
  %2439 = vrot.lane.b32.xlu0 %v2420, 96
  %v2440 = vpop.permute.xlu0 %2439
  %2441 = vrot.lane.b32.xlu0 %v2422, 96
  %v2442 = vpop.permute.xlu0 %2441
  %2447 = vrot.lane.b32.xlu0 %v2437, 64
  %v2448 = vpop.permute.xlu0 %2447
  %2449 = vrot.lane.b32.xlu0 %v2438, 64
  %v2450 = vpop.permute.xlu0 %2449
  %v2453 = vsub.f32 1.0, %v2440
  %v2454 = vsub.f32 1.0, %v2442
  %v2455 = vmul.f32 %v2453, %v2448
  %v2456 = vmul.f32 %v2454, %v2450
  %v2457 = vmul.f32 %v2440, %v2347
  %v2458 = vmul.f32 %v2442, %v2348
  %v2459 = vadd.f32 %v2455, %v2457
  %v2460 = vadd.f32 %v2456, %v2458
  %vm2461 = vcmp.eq.s32.totalorder %v37, 6
  %vm2462 = vcmp.eq.s32.totalorder %v38, 6
  %v2463 = vsel %vm2461, 1, 0
  %v2464 = vsel %vm2462, 1, 0
  %2465 = vset.pattern.permute.xlu0 0
  %2466 = vperm.xlu0 %2465, %v2463
  %v2467 = vpop.permute.xlu0 %2466
  %2468 = vset.pattern.permute.xlu0 0
  %2469 = vperm.xlu0 %2468, %v2464
  %v2470 = vpop.permute.xlu0 %2469
  %vm2471 = vcmp.eq.s32.totalorder %v2467, 1
  %vm2472 = vcmp.eq.s32.totalorder %v2470, 1
  %v2473 = vsel %vm2471, %v2459, %v2361
  %v2474 = vsel %vm2472, %v2460, %v2362
  %v2475 = vld [vmem:[%s1201] sm:$0xf]
  %v2476 = vld [vmem:[%s1201 + $0x4] sm:$0xf]
  %v2477 = vpack.c.bf16 %v2460, %v2459
  %2478 = vmatprep.subr.bf16.mxu0 0
  %2479 = vmatpush1.bf16.msra.mxu0 %v1685
  %2480 = vmatprep.subr.bf16.mxu0 0
  %2481 = vmatpush1.bf16.msra.mxu0 %v1684
  %2482 = vmatprep.subr.bf16.mxu0 0
  %2483 = vmatpush1.bf16.msra.mxu0 %v1683
  %2484 = vmatprep.subr.bf16.mxu0 0
  %2485 = vmatpush1.bf16.msra.mxu0 %v1682
  %2486 = vmatprep.subr.bf16.mxu0 0
  %2487 = vmatpush1.bf16.msra.mxu0 %v1681
  %2488 = vmatprep.subr.bf16.mxu0 0
  %2489 = vmatpush1.bf16.msra.mxu0 %v1680
  %2490 = vmatprep.subr.bf16.mxu0 0
  %2491 = vmatpush1.bf16.msra.mxu0 %v1679
  %2492 = vmatprep.subr.bf16.mxu0 0
  %2493 = vmatpush1.bf16.msra.mxu0 %v1678
  %2494 = vmatprep.subr.bf16.mxu0 0
  %2495 = vmatpush2.bf16.msra.mxu0 0
  %2496 = vmatprep.subr.bf16.mxu0 0
  %2497 = vmatpush2.bf16.msra.mxu0 0
  %2498 = vmatprep.subr.bf16.mxu0 0
  %2499 = vmatpush2.bf16.msra.mxu0 0
  %2500 = vmatprep.subr.bf16.mxu0 0
  %2501 = vmatpush2.bf16.msra.mxu0 0
  %2502 = vmatprep.subr.bf16.mxu0 0
  %2503 = vmatpush2.bf16.msra.mxu0 0
  %2504 = vmatprep.subr.bf16.mxu0 0
  %2505 = vmatpush2.bf16.msra.mxu0 0
  %2506 = vmatprep.subr.bf16.mxu0 0
  %2507 = vmatpush2.bf16.msra.mxu0 0
  %2508 = vmatprep.subr.bf16.mxu0 0
  %2509 = vmatpush2.bf16.msra.mxu0 0
  %2510 = vmatprep.mubr.bf16.mxu0 0
  %2511 = vmatmul.mubr.bf16.gmra.mxu0 %v2477
  %v2512 = vpop.f32.mrf.mxu0
  %v2513 = vadd.f32 0.0, %v2512
  %v2514 = vpop.f32.mrf.mxu0
  %v2515 = vpop.f32.mrf.mxu0
  %v2516 = vadd.f32 0.0, %v2515
  %v2517 = vpop.f32.mrf.mxu0
  %2518 = vdwg.mxu0
  %v2519 = vunpack.c.l.bf16 %v2475
  %v2520 = vunpack.c.l.bf16 %v2476
  %v2521 = vadd.f32 %v2519, %v2513
  %v2522 = vadd.f32 %v2520, %v2516
  %v2523 = vxor.u32 %v2521, 2147483648
  %v2524 = vxor.u32 %v2522, 2147483648
  %v2525 = vmul.f32 %v2523, 1.442695
  %v2526 = vpow.pop %v2525
  %v2527 = vmul.f32 %v2524, 1.442695
  %v2528 = vpow.pop %v2527
  %v2529 = vadd.f32 %v2526, 1.0
  %v2530 = vadd.f32 %v2528, 1.0
  %v2531 = vrcp.pop %v2529
  %v2532 = vmul.f32 1.0, %v2531
  %v2533 = vrcp.pop %v2530
  %v2534 = vmul.f32 1.0, %v2533
  %2537 = vrot.lane.b32.xlu0 %v2532, 64
  %v2538 = vpop.permute.xlu0 %2537
  %2539 = vrot.lane.b32.xlu0 %v2534, 64
  %v2540 = vpop.permute.xlu0 %2539
  %v2543 = vadd.f32 %v2513, %v1642
  %v2544 = vadd.f32 %v2516, %v1642
  %v2545 = vmul.f32 %v2538, %v2543
  %v2546 = vmul.f32 %v2540, %v2544
  %v2547 = vadd.f32 %v2519, %v2545
  %v2548 = vadd.f32 %v2520, %v2546
  %v2549 = vtanh.pop %v2547
  %v2550 = vtanh.pop %v2548
  %2551 = vrot.lane.b32.xlu0 %v2532, 96
  %v2552 = vpop.permute.xlu0 %2551
  %2553 = vrot.lane.b32.xlu0 %v2534, 96
  %v2554 = vpop.permute.xlu0 %2553
  %2559 = vrot.lane.b32.xlu0 %v2549, 64
  %v2560 = vpop.permute.xlu0 %2559
  %2561 = vrot.lane.b32.xlu0 %v2550, 64
  %v2562 = vpop.permute.xlu0 %2561
  %v2565 = vsub.f32 1.0, %v2552
  %v2566 = vsub.f32 1.0, %v2554
  %v2567 = vmul.f32 %v2565, %v2560
  %v2568 = vmul.f32 %v2566, %v2562
  %v2569 = vmul.f32 %v2552, %v2459
  %v2570 = vmul.f32 %v2554, %v2460
  %v2571 = vadd.f32 %v2567, %v2569
  %v2572 = vadd.f32 %v2568, %v2570
  %vm2573 = vcmp.eq.s32.totalorder %v37, 7
  %vm2574 = vcmp.eq.s32.totalorder %v38, 7
  %v2575 = vsel %vm2573, 1, 0
  %v2576 = vsel %vm2574, 1, 0
  %2577 = vset.pattern.permute.xlu0 0
  %2578 = vperm.xlu0 %2577, %v2575
  %v2579 = vpop.permute.xlu0 %2578
  %2580 = vset.pattern.permute.xlu0 0
  %2581 = vperm.xlu0 %2580, %v2576
  %v2582 = vpop.permute.xlu0 %2581
  %vm2583 = vcmp.eq.s32.totalorder %v2579, 1
  %vm2584 = vcmp.eq.s32.totalorder %v2582, 1
  %v2585 = vsel %vm2583, %v2571, %v2473
  %v2586 = vsel %vm2584, %v2572, %v2474
  %v2587 = vsel %vm41, %v2585, 0.0
  %v2588 = vsel %vm41, %v2586, 0.0
  %2589 = vadd.xlane.f32.xlu0 %v2587
  %v2590 = vpop.xlane.xlu0 %2589
  %2591 = vadd.xlane.f32.xlu0 %v2588
  %v2592 = vpop.xlane.xlu0 %2591
  %v2593 = vmul.f32 %v2590, 0.03125
  %v2594 = vmul.f32 %v2592, 0.03125
  %v2595 = vsub.f32 %v2585, %v2593
  %v2596 = vsub.f32 %v2586, %v2594
  %v2597 = vsel %vm41, %v2595, 0.0
  %v2598 = vsel %vm41, %v2596, 0.0
  %v2599 = vmul.f32 %v2597, %v2597
  %v2600 = vmul.f32 %v2598, %v2598
  %2601 = vadd.xlane.f32.xlu0 %v2599
  %v2602 = vpop.xlane.xlu0 %2601
  %2603 = vadd.xlane.f32.xlu0 %v2600
  %v2604 = vpop.xlane.xlu0 %2603
  %v2605 = vmul.f32 %v2602, 0.03125
  %v2606 = vmul.f32 %v2604, 0.03125
  %v2607 = vadd.f32 %v2605, 1e-05
  %v2608 = vadd.f32 %v2606, 1e-05
  %v2609 = vrsqrt.pop %v2607
  %v2610 = vrsqrt.pop %v2608
  %v2611 = vmul.f32 %v2597, %v2609
  %v2612 = vmul.f32 %v2598, %v2610
  %v2613 = vld [vmem:[%s5] sm:$0x1]
  %v2615 = vlaneseq
  %v2616 = vshrl.u32 %v2615, 7
  %v2617 = vsub.s32 0, %v2616
  %v2618 = vrot.slane %v2613, %v2617
  %v2620 = vmul.f32 %v2611, %v2618
  %v2621 = vmul.f32 %v2612, %v2618
  %v2622 = vld [vmem:[%s6] sm:$0x1]
  %v2624 = vlaneseq
  %v2625 = vshrl.u32 %v2624, 7
  %v2626 = vsub.s32 0, %v2625
  %v2627 = vrot.slane %v2622, %v2626
  %v2629 = vadd.f32 %v2620, %v2627
  %v2630 = vadd.f32 %v2621, %v2627
  %v2631 = vld [vmem:[%s7] sm:$0x1]
  %v2633 = vlaneseq
  %v2634 = vshrl.u32 %v2633, 7
  %v2635 = vsub.s32 0, %v2634
  %v2636 = vrot.slane %v2631, %v2635
  %v2638 = vmul.f32 %v2629, %v2636
  %v2639 = vmul.f32 %v2630, %v2636
  %2640 = vadd.xlane.f32.xlu0 %v2638
  %v2641 = vpop.xlane.xlu0 %2640
  %2642 = vadd.xlane.f32.xlu0 %v2639
  %v2643 = vpop.xlane.xlu0 %2642
  %v2644 = vld [vmem:[#allocation4] sm:$0x1]
  %v2646 = vlaneseq
  %v2647 = vshrl.u32 %v2646, 7
  %v2648 = vsub.s32 0, %v2647
  %v2649 = vrot.slane %v2644, %v2648
  %v2651 = vadd.f32 %v2641, %v2649
  %v2652 = vadd.f32 %v2643, %v2649
  %2654 = vset.pattern.permute.xlu0 0
  %2655 = vperm.xlu0 %2654, %v2651
  %v2656 = vpop.permute.xlu0 %2655
  %2659 = vset.pattern.permute.xlu0 0
  %2660 = vperm.xlu0 %2659, %v2652
  %v2661 = vpop.permute.xlu0 %2660
  %2663 = vst [vmem:[%s9] sm:$0xff] %v2656
  %2664 = vst [vmem:[%s9 + $0x8] sm:$0xff] %v2661
  // Predicated region
  $region38: #{gru_classifier_forward.1} parent=0 // pred_check
    _
  $region39: #{gru_classifier_forward.1} parent=0 // pred_check_branch
    %2666 = sbr.rel (0) target = $region41
  $region40: #{gru_classifier_forward.1} parent=0 // pred_region
    _
  $region41: #{gru_classifier_forward.1} parent=0 // pred_fallthru
    _
  // Predicated region
  $region42: #{gru_classifier_forward.1} parent=0 // pred_check
    _
  $region43: #{gru_classifier_forward.1} parent=0 // pred_check_branch
    %2668 = sbr.rel (0) target = $region45
  $region44: #{gru_classifier_forward.1} parent=0 // pred_region
    _
  $region45: #{gru_classifier_forward.1} parent=0 // pred_fallthru
    _

</llo_original>
